<compile_context>
chip_gen: v6e
topology: v6e:2x2x1
jax: 0.10.0
libtpu: 0.0.40
codegen_flags: <defaults>
</compile_context>

<pallas_src>
import functools

import jax
import jax.numpy as jnp
from jax.experimental import pallas as pl
from jax.experimental.pallas import tpu as pltpu


def _round_up(x, m):
    return (x + m - 1) // m * m


# ---------------------------------------------------------------------------
# Kernel 1: fused matmul  o = maybe_relu((a @ b) * scale + shift)
# bf16 operands on the MXU, f32 accumulate, epilogue in f32.
# ---------------------------------------------------------------------------

def _fused_matmul_kernel(a_ref, b_ref, scale_ref, shift_ref, o_ref, *, relu):
    # Single-K-tile path: no accumulator scratch round trip.
    out = jnp.dot(a_ref[...], b_ref[...], preferred_element_type=jnp.float32)
    out = out * scale_ref[...] + shift_ref[...]
    if relu:
        out = jnp.maximum(out, 0.0)
    o_ref[...] = out.astype(o_ref.dtype)


def _fused_matmul_acc_kernel(a_ref, b_ref, scale_ref, shift_ref, o_ref, acc_ref, *, relu):
    # K-tiled path with an f32 VMEM accumulator.
    @pl.when(pl.program_id(2) == 0)
    def _():
        acc_ref[...] = jnp.zeros_like(acc_ref)

    acc_ref[...] += jnp.dot(a_ref[...], b_ref[...], preferred_element_type=jnp.float32)

    @pl.when(pl.program_id(2) == pl.num_programs(2) - 1)
    def _():
        out = acc_ref[...] * scale_ref[...] + shift_ref[...]
        if relu:
            out = jnp.maximum(out, 0.0)
        o_ref[...] = out.astype(o_ref.dtype)


def fused_matmul(a, b, scale, shift, relu, out_dtype=jnp.bfloat16):
    """a: [M, K], b: [K, N] (float), scale/shift: [N] f32 -> [M, N] out_dtype."""
    M, K = a.shape
    K2, N = b.shape
    assert K == K2
    TM = min(512, _round_up(M, 8))
    TN = min(512, _round_up(N, 128))
    Kp128 = _round_up(K, 128)
    TK = Kp128 if Kp128 <= 2048 else 512          # all convs here fit one K tile
    Mp, Np, Kp = _round_up(M, TM), _round_up(N, TN), _round_up(K, TK)
    nk = Kp // TK

    a_p = jnp.pad(a.astype(jnp.bfloat16), ((0, Mp - M), (0, Kp - K)))
    b_p = jnp.pad(b.astype(jnp.bfloat16), ((0, Kp - K), (0, Np - N)))
    scale_p = jnp.pad(scale.astype(jnp.float32), (0, Np - N)).reshape(1, Np)
    shift_p = jnp.pad(shift.astype(jnp.float32), (0, Np - N)).reshape(1, Np)

    if nk == 1:
        out = pl.pallas_call(
            functools.partial(_fused_matmul_kernel, relu=relu),
            out_shape=jax.ShapeDtypeStruct((Mp, Np), out_dtype),
            grid=(Mp // TM, Np // TN),
            in_specs=[
                pl.BlockSpec((TM, TK), lambda i, j: (i, 0)),
                pl.BlockSpec((TK, TN), lambda i, j: (0, j)),
                pl.BlockSpec((1, TN), lambda i, j: (0, j)),
                pl.BlockSpec((1, TN), lambda i, j: (0, j)),
            ],
            out_specs=pl.BlockSpec((TM, TN), lambda i, j: (i, j)),
            compiler_params=pltpu.CompilerParams(
                dimension_semantics=("parallel", "parallel")),
        )(a_p, b_p, scale_p, shift_p)
    else:
        out = pl.pallas_call(
            functools.partial(_fused_matmul_acc_kernel, relu=relu),
            out_shape=jax.ShapeDtypeStruct((Mp, Np), out_dtype),
            grid=(Mp // TM, Np // TN, nk),
            in_specs=[
                pl.BlockSpec((TM, TK), lambda i, j, k: (i, k)),
                pl.BlockSpec((TK, TN), lambda i, j, k: (k, j)),
                pl.BlockSpec((1, TN), lambda i, j, k: (0, j)),
                pl.BlockSpec((1, TN), lambda i, j, k: (0, j)),
            ],
            out_specs=pl.BlockSpec((TM, TN), lambda i, j, k: (i, j)),
            scratch_shapes=[pltpu.VMEM((TM, TN), jnp.float32)],
            compiler_params=pltpu.CompilerParams(
                dimension_semantics=("parallel", "parallel", "arbitrary")),
        )(a_p, b_p, scale_p, shift_p)
    return out[:M, :N]


# ---------------------------------------------------------------------------
# Convolution = wrapper-side im2col (one XLA data-movement fusion) + the fused
# matmul kernel above.  Batch and all output pixels fold into M; all taps fold
# into K, so the MXU sees one full-depth matmul per layer.
# ---------------------------------------------------------------------------

def _im2col(x, kh, kw, stride, pad):
    """x: [N,H,W,C] -> ([N*Ho*Wo, kh*kw*C], Ho, Wo); taps (i,j) row-major, C minor."""
    N, H, W, C = x.shape
    Ho = (H + 2 * pad - kh) // stride + 1
    Wo = (W + 2 * pad - kw) // stride + 1
    xp = jnp.pad(x, ((0, 0), (pad, pad), (pad, pad), (0, 0)))
    cols = []
    for i in range(kh):
        for j in range(kw):
            cols.append(xp[:, i:i + stride * (Ho - 1) + 1:stride,
                            j:j + stride * (Wo - 1) + 1:stride, :])
    patches = jnp.concatenate(cols, axis=-1)          # [N, Ho, Wo, kh*kw*C]
    return patches.reshape(N * Ho * Wo, kh * kw * C), Ho, Wo


def conv_bn_relu(x, w, b, bn, stride, pad, eps=1e-5):
    """x: NHWC bf16.  w: PyTorch layout [Cout, Cin, kh, kw].  bn=(gamma,beta,mean,var)."""
    gamma, beta, mean, var = bn
    Cout, Cin, kh, kw = w.shape
    Nb = x.shape[0]
    cols, Ho, Wo = _im2col(x, kh, kw, stride, pad)
    # [Cout, Cin, kh, kw] -> [kh*kw*Cin, Cout] matching the patch ordering.
    w_mat = jnp.transpose(w, (2, 3, 1, 0)).reshape(kh * kw * Cin, Cout)
    scale = gamma * jax.lax.rsqrt(var + eps)
    shift = beta - mean * scale + b * scale            # conv bias folded in
    out = fused_matmul(cols, w_mat, scale, shift, relu=True, out_dtype=jnp.bfloat16)
    return out.reshape(Nb, Ho, Wo, Cout)


# ---------------------------------------------------------------------------
# Kernel 2: whole-plane max-pool.  The wrapper parity-splits the padded map
# over (H, W) so every in-kernel slice is unstrided; the kernel takes k*k
# elementwise maxima over full [N, Ho, Wo, C] planes and stores once.
# ---------------------------------------------------------------------------

def _maxpool_kernel(*refs, k, stride, ho, wo):
    x_refs = refs[:stride * stride]
    o_ref = refs[stride * stride]
    res = None
    for i in range(k):
        pi, oi = i % stride, i // stride
        for j in range(k):
            pj, oj = j % stride, j // stride
            v = x_refs[pi * stride + pj][:, oi:oi + ho, oj:oj + wo, :]
            res = v if res is None else jnp.maximum(res, v)
    o_ref[...] = res


def maxpool2d(x, k, stride, pad):
    N, H, W, C = x.shape
    Ho = (H + 2 * pad - k) // stride + 1
    Wo = (W + 2 * pad - k) // stride + 1
    neg = -1e30                                        # representable in bf16
    xp = jnp.pad(x, ((0, 0), (pad, pad), (pad, pad), (0, 0)), constant_values=neg)
    Hreq = Ho + (k - 1) // stride
    Wreq = Wo + (k - 1) // stride
    phases = []
    for ph in range(stride):
        for pw in range(stride):
            v = xp[:, ph::stride, pw::stride, :]
            v = v[:, :Hreq, :Wreq, :]
            pad_h, pad_w = Hreq - v.shape[1], Wreq - v.shape[2]
            if pad_h > 0 or pad_w > 0:
                v = jnp.pad(v, ((0, 0), (0, pad_h), (0, pad_w), (0, 0)),
                            constant_values=neg)
            phases.append(v)

    kernel = functools.partial(_maxpool_kernel, k=k, stride=stride, ho=Ho, wo=Wo)
    return pl.pallas_call(
        kernel,
        out_shape=jax.ShapeDtypeStruct((N, Ho, Wo, C), x.dtype),
        grid=(1,),
        in_specs=[pl.BlockSpec((N, Hreq, Wreq, C), lambda n: (0, 0, 0, 0))
                  for _ in phases],
        out_specs=pl.BlockSpec((N, Ho, Wo, C), lambda n: (0, 0, 0, 0)),
        compiler_params=pltpu.CompilerParams(dimension_semantics=("arbitrary",)),
    )(*phases)


# ---------------------------------------------------------------------------
# Kernel 3: fused global average pool + Linear, single grid step, classifier
# padded to 1024 lanes (sliced back outside).
# ---------------------------------------------------------------------------

def _avgpool_fc_kernel(x_ref, w_ref, b_ref, o_ref, *, inv_hw):
    pooled = jnp.sum(x_ref[...].astype(jnp.float32), axis=1) * inv_hw   # [Np, C] f32
    acc = jnp.dot(pooled.astype(jnp.bfloat16), w_ref[...],
                  preferred_element_type=jnp.float32)
    o_ref[...] = acc + b_ref[...]


def avgpool_fc(x, fc_w, fc_b):
    """x: [N, H, W, C] bf16; fc_w: [C, num_classes] f32; fc_b: [num_classes] f32."""
    N, H, W, C = x.shape
    nc = fc_w.shape[1]
    Np = _round_up(max(N, 8), 8)                       # sublane-aligned rows
    NCp = _round_up(nc, 128)                           # 1000 -> 1024 lanes
    xf = jnp.pad(x.reshape(N, H * W, C), ((0, Np - N), (0, 0), (0, 0)))
    w_p = jnp.pad(fc_w, ((0, 0), (0, NCp - nc))).astype(jnp.bfloat16)
    b_p = jnp.pad(fc_b, (0, NCp - nc)).reshape(1, NCp).astype(jnp.float32)

    kernel = functools.partial(_avgpool_fc_kernel, inv_hw=1.0 / (H * W))
    out = pl.pallas_call(
        kernel,
        out_shape=jax.ShapeDtypeStruct((Np, NCp), jnp.float32),
        grid=(1,),
        in_specs=[
            pl.BlockSpec((Np, H * W, C), lambda j: (0, 0, 0)),
            pl.BlockSpec((C, NCp), lambda j: (0, 0)),
            pl.BlockSpec((1, NCp), lambda j: (0, 0)),
        ],
        out_specs=pl.BlockSpec((Np, NCp), lambda j: (0, 0)),
        compiler_params=pltpu.CompilerParams(dimension_semantics=("arbitrary",)),
    )(xf, w_p, b_p)
    return out[:N, :nc]


# ---------------------------------------------------------------------------
# Model: parameters + forward
# ---------------------------------------------------------------------------

def init_params(key, num_classes=1000):
    ks = iter(jax.random.split(key, 40))

    def conv_p(cin, cout, k):
        fan_in = cin * k * k
        w = jax.random.normal(next(ks), (cout, cin, k, k), jnp.float32) / jnp.sqrt(fan_in)
        b = 0.01 * jax.random.normal(next(ks), (cout,), jnp.float32)
        return w, b

    def bn_p(c):
        gamma = 1.0 + 0.1 * jax.random.normal(next(ks), (c,), jnp.float32)
        beta = 0.1 * jax.random.normal(next(ks), (c,), jnp.float32)
        mean = 0.1 * jax.random.normal(next(ks), (c,), jnp.float32)
        var = 0.9 + 0.1 * jnp.abs(jax.random.normal(next(ks), (c,), jnp.float32))
        return (gamma, beta, mean, var)

    p = {}
    p["conv1_w"], p["conv1_b"] = conv_p(3, 64, 7);    p["bn1"] = bn_p(64)
    p["conv2_w"], p["conv2_b"] = conv_p(64, 64, 3);   p["bn2"] = bn_p(64)
    p["conv3_w"], p["conv3_b"] = conv_p(64, 64, 3);   p["bn3"] = bn_p(64)
    p["conv4_w"], p["conv4_b"] = conv_p(64, 128, 3);  p["bn4"] = bn_p(128)
    p["conv5_w"], p["conv5_b"] = conv_p(128, 128, 3); p["bn5"] = bn_p(128)
    p["fc_w"] = jax.random.normal(next(ks), (128, num_classes), jnp.float32) / jnp.sqrt(128.0)
    p["fc_b"] = 0.01 * jax.random.normal(next(ks), (num_classes,), jnp.float32)
    return p


def forward(params, x_nchw):
    """x_nchw: [N, 3, H, W] float32 (PyTorch layout)."""
    # NCHW -> NHWC (channels lane-dense); bf16 activations end-to-end.
    x = jnp.transpose(x_nchw, (0, 2, 3, 1)).astype(jnp.bfloat16)
    # features
    x = conv_bn_relu(x, params["conv1_w"], params["conv1_b"], params["bn1"], stride=2, pad=3)
    x = maxpool2d(x, 3, 2, 1)
    x = conv_bn_relu(x, params["conv2_w"], params["conv2_b"], params["bn2"], stride=1, pad=1)
    x = conv_bn_relu(x, params["conv3_w"], params["conv3_b"], params["bn3"], stride=1, pad=1)
    x = conv_bn_relu(x, params["conv4_w"], params["conv4_b"], params["bn4"], stride=2, pad=1)
    x = conv_bn_relu(x, params["conv5_w"], params["conv5_b"], params["bn5"], stride=1, pad=1)
    # classifier: AdaptiveAvgPool2d((1,1)) + flatten + Dropout (eval identity) + Linear, fused.
    # TODO(synk): training-mode stochastic dropout mask not implemented.
    logits = avgpool_fc(x, params["fc_w"], params["fc_b"])
    return logits


if __name__ == "__main__":
    key = jax.random.PRNGKey(0)
    pkey, xkey = jax.random.split(key)
    num_classes = 1000
    params = init_params(pkey, num_classes=num_classes)

    # Small ImageNet-like input: batch=2, 3 channels, 32x32 spatial.
    x = jax.random.normal(xkey, (2, 3, 32, 32), jnp.float32)

    fwd = jax.jit(forward)
    out = fwd(params, x)
    out = jax.block_until_ready(out)
    assert out.shape == (2, num_classes), out.shape
    assert bool(jnp.all(jnp.isfinite(out)))
    print("KERNEL_OK")
</pallas_src>

<mosaic_0001>
module attributes {stable_mosaic.version = 11 : i64} {
  func.func @_fused_matmul_kernel(%arg0: i32, %arg1: i32, %arg2: memref<512x256xbf16, #tpu.memory_space<vmem>>, %arg3: memref<256x128xbf16, #tpu.memory_space<vmem>>, %arg4: memref<1x128xf32, #tpu.memory_space<vmem>>, %arg5: memref<1x128xf32, #tpu.memory_space<vmem>>, %arg6: memref<512x128xbf16, #tpu.memory_space<vmem>>) attributes {dimension_semantics = [#tpu.dimension_semantics<parallel>, #tpu.dimension_semantics<parallel>], iteration_bounds = array<i64: 1, 1>, scalar_prefetch = 0 : i64, scratch_operands = 0 : i64, tpu.core_type = #tpu.core_type<tc>, window_params = [{transform_indices = @transform_0, window_bounds = array<i64: 512, 256>}, {transform_indices = @transform_1, window_bounds = array<i64: 256, 128>}, {transform_indices = @transform_2, window_bounds = array<i64: 1, 128>}, {transform_indices = @transform_3, window_bounds = array<i64: 1, 128>}, {transform_indices = @transform_4, window_bounds = array<i64: 512, 128>}]} {
    %c0 = arith.constant 0 : index
    %c0_0 = arith.constant 0 : index
    %0 = vector.load %arg2[%c0, %c0_0] : memref<512x256xbf16, #tpu.memory_space<vmem>>, vector<512x256xbf16>
    %c0_1 = arith.constant 0 : index
    %c0_2 = arith.constant 0 : index
    %1 = vector.load %arg3[%c0_1, %c0_2] : memref<256x128xbf16, #tpu.memory_space<vmem>>, vector<256x128xbf16>
    %cst = arith.constant dense<0.000000e+00> : vector<512x128xf32>
    %2 = tpu.matmul %0, %1, %cst {dimension_numbers = #tpu.dot_dimension_numbers<[1], [0], [0], [1], [0, 0, 1, 1], [], []>} : vector<512x256xbf16>, vector<256x128xbf16>, vector<512x128xf32> -> vector<512x128xf32>
    %c0_3 = arith.constant 0 : index
    %c0_4 = arith.constant 0 : index
    %3 = vector.load %arg4[%c0_3, %c0_4] : memref<1x128xf32, #tpu.memory_space<vmem>>, vector<1x128xf32>
    %4 = vector.broadcast %3 : vector<1x128xf32> to vector<512x128xf32>
    %5 = arith.mulf %2, %4 : vector<512x128xf32>
    %c0_5 = arith.constant 0 : index
    %c0_6 = arith.constant 0 : index
    %6 = vector.load %arg5[%c0_5, %c0_6] : memref<1x128xf32, #tpu.memory_space<vmem>>, vector<1x128xf32>
    %7 = vector.broadcast %6 : vector<1x128xf32> to vector<512x128xf32>
    %8 = arith.addf %5, %7 : vector<512x128xf32>
    %cst_7 = arith.constant 0.000000e+00 : f32
    %9 = vector.broadcast %cst_7 : f32 to vector<512x128xf32>
    %10 = arith.maximumf %8, %9 : vector<512x128xf32>
    %11 = arith.truncf %10 : vector<512x128xf32> to vector<512x128xbf16>
    %c0_8 = arith.constant 0 : index
    %c0_9 = arith.constant 0 : index
    %12 = vector.load %arg6[%c0_8, %c0_9] : memref<512x128xbf16, #tpu.memory_space<vmem>>, vector<512x128xbf16>
    tpu.vector_store %arg6[%c0_8, %c0_9], %11 {strides = array<i32>} : memref<512x128xbf16, #tpu.memory_space<vmem>>, vector<512x128xbf16>,
    return
  }
  func.func @transform_0(%arg0: i32, %arg1: i32) -> (i32, i32) {
    %c0_i32 = arith.constant 0 : i32
    %c0_i32_0 = arith.constant 0 : i32
    return %arg0, %c0_i32 : i32, i32
  }
  func.func @transform_1(%arg0: i32, %arg1: i32) -> (i32, i32) {
    %c0_i32 = arith.constant 0 : i32
    %c0_i32_0 = arith.constant 0 : i32
    return %c0_i32, %arg1 : i32, i32
  }
  func.func @transform_2(%arg0: i32, %arg1: i32) -> (i32, i32) {
    %c0_i32 = arith.constant 0 : i32
    %c0_i32_0 = arith.constant 0 : i32
    return %c0_i32, %arg1 : i32, i32
  }
  func.func @transform_3(%arg0: i32, %arg1: i32) -> (i32, i32) {
    %c0_i32 = arith.constant 0 : i32
    %c0_i32_0 = arith.constant 0 : i32
    return %c0_i32, %arg1 : i32, i32
  }
  func.func @transform_4(%arg0: i32, %arg1: i32) -> (i32, i32) {
    %c0_i32 = arith.constant 0 : i32
    return %arg0, %arg1 : i32, i32
  }
}

module attributes {stable_mosaic.version = 11 : i64} {
  func.func @_maxpool_kernel(%arg0: i32, %arg1: memref<2x9x9x64xbf16, #tpu.memory_space<vmem>>, %arg2: memref<2x9x9x64xbf16, #tpu.memory_space<vmem>>, %arg3: memref<2x9x9x64xbf16, #tpu.memory_space<vmem>>, %arg4: memref<2x9x9x64xbf16, #tpu.memory_space<vmem>>, %arg5: memref<2x8x8x64xbf16, #tpu.memory_space<vmem>>) attributes {dimension_semantics = [#tpu.dimension_semantics<arbitrary>], iteration_bounds = array<i64: 1>, scalar_prefetch = 0 : i64, scratch_operands = 0 : i64, tpu.core_type = #tpu.core_type<tc>, window_params = [{pipeline_mode = #tpu.pipeline_mode<synchronous>, transform_indices = @transform_0, window_bounds = array<i64: 2, 9, 9, 64>}, {pipeline_mode = #tpu.pipeline_mode<synchronous>, transform_indices = @transform_1, window_bounds = array<i64: 2, 9, 9, 64>}, {pipeline_mode = #tpu.pipeline_mode<synchronous>, transform_indices = @transform_2, window_bounds = array<i64: 2, 9, 9, 64>}, {pipeline_mode = #tpu.pipeline_mode<synchronous>, transform_indices = @transform_3, window_bounds = array<i64: 2, 9, 9, 64>}, {pipeline_mode = #tpu.pipeline_mode<synchronous>, transform_indices = @transform_4, window_bounds = array<i64: 2, 8, 8, 64>}]} {
    %c0 = arith.constant 0 : index
    %c0_0 = arith.constant 0 : index
    %c0_1 = arith.constant 0 : index
    %c0_2 = arith.constant 0 : index
    %0 = vector.load %arg1[%c0, %c0_0, %c0_1, %c0_2] : memref<2x9x9x64xbf16, #tpu.memory_space<vmem>>, vector<2x8x8x64xbf16>
    %c0_3 = arith.constant 0 : index
    %c0_4 = arith.constant 0 : index
    %c0_5 = arith.constant 0 : index
    %c0_6 = arith.constant 0 : index
    %1 = vector.load %arg2[%c0_3, %c0_4, %c0_5, %c0_6] : memref<2x9x9x64xbf16, #tpu.memory_space<vmem>>, vector<2x8x8x64xbf16>
    %2 = arith.maximumf %0, %1 : vector<2x8x8x64xbf16>
    %c0_7 = arith.constant 0 : index
    %c0_8 = arith.constant 0 : index
    %c1 = arith.constant 1 : index
    %c0_9 = arith.constant 0 : index
    %3 = vector.load %arg1[%c0_7, %c0_8, %c1, %c0_9] : memref<2x9x9x64xbf16, #tpu.memory_space<vmem>>, vector<2x8x8x64xbf16>
    %4 = arith.maximumf %2, %3 : vector<2x8x8x64xbf16>
    %c0_10 = arith.constant 0 : index
    %c0_11 = arith.constant 0 : index
    %c0_12 = arith.constant 0 : index
    %c0_13 = arith.constant 0 : index
    %5 = vector.load %arg3[%c0_10, %c0_11, %c0_12, %c0_13] : memref<2x9x9x64xbf16, #tpu.memory_space<vmem>>, vector<2x8x8x64xbf16>
    %6 = arith.maximumf %4, %5 : vector<2x8x8x64xbf16>
    %c0_14 = arith.constant 0 : index
    %c0_15 = arith.constant 0 : index
    %c0_16 = arith.constant 0 : index
    %c0_17 = arith.constant 0 : index
    %7 = vector.load %arg4[%c0_14, %c0_15, %c0_16, %c0_17] : memref<2x9x9x64xbf16, #tpu.memory_space<vmem>>, vector<2x8x8x64xbf16>
    %8 = arith.maximumf %6, %7 : vector<2x8x8x64xbf16>
    %c0_18 = arith.constant 0 : index
    %c0_19 = arith.constant 0 : index
    %c1_20 = arith.constant 1 : index
    %c0_21 = arith.constant 0 : index
    %9 = vector.load %arg3[%c0_18, %c0_19, %c1_20, %c0_21] : memref<2x9x9x64xbf16, #tpu.memory_space<vmem>>, vector<2x8x8x64xbf16>
    %10 = arith.maximumf %8, %9 : vector<2x8x8x64xbf16>
    %c0_22 = arith.constant 0 : index
    %c1_23 = arith.constant 1 : index
    %c0_24 = arith.constant 0 : index
    %c0_25 = arith.constant 0 : index
    %11 = vector.load %arg1[%c0_22, %c1_23, %c0_24, %c0_25] : memref<2x9x9x64xbf16, #tpu.memory_space<vmem>>, vector<2x8x8x64xbf16>
    %12 = arith.maximumf %10, %11 : vector<2x8x8x64xbf16>
    %c0_26 = arith.constant 0 : index
    %c1_27 = arith.constant 1 : index
    %c0_28 = arith.constant 0 : index
    %c0_29 = arith.constant 0 : index
    %13 = vector.load %arg2[%c0_26, %c1_27, %c0_28, %c0_29] : memref<2x9x9x64xbf16, #tpu.memory_space<vmem>>, vector<2x8x8x64xbf16>
    %14 = arith.maximumf %12, %13 : vector<2x8x8x64xbf16>
    %c0_30 = arith.constant 0 : index
    %c1_31 = arith.constant 1 : index
    %c1_32 = arith.constant 1 : index
    %c0_33 = arith.constant 0 : index
    %15 = vector.load %arg1[%c0_30, %c1_31, %c1_32, %c0_33] : memref<2x9x9x64xbf16, #tpu.memory_space<vmem>>, vector<2x8x8x64xbf16>
    %16 = arith.maximumf %14, %15 : vector<2x8x8x64xbf16>
    %c0_34 = arith.constant 0 : index
    %c0_35 = arith.constant 0 : index
    %c0_36 = arith.constant 0 : index
    %c0_37 = arith.constant 0 : index
    %17 = vector.load %arg5[%c0_34, %c0_35, %c0_36, %c0_37] : memref<2x8x8x64xbf16, #tpu.memory_space<vmem>>, vector<2x8x8x64xbf16>
    tpu.vector_store %arg5[%c0_34, %c0_35, %c0_36, %c0_37], %16 {strides = array<i32>} : memref<2x8x8x64xbf16, #tpu.memory_space<vmem>>, vector<2x8x8x64xbf16>,
    return
  }
  func.func @transform_0(%arg0: i32) -> (i32, i32, i32, i32) {
    %c0_i32 = arith.constant 0 : i32
    %c0_i32_0 = arith.constant 0 : i32
    %c0_i32_1 = arith.constant 0 : i32
    %c0_i32_2 = arith.constant 0 : i32
    %c0_i32_3 = arith.constant 0 : i32
    return %c0_i32, %c0_i32_0, %c0_i32_1, %c0_i32_2 : i32, i32, i32, i32
  }
  func.func @transform_1(%arg0: i32) -> (i32, i32, i32, i32) {
    %c0_i32 = arith.constant 0 : i32
    %c0_i32_0 = arith.constant 0 : i32
    %c0_i32_1 = arith.constant 0 : i32
    %c0_i32_2 = arith.constant 0 : i32
    %c0_i32_3 = arith.constant 0 : i32
    return %c0_i32, %c0_i32_0, %c0_i32_1, %c0_i32_2 : i32, i32, i32, i32
  }
  func.func @transform_2(%arg0: i32) -> (i32, i32, i32, i32) {
    %c0_i32 = arith.constant 0 : i32
    %c0_i32_0 = arith.constant 0 : i32
    %c0_i32_1 = arith.constant 0 : i32
    %c0_i32_2 = arith.constant 0 : i32
    %c0_i32_3 = arith.constant 0 : i32
    return %c0_i32, %c0_i32_0, %c0_i32_1, %c0_i32_2 : i32, i32, i32, i32
  }
  func.func @transform_3(%arg0: i32) -> (i32, i32, i32, i32) {
    %c0_i32 = arith.constant 0 : i32
    %c0_i32_0 = arith.constant 0 : i32
    %c0_i32_1 = arith.constant 0 : i32
    %c0_i32_2 = arith.constant 0 : i32
    %c0_i32_3 = arith.constant 0 : i32
    return %c0_i32, %c0_i32_0, %c0_i32_1, %c0_i32_2 : i32, i32, i32, i32
  }
  func.func @transform_4(%arg0: i32) -> (i32, i32, i32, i32) {
    %c0_i32 = arith.constant 0 : i32
    %c0_i32_0 = arith.constant 0 : i32
    %c0_i32_1 = arith.constant 0 : i32
    %c0_i32_2 = arith.constant 0 : i32
    %c0_i32_3 = arith.constant 0 : i32
    return %c0_i32, %c0_i32_0, %c0_i32_1, %c0_i32_2 : i32, i32, i32, i32
  }
}

module attributes {stable_mosaic.version = 11 : i64} {
  func.func @_fused_matmul_kernel(%arg0: i32, %arg1: i32, %arg2: memref<128x640xbf16, #tpu.memory_space<vmem>>, %arg3: memref<640x128xbf16, #tpu.memory_space<vmem>>, %arg4: memref<1x128xf32, #tpu.memory_space<vmem>>, %arg5: memref<1x128xf32, #tpu.memory_space<vmem>>, %arg6: memref<128x128xbf16, #tpu.memory_space<vmem>>) attributes {dimension_semantics = [#tpu.dimension_semantics<parallel>, #tpu.dimension_semantics<parallel>], iteration_bounds = array<i64: 1, 1>, scalar_prefetch = 0 : i64, scratch_operands = 0 : i64, tpu.core_type = #tpu.core_type<tc>, window_params = [{transform_indices = @transform_0, window_bounds = array<i64: 128, 640>}, {transform_indices = @transform_1, window_bounds = array<i64: 640, 128>}, {transform_indices = @transform_2, window_bounds = array<i64: 1, 128>}, {transform_indices = @transform_3, window_bounds = array<i64: 1, 128>}, {transform_indices = @transform_4, window_bounds = array<i64: 128, 128>}]} {
    %c0 = arith.constant 0 : index
    %c0_0 = arith.constant 0 : index
    %0 = vector.load %arg2[%c0, %c0_0] : memref<128x640xbf16, #tpu.memory_space<vmem>>, vector<128x640xbf16>
    %c0_1 = arith.constant 0 : index
    %c0_2 = arith.constant 0 : index
    %1 = vector.load %arg3[%c0_1, %c0_2] : memref<640x128xbf16, #tpu.memory_space<vmem>>, vector<640x128xbf16>
    %cst = arith.constant dense<0.000000e+00> : vector<128x128xf32>
    %2 = tpu.matmul %0, %1, %cst {dimension_numbers = #tpu.dot_dimension_numbers<[1], [0], [0], [1], [0, 0, 1, 1], [], []>} : vector<128x640xbf16>, vector<640x128xbf16>, vector<128x128xf32> -> vector<128x128xf32>
    %c0_3 = arith.constant 0 : index
    %c0_4 = arith.constant 0 : index
    %3 = vector.load %arg4[%c0_3, %c0_4] : memref<1x128xf32, #tpu.memory_space<vmem>>, vector<1x128xf32>
    %4 = vector.broadcast %3 : vector<1x128xf32> to vector<128x128xf32>
    %5 = arith.mulf %2, %4 : vector<128x128xf32>
    %c0_5 = arith.constant 0 : index
    %c0_6 = arith.constant 0 : index
    %6 = vector.load %arg5[%c0_5, %c0_6] : memref<1x128xf32, #tpu.memory_space<vmem>>, vector<1x128xf32>
    %7 = vector.broadcast %6 : vector<1x128xf32> to vector<128x128xf32>
    %8 = arith.addf %5, %7 : vector<128x128xf32>
    %cst_7 = arith.constant 0.000000e+00 : f32
    %9 = vector.broadcast %cst_7 : f32 to vector<128x128xf32>
    %10 = arith.maximumf %8, %9 : vector<128x128xf32>
    %11 = arith.truncf %10 : vector<128x128xf32> to vector<128x128xbf16>
    %c0_8 = arith.constant 0 : index
    %c0_9 = arith.constant 0 : index
    %12 = vector.load %arg6[%c0_8, %c0_9] : memref<128x128xbf16, #tpu.memory_space<vmem>>, vector<128x128xbf16>
    tpu.vector_store %arg6[%c0_8, %c0_9], %11 {strides = array<i32>} : memref<128x128xbf16, #tpu.memory_space<vmem>>, vector<128x128xbf16>,
    return
  }
  func.func @transform_0(%arg0: i32, %arg1: i32) -> (i32, i32) {
    %c0_i32 = arith.constant 0 : i32
    %c0_i32_0 = arith.constant 0 : i32
    return %arg0, %c0_i32 : i32, i32
  }
  func.func @transform_1(%arg0: i32, %arg1: i32) -> (i32, i32) {
    %c0_i32 = arith.constant 0 : i32
    %c0_i32_0 = arith.constant 0 : i32
    return %c0_i32, %arg1 : i32, i32
  }
  func.func @transform_2(%arg0: i32, %arg1: i32) -> (i32, i32) {
    %c0_i32 = arith.constant 0 : i32
    %c0_i32_0 = arith.constant 0 : i32
    return %c0_i32, %arg1 : i32, i32
  }
  func.func @transform_3(%arg0: i32, %arg1: i32) -> (i32, i32) {
    %c0_i32 = arith.constant 0 : i32
    %c0_i32_0 = arith.constant 0 : i32
    return %c0_i32, %arg1 : i32, i32
  }
  func.func @transform_4(%arg0: i32, %arg1: i32) -> (i32, i32) {
    %c0_i32 = arith.constant 0 : i32
    return %arg0, %arg1 : i32, i32
  }
}

module attributes {stable_mosaic.version = 11 : i64} {
  func.func @_fused_matmul_kernel(%arg0: i32, %arg1: i32, %arg2: memref<32x640xbf16, #tpu.memory_space<vmem>>, %arg3: memref<640x128xbf16, #tpu.memory_space<vmem>>, %arg4: memref<1x128xf32, #tpu.memory_space<vmem>>, %arg5: memref<1x128xf32, #tpu.memory_space<vmem>>, %arg6: memref<32x128xbf16, #tpu.memory_space<vmem>>) attributes {dimension_semantics = [#tpu.dimension_semantics<parallel>, #tpu.dimension_semantics<parallel>], iteration_bounds = array<i64: 1, 1>, scalar_prefetch = 0 : i64, scratch_operands = 0 : i64, tpu.core_type = #tpu.core_type<tc>, window_params = [{transform_indices = @transform_0, window_bounds = array<i64: 32, 640>}, {transform_indices = @transform_1, window_bounds = array<i64: 640, 128>}, {transform_indices = @transform_2, window_bounds = array<i64: 1, 128>}, {transform_indices = @transform_3, window_bounds = array<i64: 1, 128>}, {transform_indices = @transform_4, window_bounds = array<i64: 32, 128>}]} {
    %c0 = arith.constant 0 : index
    %c0_0 = arith.constant 0 : index
    %0 = vector.load %arg2[%c0, %c0_0] : memref<32x640xbf16, #tpu.memory_space<vmem>>, vector<32x640xbf16>
    %c0_1 = arith.constant 0 : index
    %c0_2 = arith.constant 0 : index
    %1 = vector.load %arg3[%c0_1, %c0_2] : memref<640x128xbf16, #tpu.memory_space<vmem>>, vector<640x128xbf16>
    %cst = arith.constant dense<0.000000e+00> : vector<32x128xf32>
    %2 = tpu.matmul %0, %1, %cst {dimension_numbers = #tpu.dot_dimension_numbers<[1], [0], [0], [1], [0, 0, 1, 1], [], []>} : vector<32x640xbf16>, vector<640x128xbf16>, vector<32x128xf32> -> vector<32x128xf32>
    %c0_3 = arith.constant 0 : index
    %c0_4 = arith.constant 0 : index
    %3 = vector.load %arg4[%c0_3, %c0_4] : memref<1x128xf32, #tpu.memory_space<vmem>>, vector<1x128xf32>
    %4 = vector.broadcast %3 : vector<1x128xf32> to vector<32x128xf32>
    %5 = arith.mulf %2, %4 : vector<32x128xf32>
    %c0_5 = arith.constant 0 : index
    %c0_6 = arith.constant 0 : index
    %6 = vector.load %arg5[%c0_5, %c0_6] : memref<1x128xf32, #tpu.memory_space<vmem>>, vector<1x128xf32>
    %7 = vector.broadcast %6 : vector<1x128xf32> to vector<32x128xf32>
    %8 = arith.addf %5, %7 : vector<32x128xf32>
    %cst_7 = arith.constant 0.000000e+00 : f32
    %9 = vector.broadcast %cst_7 : f32 to vector<32x128xf32>
    %10 = arith.maximumf %8, %9 : vector<32x128xf32>
    %11 = arith.truncf %10 : vector<32x128xf32> to vector<32x128xbf16>
    %c0_8 = arith.constant 0 : index
    %c0_9 = arith.constant 0 : index
    %12 = vector.load %arg6[%c0_8, %c0_9] : memref<32x128xbf16, #tpu.memory_space<vmem>>, vector<32x128xbf16>
    tpu.vector_store %arg6[%c0_8, %c0_9], %11 {strides = array<i32>} : memref<32x128xbf16, #tpu.memory_space<vmem>>, vector<32x128xbf16>,
    return
  }
  func.func @transform_0(%arg0: i32, %arg1: i32) -> (i32, i32) {
    %c0_i32 = arith.constant 0 : i32
    %c0_i32_0 = arith.constant 0 : i32
    return %arg0, %c0_i32 : i32, i32
  }
  func.func @transform_1(%arg0: i32, %arg1: i32) -> (i32, i32) {
    %c0_i32 = arith.constant 0 : i32
    %c0_i32_0 = arith.constant 0 : i32
    return %c0_i32, %arg1 : i32, i32
  }
  func.func @transform_2(%arg0: i32, %arg1: i32) -> (i32, i32) {
    %c0_i32 = arith.constant 0 : i32
    %c0_i32_0 = arith.constant 0 : i32
    return %c0_i32, %arg1 : i32, i32
  }
  func.func @transform_3(%arg0: i32, %arg1: i32) -> (i32, i32) {
    %c0_i32 = arith.constant 0 : i32
    %c0_i32_0 = arith.constant 0 : i32
    return %c0_i32, %arg1 : i32, i32
  }
  func.func @transform_4(%arg0: i32, %arg1: i32) -> (i32, i32) {
    %c0_i32 = arith.constant 0 : i32
    return %arg0, %arg1 : i32, i32
  }
}

module attributes {stable_mosaic.version = 11 : i64} {
  func.func @_fused_matmul_kernel(%arg0: i32, %arg1: i32, %arg2: memref<32x1152xbf16, #tpu.memory_space<vmem>>, %arg3: memref<1152x128xbf16, #tpu.memory_space<vmem>>, %arg4: memref<1x128xf32, #tpu.memory_space<vmem>>, %arg5: memref<1x128xf32, #tpu.memory_space<vmem>>, %arg6: memref<32x128xbf16, #tpu.memory_space<vmem>>) attributes {dimension_semantics = [#tpu.dimension_semantics<parallel>, #tpu.dimension_semantics<parallel>], iteration_bounds = array<i64: 1, 1>, scalar_prefetch = 0 : i64, scratch_operands = 0 : i64, tpu.core_type = #tpu.core_type<tc>, window_params = [{transform_indices = @transform_0, window_bounds = array<i64: 32, 1152>}, {transform_indices = @transform_1, window_bounds = array<i64: 1152, 128>}, {transform_indices = @transform_2, window_bounds = array<i64: 1, 128>}, {transform_indices = @transform_3, window_bounds = array<i64: 1, 128>}, {transform_indices = @transform_4, window_bounds = array<i64: 32, 128>}]} {
    %c0 = arith.constant 0 : index
    %c0_0 = arith.constant 0 : index
    %0 = vector.load %arg2[%c0, %c0_0] : memref<32x1152xbf16, #tpu.memory_space<vmem>>, vector<32x1152xbf16>
    %c0_1 = arith.constant 0 : index
    %c0_2 = arith.constant 0 : index
    %1 = vector.load %arg3[%c0_1, %c0_2] : memref<1152x128xbf16, #tpu.memory_space<vmem>>, vector<1152x128xbf16>
    %cst = arith.constant dense<0.000000e+00> : vector<32x128xf32>
    %2 = tpu.matmul %0, %1, %cst {dimension_numbers = #tpu.dot_dimension_numbers<[1], [0], [0], [1], [0, 0, 1, 1], [], []>} : vector<32x1152xbf16>, vector<1152x128xbf16>, vector<32x128xf32> -> vector<32x128xf32>
    %c0_3 = arith.constant 0 : index
    %c0_4 = arith.constant 0 : index
    %3 = vector.load %arg4[%c0_3, %c0_4] : memref<1x128xf32, #tpu.memory_space<vmem>>, vector<1x128xf32>
    %4 = vector.broadcast %3 : vector<1x128xf32> to vector<32x128xf32>
    %5 = arith.mulf %2, %4 : vector<32x128xf32>
    %c0_5 = arith.constant 0 : index
    %c0_6 = arith.constant 0 : index
    %6 = vector.load %arg5[%c0_5, %c0_6] : memref<1x128xf32, #tpu.memory_space<vmem>>, vector<1x128xf32>
    %7 = vector.broadcast %6 : vector<1x128xf32> to vector<32x128xf32>
    %8 = arith.addf %5, %7 : vector<32x128xf32>
    %cst_7 = arith.constant 0.000000e+00 : f32
    %9 = vector.broadcast %cst_7 : f32 to vector<32x128xf32>
    %10 = arith.maximumf %8, %9 : vector<32x128xf32>
    %11 = arith.truncf %10 : vector<32x128xf32> to vector<32x128xbf16>
    %c0_8 = arith.constant 0 : index
    %c0_9 = arith.constant 0 : index
    %12 = vector.load %arg6[%c0_8, %c0_9] : memref<32x128xbf16, #tpu.memory_space<vmem>>, vector<32x128xbf16>
    tpu.vector_store %arg6[%c0_8, %c0_9], %11 {strides = array<i32>} : memref<32x128xbf16, #tpu.memory_space<vmem>>, vector<32x128xbf16>,
    return
  }
  func.func @transform_0(%arg0: i32, %arg1: i32) -> (i32, i32) {
    %c0_i32 = arith.constant 0 : i32
    %c0_i32_0 = arith.constant 0 : i32
    return %arg0, %c0_i32 : i32, i32
  }
  func.func @transform_1(%arg0: i32, %arg1: i32) -> (i32, i32) {
    %c0_i32 = arith.constant 0 : i32
    %c0_i32_0 = arith.constant 0 : i32
    return %c0_i32, %arg1 : i32, i32
  }
  func.func @transform_2(%arg0: i32, %arg1: i32) -> (i32, i32) {
    %c0_i32 = arith.constant 0 : i32
    %c0_i32_0 = arith.constant 0 : i32
    return %c0_i32, %arg1 : i32, i32
  }
  func.func @transform_3(%arg0: i32, %arg1: i32) -> (i32, i32) {
    %c0_i32 = arith.constant 0 : i32
    %c0_i32_0 = arith.constant 0 : i32
    return %c0_i32, %arg1 : i32, i32
  }
  func.func @transform_4(%arg0: i32, %arg1: i32) -> (i32, i32) {
    %c0_i32 = arith.constant 0 : i32
    return %arg0, %arg1 : i32, i32
  }
}

module attributes {stable_mosaic.version = 11 : i64} {
  func.func @_avgpool_fc_kernel(%arg0: i32, %arg1: memref<8x16x128xbf16, #tpu.memory_space<vmem>>, %arg2: memref<128x1024xbf16, #tpu.memory_space<vmem>>, %arg3: memref<1x1024xf32, #tpu.memory_space<vmem>>, %arg4: memref<8x1024xf32, #tpu.memory_space<vmem>>) attributes {dimension_semantics = [#tpu.dimension_semantics<arbitrary>], iteration_bounds = array<i64: 1>, scalar_prefetch = 0 : i64, scratch_operands = 0 : i64, tpu.core_type = #tpu.core_type<tc>, window_params = [{pipeline_mode = #tpu.pipeline_mode<synchronous>, transform_indices = @transform_0, window_bounds = array<i64: 8, 16, 128>}, {pipeline_mode = #tpu.pipeline_mode<synchronous>, transform_indices = @transform_1, window_bounds = array<i64: 128, 1024>}, {pipeline_mode = #tpu.pipeline_mode<synchronous>, transform_indices = @transform_2, window_bounds = array<i64: 1, 1024>}, {pipeline_mode = #tpu.pipeline_mode<synchronous>, transform_indices = @transform_3, window_bounds = array<i64: 8, 1024>}]} {
    %c0 = arith.constant 0 : index
    %c0_0 = arith.constant 0 : index
    %c0_1 = arith.constant 0 : index
    %0 = vector.load %arg1[%c0, %c0_0, %c0_1] : memref<8x16x128xbf16, #tpu.memory_space<vmem>>, vector<8x16x128xbf16>
    %1 = arith.extf %0 : vector<8x16x128xbf16> to vector<8x16x128xf32>
    %cst = arith.constant dense<0.000000e+00> : vector<8x128xf32>
    %2 = vector.multi_reduction <add>, %1, %cst [1] : vector<8x16x128xf32> to vector<8x128xf32>
    %cst_2 = arith.constant 6.250000e-02 : f32
    %3 = vector.broadcast %cst_2 : f32 to vector<8x128xf32>
    %4 = arith.mulf %2, %3 : vector<8x128xf32>
    %5 = arith.truncf %4 : vector<8x128xf32> to vector<8x128xbf16>
    %c0_3 = arith.constant 0 : index
    %c0_4 = arith.constant 0 : index
    %6 = vector.load %arg2[%c0_3, %c0_4] : memref<128x1024xbf16, #tpu.memory_space<vmem>>, vector<128x1024xbf16>
    %cst_5 = arith.constant dense<0.000000e+00> : vector<8x1024xf32>
    %7 = tpu.matmul %5, %6, %cst_5 {dimension_numbers = #tpu.dot_dimension_numbers<[1], [0], [0], [1], [0, 0, 1, 1], [], []>} : vector<8x128xbf16>, vector<128x1024xbf16>, vector<8x1024xf32> -> vector<8x1024xf32>
    %c0_6 = arith.constant 0 : index
    %c0_7 = arith.constant 0 : index
    %8 = vector.load %arg3[%c0_6, %c0_7] : memref<1x1024xf32, #tpu.memory_space<vmem>>, vector<1x1024xf32>
    %9 = vector.broadcast %8 : vector<1x1024xf32> to vector<8x1024xf32>
    %10 = arith.addf %7, %9 : vector<8x1024xf32>
    %c0_8 = arith.constant 0 : index
    %c0_9 = arith.constant 0 : index
    %11 = vector.load %arg4[%c0_8, %c0_9] : memref<8x1024xf32, #tpu.memory_space<vmem>>, vector<8x1024xf32>
    tpu.vector_store %arg4[%c0_8, %c0_9], %10 {strides = array<i32>} : memref<8x1024xf32, #tpu.memory_space<vmem>>, vector<8x1024xf32>,
    return
  }
  func.func @transform_0(%arg0: i32) -> (i32, i32, i32) {
    %c0_i32 = arith.constant 0 : i32
    %c0_i32_0 = arith.constant 0 : i32
    %c0_i32_1 = arith.constant 0 : i32
    %c0_i32_2 = arith.constant 0 : i32
    return %c0_i32, %c0_i32_0, %c0_i32_1 : i32, i32, i32
  }
  func.func @transform_1(%arg0: i32) -> (i32, i32) {
    %c0_i32 = arith.constant 0 : i32
    %c0_i32_0 = arith.constant 0 : i32
    %c0_i32_1 = arith.constant 0 : i32
    return %c0_i32, %c0_i32_0 : i32, i32
  }
  func.func @transform_2(%arg0: i32) -> (i32, i32) {
    %c0_i32 = arith.constant 0 : i32
    %c0_i32_0 = arith.constant 0 : i32
    %c0_i32_1 = arith.constant 0 : i32
    return %c0_i32, %c0_i32_0 : i32, i32
  }
  func.func @transform_3(%arg0: i32) -> (i32, i32) {
    %c0_i32 = arith.constant 0 : i32
    %c0_i32_0 = arith.constant 0 : i32
    %c0_i32_1 = arith.constant 0 : i32
    return %c0_i32, %c0_i32_0 : i32, i32
  }
}

</mosaic_0001>

<llo_original>
// kernel: forward.7
$region0: #{forward.7}
  #allocation0 [shape = 'u32[]', space=smem, size = 0x4, offset = 0x4, fixed_abs, tag = 'smem constant byte address 0x4 - core index']
  #allocation1 [shape = 'u32[144,128]{1,0:T(1,128)}', space=vmem, size = 0x12000, scoped, tag = 'internal scratch']
  %s0 = inlined_call_operand.vmem [shape: bf16[512,256], index: 0, kind: input, shape index: {}]
  %s1 = inlined_call_operand.vmem [shape: bf16[256,128], index: 1, kind: input, shape index: {}]
  %s2 = inlined_call_operand.vmem [shape: f32[1,128], index: 2, kind: input, shape index: {}]
  %s3 = inlined_call_operand.vmem [shape: f32[1,128], index: 3, kind: input, shape index: {}]
  %s4 = inlined_call_operand.vmem [shape: bf16[512,128], index: 4, kind: output, shape index: {}]
  %s5 = sld [smem:[#allocation0]]
  $region26: #{forward.7} parent=0
    _
  %s7 = ssub.s32 1, %s5
  %s8 = scalar_select 0, %s7, %s5
  // Predicated region
  $region2: #{forward.7} parent=0 // pred_check
    _
  $region3: #{forward.7} parent=0 // pred_check_branch
    %10 = sbr.rel (0) target = $region5
  $region4: #{forward.7} parent=0 // pred_region
    _
  $region5: #{forward.7} parent=0 // pred_fallthru
    _
  // Predicated region
  $region6: #{forward.7} parent=0 // pred_check
    _
  $region7: #{forward.7} parent=0 // pred_check_branch
    %12 = sbr.rel (0) target = $region9
  $region8: #{forward.7} parent=0 // pred_region
    _
  $region9: #{forward.7} parent=0 // pred_fallthru
    _
  // Predicated region
  $region10: #{forward.7} parent=0 // pred_check
    _
  $region11: #{forward.7} parent=0 // pred_check_branch
    %14 = sbr.rel (0) target = $region13
  $region12: #{forward.7} parent=0 // pred_region
    _
  $region13: #{forward.7} parent=0 // pred_fallthru
    _
  // Predicated region
  $region14: #{forward.7} parent=0 // pred_check
    _
  $region15: #{forward.7} parent=0 // pred_check_branch
    %16 = sbr.rel (0) target = $region17
  $region16: #{forward.7} parent=0 // pred_region
    _
  $region17: #{forward.7} parent=0 // pred_fallthru
    _
  %v18 = vld [vmem:[%s0] sm:$0xff]
  %v19 = vld [vmem:[%s0 + $0x8] sm:$0xff]
  %v20 = vld [vmem:[%s0 + $0x10] sm:$0xff]
  %v21 = vld [vmem:[%s0 + $0x18] sm:$0xff]
  %v22 = vld [vmem:[%s0 + $0x20] sm:$0xff]
  %v23 = vld [vmem:[%s0 + $0x28] sm:$0xff]
  %v24 = vld [vmem:[%s0 + $0x30] sm:$0xff]
  %v25 = vld [vmem:[%s0 + $0x38] sm:$0xff]
  %v26 = vld [vmem:[%s0 + $0x40] sm:$0xff]
  %v27 = vld [vmem:[%s0 + $0x48] sm:$0xff]
  %v28 = vld [vmem:[%s0 + $0x50] sm:$0xff]
  %v29 = vld [vmem:[%s0 + $0x58] sm:$0xff]
  %v30 = vld [vmem:[%s0 + $0x60] sm:$0xff]
  %v31 = vld [vmem:[%s0 + $0x68] sm:$0xff]
  %v32 = vld [vmem:[%s0 + $0x70] sm:$0xff]
  %v33 = vld [vmem:[%s0 + $0x78] sm:$0xff]
  %v34 = vld [vmem:[%s0 + $0x80] sm:$0xff]
  %v35 = vld [vmem:[%s0 + $0x88] sm:$0xff]
  %v36 = vld [vmem:[%s0 + $0x90] sm:$0xff]
  %v37 = vld [vmem:[%s0 + $0x98] sm:$0xff]
  %v38 = vld [vmem:[%s0 + $0xa0] sm:$0xff]
  %v39 = vld [vmem:[%s0 + $0xa8] sm:$0xff]
  %v40 = vld [vmem:[%s0 + $0xb0] sm:$0xff]
  %v41 = vld [vmem:[%s0 + $0xb8] sm:$0xff]
  %v42 = vld [vmem:[%s0 + $0xc0] sm:$0xff]
  %v43 = vld [vmem:[%s0 + $0xc8] sm:$0xff]
  %v44 = vld [vmem:[%s0 + $0xd0] sm:$0xff]
  %v45 = vld [vmem:[%s0 + $0xd8] sm:$0xff]
  %v46 = vld [vmem:[%s0 + $0xe0] sm:$0xff]
  %v47 = vld [vmem:[%s0 + $0xe8] sm:$0xff]
  %v48 = vld [vmem:[%s0 + $0xf0] sm:$0xff]
  %v49 = vld [vmem:[%s0 + $0xf8] sm:$0xff]
  %v50 = vld [vmem:[%s0 + $0x100] sm:$0xff]
  %v51 = vld [vmem:[%s0 + $0x108] sm:$0xff]
  %v52 = vld [vmem:[%s0 + $0x110] sm:$0xff]
  %v53 = vld [vmem:[%s0 + $0x118] sm:$0xff]
  %v54 = vld [vmem:[%s0 + $0x120] sm:$0xff]
  %v55 = vld [vmem:[%s0 + $0x128] sm:$0xff]
  %v56 = vld [vmem:[%s0 + $0x130] sm:$0xff]
  %v57 = vld [vmem:[%s0 + $0x138] sm:$0xff]
  %v58 = vld [vmem:[%s0 + $0x140] sm:$0xff]
  %v59 = vld [vmem:[%s0 + $0x148] sm:$0xff]
  %v60 = vld [vmem:[%s0 + $0x150] sm:$0xff]
  %v61 = vld [vmem:[%s0 + $0x158] sm:$0xff]
  %v62 = vld [vmem:[%s0 + $0x160] sm:$0xff]
  %v63 = vld [vmem:[%s0 + $0x168] sm:$0xff]
  %v64 = vld [vmem:[%s0 + $0x170] sm:$0xff]
  %v65 = vld [vmem:[%s0 + $0x178] sm:$0xff]
  %v66 = vld [vmem:[%s0 + $0x180] sm:$0xff]
  %v67 = vld [vmem:[%s0 + $0x188] sm:$0xff]
  %v68 = vld [vmem:[%s0 + $0x190] sm:$0xff]
  %v69 = vld [vmem:[%s0 + $0x198] sm:$0xff]
  %v70 = vld [vmem:[%s0 + $0x1a0] sm:$0xff]
  %v71 = vld [vmem:[%s0 + $0x1a8] sm:$0xff]
  %v72 = vld [vmem:[%s0 + $0x1b0] sm:$0xff]
  %v73 = vld [vmem:[%s0 + $0x1b8] sm:$0xff]
  %v74 = vld [vmem:[%s0 + $0x1c0] sm:$0xff]
  %v75 = vld [vmem:[%s0 + $0x1c8] sm:$0xff]
  %v76 = vld [vmem:[%s0 + $0x1d0] sm:$0xff]
  %v77 = vld [vmem:[%s0 + $0x1d8] sm:$0xff]
  %v78 = vld [vmem:[%s0 + $0x1e0] sm:$0xff]
  %v79 = vld [vmem:[%s0 + $0x1e8] sm:$0xff]
  %v80 = vld [vmem:[%s0 + $0x1f0] sm:$0xff]
  %v81 = vld [vmem:[%s0 + $0x1f8] sm:$0xff]
  %v82 = vld [vmem:[%s1] sm:$0xf]
  %v83 = vld [vmem:[%s1 + $0x4] sm:$0xf]
  %v84 = vld [vmem:[%s1 + $0x8] sm:$0xf]
  %v85 = vld [vmem:[%s1 + $0xc] sm:$0xf]
  %v86 = vld [vmem:[%s1 + $0x10] sm:$0xf]
  %v87 = vld [vmem:[%s1 + $0x14] sm:$0xf]
  %v88 = vld [vmem:[%s1 + $0x18] sm:$0xf]
  %v89 = vld [vmem:[%s1 + $0x1c] sm:$0xf]
  %v90 = vld [vmem:[%s1 + $0x20] sm:$0xf]
  %v91 = vld [vmem:[%s1 + $0x24] sm:$0xf]
  %v92 = vld [vmem:[%s1 + $0x28] sm:$0xf]
  %v93 = vld [vmem:[%s1 + $0x2c] sm:$0xf]
  %v94 = vld [vmem:[%s1 + $0x30] sm:$0xf]
  %v95 = vld [vmem:[%s1 + $0x34] sm:$0xf]
  %v96 = vld [vmem:[%s1 + $0x38] sm:$0xf]
  %v97 = vld [vmem:[%s1 + $0x3c] sm:$0xf]
  %v98 = vld [vmem:[%s1 + $0x40] sm:$0xf]
  %v99 = vld [vmem:[%s1 + $0x44] sm:$0xf]
  %v100 = vld [vmem:[%s1 + $0x48] sm:$0xf]
  %v101 = vld [vmem:[%s1 + $0x4c] sm:$0xf]
  %v102 = vld [vmem:[%s1 + $0x50] sm:$0xf]
  %v103 = vld [vmem:[%s1 + $0x54] sm:$0xf]
  %v104 = vld [vmem:[%s1 + $0x58] sm:$0xf]
  %v105 = vld [vmem:[%s1 + $0x5c] sm:$0xf]
  %v106 = vld [vmem:[%s1 + $0x60] sm:$0xf]
  %v107 = vld [vmem:[%s1 + $0x64] sm:$0xf]
  %v108 = vld [vmem:[%s1 + $0x68] sm:$0xf]
  %v109 = vld [vmem:[%s1 + $0x6c] sm:$0xf]
  %v110 = vld [vmem:[%s1 + $0x70] sm:$0xf]
  %v111 = vld [vmem:[%s1 + $0x74] sm:$0xf]
  %v112 = vld [vmem:[%s1 + $0x78] sm:$0xf]
  %v113 = vld [vmem:[%s1 + $0x7c] sm:$0xf]
  %v178 = vunpack.c.l.b16 %v18
  %v179 = vunpack.c.h.b16 %v18
  %v180 = vunpack.c.l.b16 %v19
  %v181 = vunpack.c.h.b16 %v19
  %v182 = vunpack.c.l.b16 %v20
  %v183 = vunpack.c.h.b16 %v20
  %v184 = vunpack.c.l.b16 %v21
  %v185 = vunpack.c.h.b16 %v21
  %v186 = vunpack.c.l.b16 %v22
  %v187 = vunpack.c.h.b16 %v22
  %v188 = vunpack.c.l.b16 %v23
  %v189 = vunpack.c.h.b16 %v23
  %v190 = vunpack.c.l.b16 %v24
  %v191 = vunpack.c.h.b16 %v24
  %v192 = vunpack.c.l.b16 %v25
  %v193 = vunpack.c.h.b16 %v25
  %v194 = vunpack.c.l.b16 %v26
  %v195 = vunpack.c.h.b16 %v26
  %v196 = vunpack.c.l.b16 %v27
  %v197 = vunpack.c.h.b16 %v27
  %v198 = vunpack.c.l.b16 %v28
  %v199 = vunpack.c.h.b16 %v28
  %v200 = vunpack.c.l.b16 %v29
  %v201 = vunpack.c.h.b16 %v29
  %v202 = vunpack.c.l.b16 %v30
  %v203 = vunpack.c.h.b16 %v30
  %v204 = vunpack.c.l.b16 %v31
  %v205 = vunpack.c.h.b16 %v31
  %v206 = vunpack.c.l.b16 %v32
  %v207 = vunpack.c.h.b16 %v32
  %v208 = vunpack.c.l.b16 %v33
  %v209 = vunpack.c.h.b16 %v33
  %v210 = vunpack.c.l.b16 %v34
  %v211 = vunpack.c.h.b16 %v34
  %v212 = vunpack.c.l.b16 %v35
  %v213 = vunpack.c.h.b16 %v35
  %v214 = vunpack.c.l.b16 %v36
  %v215 = vunpack.c.h.b16 %v36
  %v216 = vunpack.c.l.b16 %v37
  %v217 = vunpack.c.h.b16 %v37
  %v218 = vunpack.c.l.b16 %v38
  %v219 = vunpack.c.h.b16 %v38
  %v220 = vunpack.c.l.b16 %v39
  %v221 = vunpack.c.h.b16 %v39
  %v222 = vunpack.c.l.b16 %v40
  %v223 = vunpack.c.h.b16 %v40
  %v224 = vunpack.c.l.b16 %v41
  %v225 = vunpack.c.h.b16 %v41
  %v226 = vunpack.c.l.b16 %v42
  %v227 = vunpack.c.h.b16 %v42
  %v228 = vunpack.c.l.b16 %v43
  %v229 = vunpack.c.h.b16 %v43
  %v230 = vunpack.c.l.b16 %v44
  %v231 = vunpack.c.h.b16 %v44
  %v232 = vunpack.c.l.b16 %v45
  %v233 = vunpack.c.h.b16 %v45
  %v234 = vunpack.c.l.b16 %v46
  %v235 = vunpack.c.h.b16 %v46
  %v236 = vunpack.c.l.b16 %v47
  %v237 = vunpack.c.h.b16 %v47
  %v238 = vunpack.c.l.b16 %v48
  %v239 = vunpack.c.h.b16 %v48
  %v240 = vunpack.c.l.b16 %v49
  %v241 = vunpack.c.h.b16 %v49
  %v242 = vunpack.c.l.b16 %v50
  %v243 = vunpack.c.h.b16 %v50
  %v244 = vunpack.c.l.b16 %v51
  %v245 = vunpack.c.h.b16 %v51
  %v246 = vunpack.c.l.b16 %v52
  %v247 = vunpack.c.h.b16 %v52
  %v248 = vunpack.c.l.b16 %v53
  %v249 = vunpack.c.h.b16 %v53
  %v250 = vunpack.c.l.b16 %v54
  %v251 = vunpack.c.h.b16 %v54
  %v252 = vunpack.c.l.b16 %v55
  %v253 = vunpack.c.h.b16 %v55
  %v254 = vunpack.c.l.b16 %v56
  %v255 = vunpack.c.h.b16 %v56
  %v256 = vunpack.c.l.b16 %v57
  %v257 = vunpack.c.h.b16 %v57
  %v258 = vunpack.c.l.b16 %v58
  %v259 = vunpack.c.h.b16 %v58
  %v260 = vunpack.c.l.b16 %v59
  %v261 = vunpack.c.h.b16 %v59
  %v262 = vunpack.c.l.b16 %v60
  %v263 = vunpack.c.h.b16 %v60
  %v264 = vunpack.c.l.b16 %v61
  %v265 = vunpack.c.h.b16 %v61
  %v266 = vunpack.c.l.b16 %v62
  %v267 = vunpack.c.h.b16 %v62
  %v268 = vunpack.c.l.b16 %v63
  %v269 = vunpack.c.h.b16 %v63
  %v270 = vunpack.c.l.b16 %v64
  %v271 = vunpack.c.h.b16 %v64
  %v272 = vunpack.c.l.b16 %v65
  %v273 = vunpack.c.h.b16 %v65
  %v274 = vunpack.c.l.b16 %v66
  %v275 = vunpack.c.h.b16 %v66
  %v276 = vunpack.c.l.b16 %v67
  %v277 = vunpack.c.h.b16 %v67
  %v278 = vunpack.c.l.b16 %v68
  %v279 = vunpack.c.h.b16 %v68
  %v280 = vunpack.c.l.b16 %v69
  %v281 = vunpack.c.h.b16 %v69
  %v282 = vunpack.c.l.b16 %v70
  %v283 = vunpack.c.h.b16 %v70
  %v284 = vunpack.c.l.b16 %v71
  %v285 = vunpack.c.h.b16 %v71
  %v286 = vunpack.c.l.b16 %v72
  %v287 = vunpack.c.h.b16 %v72
  %v288 = vunpack.c.l.b16 %v73
  %v289 = vunpack.c.h.b16 %v73
  %v290 = vunpack.c.l.b16 %v74
  %v291 = vunpack.c.h.b16 %v74
  %v292 = vunpack.c.l.b16 %v75
  %v293 = vunpack.c.h.b16 %v75
  %v294 = vunpack.c.l.b16 %v76
  %v295 = vunpack.c.h.b16 %v76
  %v296 = vunpack.c.l.b16 %v77
  %v297 = vunpack.c.h.b16 %v77
  %v298 = vunpack.c.l.b16 %v78
  %v299 = vunpack.c.h.b16 %v78
  %v300 = vunpack.c.l.b16 %v79
  %v301 = vunpack.c.h.b16 %v79
  %v302 = vunpack.c.l.b16 %v80
  %v303 = vunpack.c.h.b16 %v80
  %v304 = vunpack.c.l.b16 %v81
  %v305 = vunpack.c.h.b16 %v81
  %v306 = vpack.c.b16 %v180, %v178
  %v307 = vpack.c.b16 %v181, %v179
  %v308 = vpack.c.b16 %v184, %v182
  %v309 = vpack.c.b16 %v185, %v183
  %v310 = vpack.c.b16 %v188, %v186
  %v311 = vpack.c.b16 %v189, %v187
  %v312 = vpack.c.b16 %v192, %v190
  %v313 = vpack.c.b16 %v193, %v191
  %v314 = vpack.c.b16 %v196, %v194
  %v315 = vpack.c.b16 %v197, %v195
  %v316 = vpack.c.b16 %v200, %v198
  %v317 = vpack.c.b16 %v201, %v199
  %v318 = vpack.c.b16 %v204, %v202
  %v319 = vpack.c.b16 %v205, %v203
  %v320 = vpack.c.b16 %v208, %v206
  %v321 = vpack.c.b16 %v209, %v207
  %v322 = vpack.c.b16 %v212, %v210
  %v323 = vpack.c.b16 %v213, %v211
  %v324 = vpack.c.b16 %v216, %v214
  %v325 = vpack.c.b16 %v217, %v215
  %v326 = vpack.c.b16 %v220, %v218
  %v327 = vpack.c.b16 %v221, %v219
  %v328 = vpack.c.b16 %v224, %v222
  %v329 = vpack.c.b16 %v225, %v223
  %v330 = vpack.c.b16 %v228, %v226
  %v331 = vpack.c.b16 %v229, %v227
  %v332 = vpack.c.b16 %v232, %v230
  %v333 = vpack.c.b16 %v233, %v231
  %v334 = vpack.c.b16 %v236, %v234
  %v335 = vpack.c.b16 %v237, %v235
  %v336 = vpack.c.b16 %v240, %v238
  %v337 = vpack.c.b16 %v241, %v239
  %v338 = vpack.c.b16 %v244, %v242
  %v339 = vpack.c.b16 %v245, %v243
  %v340 = vpack.c.b16 %v248, %v246
  %v341 = vpack.c.b16 %v249, %v247
  %v342 = vpack.c.b16 %v252, %v250
  %v343 = vpack.c.b16 %v253, %v251
  %v344 = vpack.c.b16 %v256, %v254
  %v345 = vpack.c.b16 %v257, %v255
  %v346 = vpack.c.b16 %v260, %v258
  %v347 = vpack.c.b16 %v261, %v259
  %v348 = vpack.c.b16 %v264, %v262
  %v349 = vpack.c.b16 %v265, %v263
  %v350 = vpack.c.b16 %v268, %v266
  %v351 = vpack.c.b16 %v269, %v267
  %v352 = vpack.c.b16 %v272, %v270
  %v353 = vpack.c.b16 %v273, %v271
  %v354 = vpack.c.b16 %v276, %v274
  %v355 = vpack.c.b16 %v277, %v275
  %v356 = vpack.c.b16 %v280, %v278
  %v357 = vpack.c.b16 %v281, %v279
  %v358 = vpack.c.b16 %v284, %v282
  %v359 = vpack.c.b16 %v285, %v283
  %v360 = vpack.c.b16 %v288, %v286
  %v361 = vpack.c.b16 %v289, %v287
  %v362 = vpack.c.b16 %v292, %v290
  %v363 = vpack.c.b16 %v293, %v291
  %v364 = vpack.c.b16 %v296, %v294
  %v365 = vpack.c.b16 %v297, %v295
  %v366 = vpack.c.b16 %v300, %v298
  %v367 = vpack.c.b16 %v301, %v299
  %v368 = vpack.c.b16 %v304, %v302
  %v369 = vpack.c.b16 %v305, %v303
  %v466 = vunpack.c.l.b16 %v82
  %v467 = vunpack.c.l.b16 %v83
  %v468 = vunpack.c.l.b16 %v84
  %v469 = vunpack.c.l.b16 %v85
  %v470 = vunpack.c.l.b16 %v86
  %v471 = vunpack.c.l.b16 %v87
  %v472 = vunpack.c.l.b16 %v88
  %v473 = vunpack.c.l.b16 %v89
  %v474 = vunpack.c.l.b16 %v90
  %v475 = vunpack.c.l.b16 %v91
  %v476 = vunpack.c.l.b16 %v92
  %v477 = vunpack.c.l.b16 %v93
  %v478 = vunpack.c.l.b16 %v94
  %v479 = vunpack.c.l.b16 %v95
  %v480 = vunpack.c.l.b16 %v96
  %v481 = vunpack.c.l.b16 %v97
  %v482 = vunpack.c.l.b16 %v98
  %v483 = vunpack.c.l.b16 %v99
  %v484 = vunpack.c.l.b16 %v100
  %v485 = vunpack.c.l.b16 %v101
  %v486 = vunpack.c.l.b16 %v102
  %v487 = vunpack.c.l.b16 %v103
  %v488 = vunpack.c.l.b16 %v104
  %v489 = vunpack.c.l.b16 %v105
  %v490 = vunpack.c.l.b16 %v106
  %v491 = vunpack.c.l.b16 %v107
  %v492 = vunpack.c.l.b16 %v108
  %v493 = vunpack.c.l.b16 %v109
  %v494 = vunpack.c.l.b16 %v110
  %v495 = vunpack.c.l.b16 %v111
  %v496 = vunpack.c.l.b16 %v112
  %v497 = vunpack.c.l.b16 %v113
  %v498 = vpack.c.b16 %v467, %v466
  %v499 = vpack.c.b16 %v469, %v468
  %v500 = vpack.c.b16 %v471, %v470
  %v501 = vpack.c.b16 %v473, %v472
  %v502 = vpack.c.b16 %v475, %v474
  %v503 = vpack.c.b16 %v477, %v476
  %v504 = vpack.c.b16 %v479, %v478
  %v505 = vpack.c.b16 %v481, %v480
  %v506 = vpack.c.b16 %v483, %v482
  %v507 = vpack.c.b16 %v485, %v484
  %v508 = vpack.c.b16 %v487, %v486
  %v509 = vpack.c.b16 %v489, %v488
  %v510 = vpack.c.b16 %v491, %v490
  %v511 = vpack.c.b16 %v493, %v492
  %v512 = vpack.c.b16 %v495, %v494
  %v513 = vpack.c.b16 %v497, %v496
  %530 = vmatprep.subr.bf16.mxu0 0
  %531 = vmatpush1.bf16.msra.mxu0 %v505
  %532 = vmatprep.subr.bf16.mxu0 0
  %533 = vmatpush1.bf16.msra.mxu0 %v504
  %534 = vmatprep.subr.bf16.mxu0 0
  %535 = vmatpush1.bf16.msra.mxu0 %v503
  %536 = vmatprep.subr.bf16.mxu0 0
  %537 = vmatpush1.bf16.msra.mxu0 %v502
  %538 = vmatprep.subr.bf16.mxu0 0
  %539 = vmatpush1.bf16.msra.mxu0 %v501
  %540 = vmatprep.subr.bf16.mxu0 0
  %541 = vmatpush1.bf16.msra.mxu0 %v500
  %542 = vmatprep.subr.bf16.mxu0 0
  %543 = vmatpush1.bf16.msra.mxu0 %v499
  %544 = vmatprep.subr.bf16.mxu0 0
  %545 = vmatpush1.bf16.msra.mxu0 %v498
  %546 = vmatprep.subr.bf16.mxu0 0
  %547 = vmatpush2.bf16.msra.mxu0 %v513
  %548 = vmatprep.subr.bf16.mxu0 0
  %549 = vmatpush2.bf16.msra.mxu0 %v512
  %550 = vmatprep.subr.bf16.mxu0 0
  %551 = vmatpush2.bf16.msra.mxu0 %v511
  %552 = vmatprep.subr.bf16.mxu0 0
  %553 = vmatpush2.bf16.msra.mxu0 %v510
  %554 = vmatprep.subr.bf16.mxu0 0
  %555 = vmatpush2.bf16.msra.mxu0 %v509
  %556 = vmatprep.subr.bf16.mxu0 0
  %557 = vmatpush2.bf16.msra.mxu0 %v508
  %558 = vmatprep.subr.bf16.mxu0 0
  %559 = vmatpush2.bf16.msra.mxu0 %v507
  %560 = vmatprep.subr.bf16.mxu0 0
  %561 = vmatpush2.bf16.msra.mxu0 %v506
  %562 = vmatprep.mubr.bf16.mxu0 %v307
  %563 = vmatmul.mubr.bf16.gmra.mxu0 %v306
  %v564 = vpop.f32.mrf.mxu0
  %v565 = vadd.f32 0.0, %v564
  %v566 = vpop.f32.mrf.mxu0
  %v567 = vpop.f32.mrf.mxu0
  %v568 = vadd.f32 0.0, %v567
  %v569 = vpop.f32.mrf.mxu0
  %570 = vmatprep.mubr.bf16.mxu0 %v309
  %571 = vmatmul.mubr.bf16.gmra.mxu0 %v308
  %v572 = vpop.f32.mrf.mxu0
  %v573 = vadd.f32 0.0, %v572
  %v574 = vpop.f32.mrf.mxu0
  %v575 = vpop.f32.mrf.mxu0
  %v576 = vadd.f32 0.0, %v575
  %v577 = vpop.f32.mrf.mxu0
  %578 = vmatprep.mubr.bf16.mxu0 %v311
  %579 = vmatmul.mubr.bf16.gmra.mxu0 %v310
  %v580 = vpop.f32.mrf.mxu0
  %v581 = vadd.f32 0.0, %v580
  %v582 = vpop.f32.mrf.mxu0
  %v583 = vpop.f32.mrf.mxu0
  %v584 = vadd.f32 0.0, %v583
  %v585 = vpop.f32.mrf.mxu0
  %586 = vmatprep.mubr.bf16.mxu0 %v313
  %587 = vmatmul.mubr.bf16.gmra.mxu0 %v312
  %v588 = vpop.f32.mrf.mxu0
  %v589 = vadd.f32 0.0, %v588
  %v590 = vpop.f32.mrf.mxu0
  %v591 = vpop.f32.mrf.mxu0
  %v592 = vadd.f32 0.0, %v591
  %v593 = vpop.f32.mrf.mxu0
  %594 = vmatprep.mubr.bf16.mxu0 %v315
  %595 = vmatmul.mubr.bf16.gmra.mxu0 %v314
  %v596 = vpop.f32.mrf.mxu0
  %v597 = vadd.f32 0.0, %v596
  %v598 = vpop.f32.mrf.mxu0
  %v599 = vpop.f32.mrf.mxu0
  %v600 = vadd.f32 0.0, %v599
  %v601 = vpop.f32.mrf.mxu0
  %602 = vmatprep.mubr.bf16.mxu0 %v317
  %603 = vmatmul.mubr.bf16.gmra.mxu0 %v316
  %v604 = vpop.f32.mrf.mxu0
  %v605 = vadd.f32 0.0, %v604
  %v606 = vpop.f32.mrf.mxu0
  %v607 = vpop.f32.mrf.mxu0
  %v608 = vadd.f32 0.0, %v607
  %v609 = vpop.f32.mrf.mxu0
  %610 = vmatprep.mubr.bf16.mxu0 %v319
  %611 = vmatmul.mubr.bf16.gmra.mxu0 %v318
  %v612 = vpop.f32.mrf.mxu0
  %v613 = vadd.f32 0.0, %v612
  %v614 = vpop.f32.mrf.mxu0
  %v615 = vpop.f32.mrf.mxu0
  %v616 = vadd.f32 0.0, %v615
  %v617 = vpop.f32.mrf.mxu0
  %618 = vmatprep.mubr.bf16.mxu0 %v321
  %619 = vmatmul.mubr.bf16.gmra.mxu0 %v320
  %v620 = vpop.f32.mrf.mxu0
  %v621 = vadd.f32 0.0, %v620
  %v622 = vpop.f32.mrf.mxu0
  %v623 = vpop.f32.mrf.mxu0
  %v624 = vadd.f32 0.0, %v623
  %v625 = vpop.f32.mrf.mxu0
  %626 = vmatprep.mubr.bf16.mxu0 %v323
  %627 = vmatmul.mubr.bf16.gmra.mxu0 %v322
  %v628 = vpop.f32.mrf.mxu0
  %v629 = vadd.f32 0.0, %v628
  %v630 = vpop.f32.mrf.mxu0
  %v631 = vpop.f32.mrf.mxu0
  %v632 = vadd.f32 0.0, %v631
  %v633 = vpop.f32.mrf.mxu0
  %634 = vmatprep.mubr.bf16.mxu0 %v325
  %635 = vmatmul.mubr.bf16.gmra.mxu0 %v324
  %v636 = vpop.f32.mrf.mxu0
  %v637 = vadd.f32 0.0, %v636
  %v638 = vpop.f32.mrf.mxu0
  %v639 = vpop.f32.mrf.mxu0
  %v640 = vadd.f32 0.0, %v639
  %v641 = vpop.f32.mrf.mxu0
  %642 = vmatprep.mubr.bf16.mxu0 %v327
  %643 = vmatmul.mubr.bf16.gmra.mxu0 %v326
  %v644 = vpop.f32.mrf.mxu0
  %v645 = vadd.f32 0.0, %v644
  %v646 = vpop.f32.mrf.mxu0
  %v647 = vpop.f32.mrf.mxu0
  %v648 = vadd.f32 0.0, %v647
  %v649 = vpop.f32.mrf.mxu0
  %650 = vmatprep.mubr.bf16.mxu0 %v329
  %651 = vmatmul.mubr.bf16.gmra.mxu0 %v328
  %v652 = vpop.f32.mrf.mxu0
  %v653 = vadd.f32 0.0, %v652
  %v654 = vpop.f32.mrf.mxu0
  %v655 = vpop.f32.mrf.mxu0
  %v656 = vadd.f32 0.0, %v655
  %v657 = vpop.f32.mrf.mxu0
  %658 = vmatprep.mubr.bf16.mxu0 %v331
  %659 = vmatmul.mubr.bf16.gmra.mxu0 %v330
  %v660 = vpop.f32.mrf.mxu0
  %v661 = vadd.f32 0.0, %v660
  %v662 = vpop.f32.mrf.mxu0
  %v663 = vpop.f32.mrf.mxu0
  %v664 = vadd.f32 0.0, %v663
  %v665 = vpop.f32.mrf.mxu0
  %666 = vmatprep.mubr.bf16.mxu0 %v333
  %667 = vmatmul.mubr.bf16.gmra.mxu0 %v332
  %v668 = vpop.f32.mrf.mxu0
  %v669 = vadd.f32 0.0, %v668
  %v670 = vpop.f32.mrf.mxu0
  %v671 = vpop.f32.mrf.mxu0
  %v672 = vadd.f32 0.0, %v671
  %v673 = vpop.f32.mrf.mxu0
  %674 = vmatprep.mubr.bf16.mxu0 %v335
  %675 = vmatmul.mubr.bf16.gmra.mxu0 %v334
  %v676 = vpop.f32.mrf.mxu0
  %v677 = vadd.f32 0.0, %v676
  %v678 = vpop.f32.mrf.mxu0
  %v679 = vpop.f32.mrf.mxu0
  %v680 = vadd.f32 0.0, %v679
  %v681 = vpop.f32.mrf.mxu0
  %682 = vmatprep.mubr.bf16.mxu0 %v337
  %683 = vmatmul.mubr.bf16.gmra.mxu0 %v336
  %v684 = vpop.f32.mrf.mxu0
  %v685 = vadd.f32 0.0, %v684
  %v686 = vpop.f32.mrf.mxu0
  %v687 = vpop.f32.mrf.mxu0
  %v688 = vadd.f32 0.0, %v687
  %v689 = vpop.f32.mrf.mxu0
  %690 = vmatprep.mubr.bf16.mxu0 %v339
  %691 = vmatmul.mubr.bf16.gmra.mxu0 %v338
  %v692 = vpop.f32.mrf.mxu0
  %v693 = vadd.f32 0.0, %v692
  %v694 = vpop.f32.mrf.mxu0
  %v695 = vpop.f32.mrf.mxu0
  %v696 = vadd.f32 0.0, %v695
  %v697 = vpop.f32.mrf.mxu0
  %698 = vmatprep.mubr.bf16.mxu0 %v341
  %699 = vmatmul.mubr.bf16.gmra.mxu0 %v340
  %v700 = vpop.f32.mrf.mxu0
  %v701 = vadd.f32 0.0, %v700
  %v702 = vpop.f32.mrf.mxu0
  %v703 = vpop.f32.mrf.mxu0
  %v704 = vadd.f32 0.0, %v703
  %v705 = vpop.f32.mrf.mxu0
  %706 = vmatprep.mubr.bf16.mxu0 %v343
  %707 = vmatmul.mubr.bf16.gmra.mxu0 %v342
  %v708 = vpop.f32.mrf.mxu0
  %v709 = vadd.f32 0.0, %v708
  %v710 = vpop.f32.mrf.mxu0
  %v711 = vpop.f32.mrf.mxu0
  %v712 = vadd.f32 0.0, %v711
  %v713 = vpop.f32.mrf.mxu0
  %714 = vmatprep.mubr.bf16.mxu0 %v345
  %715 = vmatmul.mubr.bf16.gmra.mxu0 %v344
  %v716 = vpop.f32.mrf.mxu0
  %v717 = vadd.f32 0.0, %v716
  %v718 = vpop.f32.mrf.mxu0
  %v719 = vpop.f32.mrf.mxu0
  %v720 = vadd.f32 0.0, %v719
  %v721 = vpop.f32.mrf.mxu0
  %722 = vmatprep.mubr.bf16.mxu0 %v347
  %723 = vmatmul.mubr.bf16.gmra.mxu0 %v346
  %v724 = vpop.f32.mrf.mxu0
  %v725 = vadd.f32 0.0, %v724
  %v726 = vpop.f32.mrf.mxu0
  %v727 = vpop.f32.mrf.mxu0
  %v728 = vadd.f32 0.0, %v727
  %v729 = vpop.f32.mrf.mxu0
  %730 = vmatprep.mubr.bf16.mxu0 %v349
  %731 = vmatmul.mubr.bf16.gmra.mxu0 %v348
  %v732 = vpop.f32.mrf.mxu0
  %v733 = vadd.f32 0.0, %v732
  %v734 = vpop.f32.mrf.mxu0
  %v735 = vpop.f32.mrf.mxu0
  %v736 = vadd.f32 0.0, %v735
  %v737 = vpop.f32.mrf.mxu0
  %738 = vmatprep.mubr.bf16.mxu0 %v351
  %739 = vmatmul.mubr.bf16.gmra.mxu0 %v350
  %v740 = vpop.f32.mrf.mxu0
  %v741 = vadd.f32 0.0, %v740
  %v742 = vpop.f32.mrf.mxu0
  %v743 = vpop.f32.mrf.mxu0
  %v744 = vadd.f32 0.0, %v743
  %v745 = vpop.f32.mrf.mxu0
  %746 = vmatprep.mubr.bf16.mxu0 %v353
  %747 = vmatmul.mubr.bf16.gmra.mxu0 %v352
  %v748 = vpop.f32.mrf.mxu0
  %v749 = vadd.f32 0.0, %v748
  %v750 = vpop.f32.mrf.mxu0
  %v751 = vpop.f32.mrf.mxu0
  %v752 = vadd.f32 0.0, %v751
  %v753 = vpop.f32.mrf.mxu0
  %754 = vmatprep.mubr.bf16.mxu0 %v355
  %755 = vmatmul.mubr.bf16.gmra.mxu0 %v354
  %v756 = vpop.f32.mrf.mxu0
  %v757 = vadd.f32 0.0, %v756
  %v758 = vpop.f32.mrf.mxu0
  %v759 = vpop.f32.mrf.mxu0
  %v760 = vadd.f32 0.0, %v759
  %v761 = vpop.f32.mrf.mxu0
  %762 = vmatprep.mubr.bf16.mxu0 %v357
  %763 = vmatmul.mubr.bf16.gmra.mxu0 %v356
  %v764 = vpop.f32.mrf.mxu0
  %v765 = vadd.f32 0.0, %v764
  %v766 = vpop.f32.mrf.mxu0
  %v767 = vpop.f32.mrf.mxu0
  %v768 = vadd.f32 0.0, %v767
  %v769 = vpop.f32.mrf.mxu0
  %770 = vmatprep.mubr.bf16.mxu0 %v359
  %771 = vmatmul.mubr.bf16.gmra.mxu0 %v358
  %v772 = vpop.f32.mrf.mxu0
  %v773 = vadd.f32 0.0, %v772
  %v774 = vpop.f32.mrf.mxu0
  %v775 = vpop.f32.mrf.mxu0
  %v776 = vadd.f32 0.0, %v775
  %v777 = vpop.f32.mrf.mxu0
  %778 = vmatprep.mubr.bf16.mxu0 %v361
  %779 = vmatmul.mubr.bf16.gmra.mxu0 %v360
  %v780 = vpop.f32.mrf.mxu0
  %v781 = vadd.f32 0.0, %v780
  %v782 = vpop.f32.mrf.mxu0
  %v783 = vpop.f32.mrf.mxu0
  %v784 = vadd.f32 0.0, %v783
  %v785 = vpop.f32.mrf.mxu0
  %786 = vmatprep.mubr.bf16.mxu0 %v363
  %787 = vmatmul.mubr.bf16.gmra.mxu0 %v362
  %v788 = vpop.f32.mrf.mxu0
  %v789 = vadd.f32 0.0, %v788
  %v790 = vpop.f32.mrf.mxu0
  %v791 = vpop.f32.mrf.mxu0
  %v792 = vadd.f32 0.0, %v791
  %v793 = vpop.f32.mrf.mxu0
  %794 = vmatprep.mubr.bf16.mxu0 %v365
  %795 = vmatmul.mubr.bf16.gmra.mxu0 %v364
  %v796 = vpop.f32.mrf.mxu0
  %v797 = vadd.f32 0.0, %v796
  %v798 = vpop.f32.mrf.mxu0
  %v799 = vpop.f32.mrf.mxu0
  %v800 = vadd.f32 0.0, %v799
  %v801 = vpop.f32.mrf.mxu0
  %802 = vmatprep.mubr.bf16.mxu0 %v367
  %803 = vmatmul.mubr.bf16.gmra.mxu0 %v366
  %v804 = vpop.f32.mrf.mxu0
  %v805 = vadd.f32 0.0, %v804
  %v806 = vpop.f32.mrf.mxu0
  %v807 = vpop.f32.mrf.mxu0
  %v808 = vadd.f32 0.0, %v807
  %v809 = vpop.f32.mrf.mxu0
  %810 = vmatprep.mubr.bf16.mxu0 %v369
  %811 = vmatmul.mubr.bf16.gmra.mxu0 %v368
  %v812 = vpop.f32.mrf.mxu0
  %v813 = vadd.f32 0.0, %v812
  %v814 = vpop.f32.mrf.mxu0
  %v815 = vpop.f32.mrf.mxu0
  %v816 = vadd.f32 0.0, %v815
  %v817 = vpop.f32.mrf.mxu0
  %818 = vdwg.mxu0
  %v819 = vld [vmem:[%s2] sm:$0x1]
  %v821 = vlaneseq
  %v822 = vshrl.u32 %v821, 7
  %v823 = vsub.s32 0, %v822
  %v824 = vrot.slane %v819, %v823
  %v826 = vmul.f32 %v565, %v824
  %v827 = vmul.f32 %v568, %v824
  %v828 = vmul.f32 %v573, %v824
  %v829 = vmul.f32 %v576, %v824
  %v830 = vmul.f32 %v581, %v824
  %v831 = vmul.f32 %v584, %v824
  %v832 = vmul.f32 %v589, %v824
  %v833 = vmul.f32 %v592, %v824
  %v834 = vmul.f32 %v597, %v824
  %v835 = vmul.f32 %v600, %v824
  %v836 = vmul.f32 %v605, %v824
  %v837 = vmul.f32 %v608, %v824
  %v838 = vmul.f32 %v613, %v824
  %v839 = vmul.f32 %v616, %v824
  %v840 = vmul.f32 %v621, %v824
  %v841 = vmul.f32 %v624, %v824
  %v842 = vmul.f32 %v629, %v824
  %v843 = vmul.f32 %v632, %v824
  %v844 = vmul.f32 %v637, %v824
  %v845 = vmul.f32 %v640, %v824
  %v846 = vmul.f32 %v645, %v824
  %v847 = vmul.f32 %v648, %v824
  %v848 = vmul.f32 %v653, %v824
  %v849 = vmul.f32 %v656, %v824
  %v850 = vmul.f32 %v661, %v824
  %v851 = vmul.f32 %v664, %v824
  %v852 = vmul.f32 %v669, %v824
  %v853 = vmul.f32 %v672, %v824
  %v854 = vmul.f32 %v677, %v824
  %v855 = vmul.f32 %v680, %v824
  %v856 = vmul.f32 %v685, %v824
  %v857 = vmul.f32 %v688, %v824
  %v858 = vmul.f32 %v693, %v824
  %v859 = vmul.f32 %v696, %v824
  %v860 = vmul.f32 %v701, %v824
  %v861 = vmul.f32 %v704, %v824
  %v862 = vmul.f32 %v709, %v824
  %v863 = vmul.f32 %v712, %v824
  %v864 = vmul.f32 %v717, %v824
  %v865 = vmul.f32 %v720, %v824
  %v866 = vmul.f32 %v725, %v824
  %v867 = vmul.f32 %v728, %v824
  %v868 = vmul.f32 %v733, %v824
  %v869 = vmul.f32 %v736, %v824
  %v870 = vmul.f32 %v741, %v824
  %v871 = vmul.f32 %v744, %v824
  %v872 = vmul.f32 %v749, %v824
  %v873 = vmul.f32 %v752, %v824
  %v874 = vmul.f32 %v757, %v824
  %v875 = vmul.f32 %v760, %v824
  %v876 = vmul.f32 %v765, %v824
  %v877 = vmul.f32 %v768, %v824
  %v878 = vmul.f32 %v773, %v824
  %v879 = vmul.f32 %v776, %v824
  %v880 = vmul.f32 %v781, %v824
  %v881 = vmul.f32 %v784, %v824
  %v882 = vmul.f32 %v789, %v824
  %v883 = vmul.f32 %v792, %v824
  %v884 = vmul.f32 %v797, %v824
  %v885 = vmul.f32 %v800, %v824
  %v886 = vmul.f32 %v805, %v824
  %v887 = vmul.f32 %v808, %v824
  %v888 = vmul.f32 %v813, %v824
  %v889 = vmul.f32 %v816, %v824
  %v890 = vld [vmem:[%s3] sm:$0x1]
  %v892 = vlaneseq
  %v893 = vshrl.u32 %v892, 7
  %v894 = vsub.s32 0, %v893
  %v895 = vrot.slane %v890, %v894
  %v897 = vadd.f32 %v826, %v895
  %v898 = vadd.f32 %v827, %v895
  %v899 = vadd.f32 %v828, %v895
  %v900 = vadd.f32 %v829, %v895
  %v901 = vadd.f32 %v830, %v895
  %v902 = vadd.f32 %v831, %v895
  %v903 = vadd.f32 %v832, %v895
  %v904 = vadd.f32 %v833, %v895
  %v905 = vadd.f32 %v834, %v895
  %v906 = vadd.f32 %v835, %v895
  %v907 = vadd.f32 %v836, %v895
  %v908 = vadd.f32 %v837, %v895
  %v909 = vadd.f32 %v838, %v895
  %v910 = vadd.f32 %v839, %v895
  %v911 = vadd.f32 %v840, %v895
  %v912 = vadd.f32 %v841, %v895
  %v913 = vadd.f32 %v842, %v895
  %v914 = vadd.f32 %v843, %v895
  %v915 = vadd.f32 %v844, %v895
  %v916 = vadd.f32 %v845, %v895
  %v917 = vadd.f32 %v846, %v895
  %v918 = vadd.f32 %v847, %v895
  %v919 = vadd.f32 %v848, %v895
  %v920 = vadd.f32 %v849, %v895
  %v921 = vadd.f32 %v850, %v895
  %v922 = vadd.f32 %v851, %v895
  %v923 = vadd.f32 %v852, %v895
  %v924 = vadd.f32 %v853, %v895
  %v925 = vadd.f32 %v854, %v895
  %v926 = vadd.f32 %v855, %v895
  %v927 = vadd.f32 %v856, %v895
  %v928 = vadd.f32 %v857, %v895
  %v929 = vadd.f32 %v858, %v895
  %v930 = vadd.f32 %v859, %v895
  %v931 = vadd.f32 %v860, %v895
  %v932 = vadd.f32 %v861, %v895
  %v933 = vadd.f32 %v862, %v895
  %v934 = vadd.f32 %v863, %v895
  %v935 = vadd.f32 %v864, %v895
  %v936 = vadd.f32 %v865, %v895
  %v937 = vadd.f32 %v866, %v895
  %v938 = vadd.f32 %v867, %v895
  %v939 = vadd.f32 %v868, %v895
  %v940 = vadd.f32 %v869, %v895
  %v941 = vadd.f32 %v870, %v895
  %v942 = vadd.f32 %v871, %v895
  %v943 = vadd.f32 %v872, %v895
  %v944 = vadd.f32 %v873, %v895
  %v945 = vadd.f32 %v874, %v895
  %v946 = vadd.f32 %v875, %v895
  %v947 = vadd.f32 %v876, %v895
  %v948 = vadd.f32 %v877, %v895
  %v949 = vadd.f32 %v878, %v895
  %v950 = vadd.f32 %v879, %v895
  %v951 = vadd.f32 %v880, %v895
  %v952 = vadd.f32 %v881, %v895
  %v953 = vadd.f32 %v882, %v895
  %v954 = vadd.f32 %v883, %v895
  %v955 = vadd.f32 %v884, %v895
  %v956 = vadd.f32 %v885, %v895
  %v957 = vadd.f32 %v886, %v895
  %v958 = vadd.f32 %v887, %v895
  %v959 = vadd.f32 %v888, %v895
  %v960 = vadd.f32 %v889, %v895
  %v961 = vmax.f32 %v897, 0.0
  %v962 = vmax.f32 %v898, 0.0
  %v963 = vmax.f32 %v899, 0.0
  %v964 = vmax.f32 %v900, 0.0
  %v965 = vmax.f32 %v901, 0.0
  %v966 = vmax.f32 %v902, 0.0
  %v967 = vmax.f32 %v903, 0.0
  %v968 = vmax.f32 %v904, 0.0
  %v969 = vmax.f32 %v905, 0.0
  %v970 = vmax.f32 %v906, 0.0
  %v971 = vmax.f32 %v907, 0.0
  %v972 = vmax.f32 %v908, 0.0
  %v973 = vmax.f32 %v909, 0.0
  %v974 = vmax.f32 %v910, 0.0
  %v975 = vmax.f32 %v911, 0.0
  %v976 = vmax.f32 %v912, 0.0
  %v977 = vmax.f32 %v913, 0.0
  %v978 = vmax.f32 %v914, 0.0
  %v979 = vmax.f32 %v915, 0.0
  %v980 = vmax.f32 %v916, 0.0
  %v981 = vmax.f32 %v917, 0.0
  %v982 = vmax.f32 %v918, 0.0
  %v983 = vmax.f32 %v919, 0.0
  %v984 = vmax.f32 %v920, 0.0
  %v985 = vmax.f32 %v921, 0.0
  %v986 = vmax.f32 %v922, 0.0
  %v987 = vmax.f32 %v923, 0.0
  %v988 = vmax.f32 %v924, 0.0
  %v989 = vmax.f32 %v925, 0.0
  %v990 = vmax.f32 %v926, 0.0
  %v991 = vmax.f32 %v927, 0.0
  %v992 = vmax.f32 %v928, 0.0
  %v993 = vmax.f32 %v929, 0.0
  %v994 = vmax.f32 %v930, 0.0
  %v995 = vmax.f32 %v931, 0.0
  %v996 = vmax.f32 %v932, 0.0
  %v997 = vmax.f32 %v933, 0.0
  %v998 = vmax.f32 %v934, 0.0
  %v999 = vmax.f32 %v935, 0.0
  %v1000 = vmax.f32 %v936, 0.0
  %v1001 = vmax.f32 %v937, 0.0
  %v1002 = vmax.f32 %v938, 0.0
  %v1003 = vmax.f32 %v939, 0.0
  %v1004 = vmax.f32 %v940, 0.0
  %v1005 = vmax.f32 %v941, 0.0
  %v1006 = vmax.f32 %v942, 0.0
  %v1007 = vmax.f32 %v943, 0.0
  %v1008 = vmax.f32 %v944, 0.0
  %v1009 = vmax.f32 %v945, 0.0
  %v1010 = vmax.f32 %v946, 0.0
  %v1011 = vmax.f32 %v947, 0.0
  %v1012 = vmax.f32 %v948, 0.0
  %v1013 = vmax.f32 %v949, 0.0
  %v1014 = vmax.f32 %v950, 0.0
  %v1015 = vmax.f32 %v951, 0.0
  %v1016 = vmax.f32 %v952, 0.0
  %v1017 = vmax.f32 %v953, 0.0
  %v1018 = vmax.f32 %v954, 0.0
  %v1019 = vmax.f32 %v955, 0.0
  %v1020 = vmax.f32 %v956, 0.0
  %v1021 = vmax.f32 %v957, 0.0
  %v1022 = vmax.f32 %v958, 0.0
  %v1023 = vmax.f32 %v959, 0.0
  %v1024 = vmax.f32 %v960, 0.0
  %v1025 = vpack.c.bf16 %v962, %v961
  %v1026 = vpack.c.bf16 %v964, %v963
  %v1027 = vpack.c.bf16 %v966, %v965
  %v1028 = vpack.c.bf16 %v968, %v967
  %v1029 = vpack.c.bf16 %v970, %v969
  %v1030 = vpack.c.bf16 %v972, %v971
  %v1031 = vpack.c.bf16 %v974, %v973
  %v1032 = vpack.c.bf16 %v976, %v975
  %v1033 = vpack.c.bf16 %v978, %v977
  %v1034 = vpack.c.bf16 %v980, %v979
  %v1035 = vpack.c.bf16 %v982, %v981
  %v1036 = vpack.c.bf16 %v984, %v983
  %v1037 = vpack.c.bf16 %v986, %v985
  %v1038 = vpack.c.bf16 %v988, %v987
  %v1039 = vpack.c.bf16 %v990, %v989
  %v1040 = vpack.c.bf16 %v992, %v991
  %v1041 = vpack.c.bf16 %v994, %v993
  %v1042 = vpack.c.bf16 %v996, %v995
  %v1043 = vpack.c.bf16 %v998, %v997
  %v1044 = vpack.c.bf16 %v1000, %v999
  %v1045 = vpack.c.bf16 %v1002, %v1001
  %v1046 = vpack.c.bf16 %v1004, %v1003
  %v1047 = vpack.c.bf16 %v1006, %v1005
  %v1048 = vpack.c.bf16 %v1008, %v1007
  %v1049 = vpack.c.bf16 %v1010, %v1009
  %v1050 = vpack.c.bf16 %v1012, %v1011
  %v1051 = vpack.c.bf16 %v1014, %v1013
  %v1052 = vpack.c.bf16 %v1016, %v1015
  %v1053 = vpack.c.bf16 %v1018, %v1017
  %v1054 = vpack.c.bf16 %v1020, %v1019
  %v1055 = vpack.c.bf16 %v1022, %v1021
  %v1056 = vpack.c.bf16 %v1024, %v1023
  %v1089 = vunpack.c.l.b16 %v1025
  %v1090 = vunpack.c.h.b16 %v1025
  %v1091 = vunpack.c.l.b16 %v1026
  %v1092 = vunpack.c.h.b16 %v1026
  %v1093 = vunpack.c.l.b16 %v1027
  %v1094 = vunpack.c.h.b16 %v1027
  %v1095 = vunpack.c.l.b16 %v1028
  %v1096 = vunpack.c.h.b16 %v1028
  %v1097 = vunpack.c.l.b16 %v1029
  %v1098 = vunpack.c.h.b16 %v1029
  %v1099 = vunpack.c.l.b16 %v1030
  %v1100 = vunpack.c.h.b16 %v1030
  %v1101 = vunpack.c.l.b16 %v1031
  %v1102 = vunpack.c.h.b16 %v1031
  %v1103 = vunpack.c.l.b16 %v1032
  %v1104 = vunpack.c.h.b16 %v1032
  %v1105 = vunpack.c.l.b16 %v1033
  %v1106 = vunpack.c.h.b16 %v1033
  %v1107 = vunpack.c.l.b16 %v1034
  %v1108 = vunpack.c.h.b16 %v1034
  %v1109 = vunpack.c.l.b16 %v1035
  %v1110 = vunpack.c.h.b16 %v1035
  %v1111 = vunpack.c.l.b16 %v1036
  %v1112 = vunpack.c.h.b16 %v1036
  %v1113 = vunpack.c.l.b16 %v1037
  %v1114 = vunpack.c.h.b16 %v1037
  %v1115 = vunpack.c.l.b16 %v1038
  %v1116 = vunpack.c.h.b16 %v1038
  %v1117 = vunpack.c.l.b16 %v1039
  %v1118 = vunpack.c.h.b16 %v1039
  %v1119 = vunpack.c.l.b16 %v1040
  %v1120 = vunpack.c.h.b16 %v1040
  %v1121 = vunpack.c.l.b16 %v1041
  %v1122 = vunpack.c.h.b16 %v1041
  %v1123 = vunpack.c.l.b16 %v1042
  %v1124 = vunpack.c.h.b16 %v1042
  %v1125 = vunpack.c.l.b16 %v1043
  %v1126 = vunpack.c.h.b16 %v1043
  %v1127 = vunpack.c.l.b16 %v1044
  %v1128 = vunpack.c.h.b16 %v1044
  %v1129 = vunpack.c.l.b16 %v1045
  %v1130 = vunpack.c.h.b16 %v1045
  %v1131 = vunpack.c.l.b16 %v1046
  %v1132 = vunpack.c.h.b16 %v1046
  %v1133 = vunpack.c.l.b16 %v1047
  %v1134 = vunpack.c.h.b16 %v1047
  %v1135 = vunpack.c.l.b16 %v1048
  %v1136 = vunpack.c.h.b16 %v1048
  %v1137 = vunpack.c.l.b16 %v1049
  %v1138 = vunpack.c.h.b16 %v1049
  %v1139 = vunpack.c.l.b16 %v1050
  %v1140 = vunpack.c.h.b16 %v1050
  %v1141 = vunpack.c.l.b16 %v1051
  %v1142 = vunpack.c.h.b16 %v1051
  %v1143 = vunpack.c.l.b16 %v1052
  %v1144 = vunpack.c.h.b16 %v1052
  %v1145 = vunpack.c.l.b16 %v1053
  %v1146 = vunpack.c.h.b16 %v1053
  %v1147 = vunpack.c.l.b16 %v1054
  %v1148 = vunpack.c.h.b16 %v1054
  %v1149 = vunpack.c.l.b16 %v1055
  %v1150 = vunpack.c.h.b16 %v1055
  %v1151 = vunpack.c.l.b16 %v1056
  %v1152 = vunpack.c.h.b16 %v1056
  %v1153 = vpack.c.b16 %v1089, %v1089
  %v1154 = vpack.c.b16 %v1090, %v1090
  %v1155 = vpack.c.b16 %v1091, %v1091
  %v1156 = vpack.c.b16 %v1092, %v1092
  %v1157 = vpack.c.b16 %v1093, %v1093
  %v1158 = vpack.c.b16 %v1094, %v1094
  %v1159 = vpack.c.b16 %v1095, %v1095
  %v1160 = vpack.c.b16 %v1096, %v1096
  %v1161 = vpack.c.b16 %v1097, %v1097
  %v1162 = vpack.c.b16 %v1098, %v1098
  %v1163 = vpack.c.b16 %v1099, %v1099
  %v1164 = vpack.c.b16 %v1100, %v1100
  %v1165 = vpack.c.b16 %v1101, %v1101
  %v1166 = vpack.c.b16 %v1102, %v1102
  %v1167 = vpack.c.b16 %v1103, %v1103
  %v1168 = vpack.c.b16 %v1104, %v1104
  %v1169 = vpack.c.b16 %v1105, %v1105
  %v1170 = vpack.c.b16 %v1106, %v1106
  %v1171 = vpack.c.b16 %v1107, %v1107
  %v1172 = vpack.c.b16 %v1108, %v1108
  %v1173 = vpack.c.b16 %v1109, %v1109
  %v1174 = vpack.c.b16 %v1110, %v1110
  %v1175 = vpack.c.b16 %v1111, %v1111
  %v1176 = vpack.c.b16 %v1112, %v1112
  %v1177 = vpack.c.b16 %v1113, %v1113
  %v1178 = vpack.c.b16 %v1114, %v1114
  %v1179 = vpack.c.b16 %v1115, %v1115
  %v1180 = vpack.c.b16 %v1116, %v1116
  %v1181 = vpack.c.b16 %v1117, %v1117
  %v1182 = vpack.c.b16 %v1118, %v1118
  %v1183 = vpack.c.b16 %v1119, %v1119
  %v1184 = vpack.c.b16 %v1120, %v1120
  %v1185 = vpack.c.b16 %v1121, %v1121
  %v1186 = vpack.c.b16 %v1122, %v1122
  %v1187 = vpack.c.b16 %v1123, %v1123
  %v1188 = vpack.c.b16 %v1124, %v1124
  %v1189 = vpack.c.b16 %v1125, %v1125
  %v1190 = vpack.c.b16 %v1126, %v1126
  %v1191 = vpack.c.b16 %v1127, %v1127
  %v1192 = vpack.c.b16 %v1128, %v1128
  %v1193 = vpack.c.b16 %v1129, %v1129
  %v1194 = vpack.c.b16 %v1130, %v1130
  %v1195 = vpack.c.b16 %v1131, %v1131
  %v1196 = vpack.c.b16 %v1132, %v1132
  %v1197 = vpack.c.b16 %v1133, %v1133
  %v1198 = vpack.c.b16 %v1134, %v1134
  %v1199 = vpack.c.b16 %v1135, %v1135
  %v1200 = vpack.c.b16 %v1136, %v1136
  %v1201 = vpack.c.b16 %v1137, %v1137
  %v1202 = vpack.c.b16 %v1138, %v1138
  %v1203 = vpack.c.b16 %v1139, %v1139
  %v1204 = vpack.c.b16 %v1140, %v1140
  %v1205 = vpack.c.b16 %v1141, %v1141
  %v1206 = vpack.c.b16 %v1142, %v1142
  %v1207 = vpack.c.b16 %v1143, %v1143
  %v1208 = vpack.c.b16 %v1144, %v1144
  %v1209 = vpack.c.b16 %v1145, %v1145
  %v1210 = vpack.c.b16 %v1146, %v1146
  %v1211 = vpack.c.b16 %v1147, %v1147
  %v1212 = vpack.c.b16 %v1148, %v1148
  %v1213 = vpack.c.b16 %v1149, %v1149
  %v1214 = vpack.c.b16 %v1150, %v1150
  %v1215 = vpack.c.b16 %v1151, %v1151
  %v1216 = vpack.c.b16 %v1152, %v1152
  %1281 = vst [vmem:[%s4] sm:$0xf] %v1153
  %1282 = vst [vmem:[%s4 + $0x4] sm:$0xf] %v1154
  %1283 = vst [vmem:[%s4 + $0x8] sm:$0xf] %v1155
  %1284 = vst [vmem:[%s4 + $0xc] sm:$0xf] %v1156
  %1285 = vst [vmem:[%s4 + $0x10] sm:$0xf] %v1157
  %1286 = vst [vmem:[%s4 + $0x14] sm:$0xf] %v1158
  %1287 = vst [vmem:[%s4 + $0x18] sm:$0xf] %v1159
  %1288 = vst [vmem:[%s4 + $0x1c] sm:$0xf] %v1160
  %1289 = vst [vmem:[%s4 + $0x20] sm:$0xf] %v1161
  %1290 = vst [vmem:[%s4 + $0x24] sm:$0xf] %v1162
  %1291 = vst [vmem:[%s4 + $0x28] sm:$0xf] %v1163
  %1292 = vst [vmem:[%s4 + $0x2c] sm:$0xf] %v1164
  %1293 = vst [vmem:[%s4 + $0x30] sm:$0xf] %v1165
  %1294 = vst [vmem:[%s4 + $0x34] sm:$0xf] %v1166
  %1295 = vst [vmem:[%s4 + $0x38] sm:$0xf] %v1167
  %1296 = vst [vmem:[%s4 + $0x3c] sm:$0xf] %v1168
  %1297 = vst [vmem:[%s4 + $0x40] sm:$0xf] %v1169
  %1298 = vst [vmem:[%s4 + $0x44] sm:$0xf] %v1170
  %1299 = vst [vmem:[%s4 + $0x48] sm:$0xf] %v1171
  %1300 = vst [vmem:[%s4 + $0x4c] sm:$0xf] %v1172
  %1301 = vst [vmem:[%s4 + $0x50] sm:$0xf] %v1173
  %1302 = vst [vmem:[%s4 + $0x54] sm:$0xf] %v1174
  %1303 = vst [vmem:[%s4 + $0x58] sm:$0xf] %v1175
  %1304 = vst [vmem:[%s4 + $0x5c] sm:$0xf] %v1176
  %1305 = vst [vmem:[%s4 + $0x60] sm:$0xf] %v1177
  %1306 = vst [vmem:[%s4 + $0x64] sm:$0xf] %v1178
  %1307 = vst [vmem:[%s4 + $0x68] sm:$0xf] %v1179
  %1308 = vst [vmem:[%s4 + $0x6c] sm:$0xf] %v1180
  %1309 = vst [vmem:[%s4 + $0x70] sm:$0xf] %v1181
  %1310 = vst [vmem:[%s4 + $0x74] sm:$0xf] %v1182
  %1311 = vst [vmem:[%s4 + $0x78] sm:$0xf] %v1183
  %1312 = vst [vmem:[%s4 + $0x7c] sm:$0xf] %v1184
  %1313 = vst [vmem:[%s4 + $0x80] sm:$0xf] %v1185
  %1314 = vst [vmem:[%s4 + $0x84] sm:$0xf] %v1186
  %1315 = vst [vmem:[%s4 + $0x88] sm:$0xf] %v1187
  %1316 = vst [vmem:[%s4 + $0x8c] sm:$0xf] %v1188
  %1317 = vst [vmem:[%s4 + $0x90] sm:$0xf] %v1189
  %1318 = vst [vmem:[%s4 + $0x94] sm:$0xf] %v1190
  %1319 = vst [vmem:[%s4 + $0x98] sm:$0xf] %v1191
  %1320 = vst [vmem:[%s4 + $0x9c] sm:$0xf] %v1192
  %1321 = vst [vmem:[%s4 + $0xa0] sm:$0xf] %v1193
  %1322 = vst [vmem:[%s4 + $0xa4] sm:$0xf] %v1194
  %1323 = vst [vmem:[%s4 + $0xa8] sm:$0xf] %v1195
  %1324 = vst [vmem:[%s4 + $0xac] sm:$0xf] %v1196
  %1325 = vst [vmem:[%s4 + $0xb0] sm:$0xf] %v1197
  %1326 = vst [vmem:[%s4 + $0xb4] sm:$0xf] %v1198
  %1327 = vst [vmem:[%s4 + $0xb8] sm:$0xf] %v1199
  %1328 = vst [vmem:[%s4 + $0xbc] sm:$0xf] %v1200
  %1329 = vst [vmem:[%s4 + $0xc0] sm:$0xf] %v1201
  %1330 = vst [vmem:[%s4 + $0xc4] sm:$0xf] %v1202
  %1331 = vst [vmem:[%s4 + $0xc8] sm:$0xf] %v1203
  %1332 = vst [vmem:[%s4 + $0xcc] sm:$0xf] %v1204
  %1333 = vst [vmem:[%s4 + $0xd0] sm:$0xf] %v1205
  %1334 = vst [vmem:[%s4 + $0xd4] sm:$0xf] %v1206
  %1335 = vst [vmem:[%s4 + $0xd8] sm:$0xf] %v1207
  %1336 = vst [vmem:[%s4 + $0xdc] sm:$0xf] %v1208
  %1337 = vst [vmem:[%s4 + $0xe0] sm:$0xf] %v1209
  %1338 = vst [vmem:[%s4 + $0xe4] sm:$0xf] %v1210
  %1339 = vst [vmem:[%s4 + $0xe8] sm:$0xf] %v1211
  %1340 = vst [vmem:[%s4 + $0xec] sm:$0xf] %v1212
  %1341 = vst [vmem:[%s4 + $0xf0] sm:$0xf] %v1213
  %1342 = vst [vmem:[%s4 + $0xf4] sm:$0xf] %v1214
  %1343 = vst [vmem:[%s4 + $0xf8] sm:$0xf] %v1215
  %1344 = vst [vmem:[%s4 + $0xfc] sm:$0xf] %v1216
  // Predicated region
  $region18: #{forward.7} parent=0 // pred_check
    _
  $region19: #{forward.7} parent=0 // pred_check_branch
    %1346 = sbr.rel (0) target = $region21
  $region20: #{forward.7} parent=0 // pred_region
    _
  $region21: #{forward.7} parent=0 // pred_fallthru
    _
  // Predicated region
  $region22: #{forward.7} parent=0 // pred_check
    _
  $region23: #{forward.7} parent=0 // pred_check_branch
    %1348 = sbr.rel (0) target = $region25
  $region24: #{forward.7} parent=0 // pred_region
    _
  $region25: #{forward.7} parent=0 // pred_fallthru
    _

// kernel: forward.8
$region0: #{forward.8}
  #allocation0 [shape = 'u32[]', space=smem, size = 0x4, offset = 0x4, fixed_abs, tag = 'smem constant byte address 0x4 - core index']
  #allocation1 [shape = 'u32[144,128]{1,0:T(1,128)}', space=vmem, size = 0x12000, scoped, tag = 'internal scratch']
  %s0 = inlined_call_operand.vmem [shape: bf16[2,9,9,64], index: 0, kind: input, shape index: {}]
  %s1 = inlined_call_operand.vmem [shape: bf16[2,9,9,64], index: 1, kind: input, shape index: {}]
  %s2 = inlined_call_operand.vmem [shape: bf16[2,9,9,64], index: 2, kind: input, shape index: {}]
  %s3 = inlined_call_operand.vmem [shape: bf16[2,9,9,64], index: 3, kind: input, shape index: {}]
  %s4 = inlined_call_operand.vmem [shape: bf16[2,8,8,64], index: 4, kind: output, shape index: {}]
  %s5 = sld [smem:[#allocation0]]
  $region26: #{forward.8} parent=0
    _
  %s7 = ssub.s32 1, %s5
  %s8 = scalar_select 0, %s7, %s5
  // Predicated region
  $region2: #{forward.8} parent=0 // pred_check
    _
  $region3: #{forward.8} parent=0 // pred_check_branch
    %10 = sbr.rel (0) target = $region5
  $region4: #{forward.8} parent=0 // pred_region
    _
  $region5: #{forward.8} parent=0 // pred_fallthru
    _
  // Predicated region
  $region6: #{forward.8} parent=0 // pred_check
    _
  $region7: #{forward.8} parent=0 // pred_check_branch
    %12 = sbr.rel (0) target = $region9
  $region8: #{forward.8} parent=0 // pred_region
    _
  $region9: #{forward.8} parent=0 // pred_fallthru
    _
  // Predicated region
  $region10: #{forward.8} parent=0 // pred_check
    _
  $region11: #{forward.8} parent=0 // pred_check_branch
    %14 = sbr.rel (0) target = $region13
  $region12: #{forward.8} parent=0 // pred_region
    _
  $region13: #{forward.8} parent=0 // pred_fallthru
    _
  // Predicated region
  $region14: #{forward.8} parent=0 // pred_check
    _
  $region15: #{forward.8} parent=0 // pred_check_branch
    %16 = sbr.rel (0) target = $region17
  $region16: #{forward.8} parent=0 // pred_region
    _
  $region17: #{forward.8} parent=0 // pred_fallthru
    _
  %v17 = vld [vmem:[%s0] sm:$0xf]
  %v18 = vld [vmem:[%s0 + $0x8] sm:$0xf]
  %v19 = vld [vmem:[%s0 + $0x10] sm:$0xf]
  %v20 = vld [vmem:[%s0 + $0x18] sm:$0xf]
  %v21 = vld [vmem:[%s0 + $0x20] sm:$0xf]
  %v22 = vld [vmem:[%s0 + $0x28] sm:$0xf]
  %v23 = vld [vmem:[%s0 + $0x30] sm:$0xf]
  %v24 = vld [vmem:[%s0 + $0x38] sm:$0xf]
  %v25 = vld [vmem:[%s0 + $0x48] sm:$0xf]
  %v26 = vld [vmem:[%s0 + $0x50] sm:$0xf]
  %v27 = vld [vmem:[%s0 + $0x58] sm:$0xf]
  %v28 = vld [vmem:[%s0 + $0x60] sm:$0xf]
  %v29 = vld [vmem:[%s0 + $0x68] sm:$0xf]
  %v30 = vld [vmem:[%s0 + $0x70] sm:$0xf]
  %v31 = vld [vmem:[%s0 + $0x78] sm:$0xf]
  %v32 = vld [vmem:[%s0 + $0x80] sm:$0xf]
  %v33 = vld [vmem:[%s1] sm:$0xf]
  %v34 = vld [vmem:[%s1 + $0x8] sm:$0xf]
  %v35 = vld [vmem:[%s1 + $0x10] sm:$0xf]
  %v36 = vld [vmem:[%s1 + $0x18] sm:$0xf]
  %v37 = vld [vmem:[%s1 + $0x20] sm:$0xf]
  %v38 = vld [vmem:[%s1 + $0x28] sm:$0xf]
  %v39 = vld [vmem:[%s1 + $0x30] sm:$0xf]
  %v40 = vld [vmem:[%s1 + $0x38] sm:$0xf]
  %v41 = vld [vmem:[%s1 + $0x48] sm:$0xf]
  %v42 = vld [vmem:[%s1 + $0x50] sm:$0xf]
  %v43 = vld [vmem:[%s1 + $0x58] sm:$0xf]
  %v44 = vld [vmem:[%s1 + $0x60] sm:$0xf]
  %v45 = vld [vmem:[%s1 + $0x68] sm:$0xf]
  %v46 = vld [vmem:[%s1 + $0x70] sm:$0xf]
  %v47 = vld [vmem:[%s1 + $0x78] sm:$0xf]
  %v48 = vld [vmem:[%s1 + $0x80] sm:$0xf]
  %v49 = vmax.bf16 %v17, %v33
  %v50 = vmax.bf16 %v18, %v34
  %v51 = vmax.bf16 %v19, %v35
  %v52 = vmax.bf16 %v20, %v36
  %v53 = vmax.bf16 %v21, %v37
  %v54 = vmax.bf16 %v22, %v38
  %v55 = vmax.bf16 %v23, %v39
  %v56 = vmax.bf16 %v24, %v40
  %v57 = vmax.bf16 %v25, %v41
  %v58 = vmax.bf16 %v26, %v42
  %v59 = vmax.bf16 %v27, %v43
  %v60 = vmax.bf16 %v28, %v44
  %v61 = vmax.bf16 %v29, %v45
  %v62 = vmax.bf16 %v30, %v46
  %v63 = vmax.bf16 %v31, %v47
  %v64 = vmax.bf16 %v32, %v48
  %v65 = vld [vmem:[%s0 + $0x4] sm:$0x1]
  %v66 = vld [vmem:[%s0 + $0xc] sm:$0x1]
  %v67 = vld [vmem:[%s0 + $0x14] sm:$0x1]
  %v68 = vld [vmem:[%s0 + $0x1c] sm:$0x1]
  %v69 = vld [vmem:[%s0 + $0x24] sm:$0x1]
  %v70 = vld [vmem:[%s0 + $0x2c] sm:$0x1]
  %v71 = vld [vmem:[%s0 + $0x34] sm:$0x1]
  %v72 = vld [vmem:[%s0 + $0x3c] sm:$0x1]
  %v73 = vld [vmem:[%s0 + $0x4c] sm:$0x1]
  %v74 = vld [vmem:[%s0 + $0x54] sm:$0x1]
  %v75 = vld [vmem:[%s0 + $0x5c] sm:$0x1]
  %v76 = vld [vmem:[%s0 + $0x64] sm:$0x1]
  %v77 = vld [vmem:[%s0 + $0x6c] sm:$0x1]
  %v78 = vld [vmem:[%s0 + $0x74] sm:$0x1]
  %v79 = vld [vmem:[%s0 + $0x7c] sm:$0x1]
  %v80 = vld [vmem:[%s0 + $0x84] sm:$0x1]
  %vm81 = vsmask.f32 3328
  %vm82 = vsmask.f32 7440
  %vm83 = vmor %vm81, %vm82
  %v85 = vshrl.u32 %v17, 16
  %v87 = vrot.slane %v85, 4
  %v88 = vshll.u32 %v17, 16
  %v90 = vrot.slane %v88, 5
  %v91 = vor.u32 %v87, %v90
  %v92 = vrot.slane %v91, 4
  %v94 = vshll.u32 %v65, 16
  %v96 = vrot.slane %v94, 5
  %v97 = vsel %vm83, %v92, %v96
  %v99 = vshrl.u32 %v18, 16
  %v101 = vrot.slane %v99, 4
  %v102 = vshll.u32 %v18, 16
  %v104 = vrot.slane %v102, 5
  %v105 = vor.u32 %v101, %v104
  %v106 = vrot.slane %v105, 4
  %v108 = vshll.u32 %v66, 16
  %v110 = vrot.slane %v108, 5
  %v111 = vsel %vm83, %v106, %v110
  %v113 = vshrl.u32 %v19, 16
  %v115 = vrot.slane %v113, 4
  %v116 = vshll.u32 %v19, 16
  %v118 = vrot.slane %v116, 5
  %v119 = vor.u32 %v115, %v118
  %v120 = vrot.slane %v119, 4
  %v122 = vshll.u32 %v67, 16
  %v124 = vrot.slane %v122, 5
  %v125 = vsel %vm83, %v120, %v124
  %v127 = vshrl.u32 %v20, 16
  %v129 = vrot.slane %v127, 4
  %v130 = vshll.u32 %v20, 16
  %v132 = vrot.slane %v130, 5
  %v133 = vor.u32 %v129, %v132
  %v134 = vrot.slane %v133, 4
  %v136 = vshll.u32 %v68, 16
  %v138 = vrot.slane %v136, 5
  %v139 = vsel %vm83, %v134, %v138
  %v141 = vshrl.u32 %v21, 16
  %v143 = vrot.slane %v141, 4
  %v144 = vshll.u32 %v21, 16
  %v146 = vrot.slane %v144, 5
  %v147 = vor.u32 %v143, %v146
  %v148 = vrot.slane %v147, 4
  %v150 = vshll.u32 %v69, 16
  %v152 = vrot.slane %v150, 5
  %v153 = vsel %vm83, %v148, %v152
  %v155 = vshrl.u32 %v22, 16
  %v157 = vrot.slane %v155, 4
  %v158 = vshll.u32 %v22, 16
  %v160 = vrot.slane %v158, 5
  %v161 = vor.u32 %v157, %v160
  %v162 = vrot.slane %v161, 4
  %v164 = vshll.u32 %v70, 16
  %v166 = vrot.slane %v164, 5
  %v167 = vsel %vm83, %v162, %v166
  %v169 = vshrl.u32 %v23, 16
  %v171 = vrot.slane %v169, 4
  %v172 = vshll.u32 %v23, 16
  %v174 = vrot.slane %v172, 5
  %v175 = vor.u32 %v171, %v174
  %v176 = vrot.slane %v175, 4
  %v178 = vshll.u32 %v71, 16
  %v180 = vrot.slane %v178, 5
  %v181 = vsel %vm83, %v176, %v180
  %v183 = vshrl.u32 %v24, 16
  %v185 = vrot.slane %v183, 4
  %v186 = vshll.u32 %v24, 16
  %v188 = vrot.slane %v186, 5
  %v189 = vor.u32 %v185, %v188
  %v190 = vrot.slane %v189, 4
  %v192 = vshll.u32 %v72, 16
  %v194 = vrot.slane %v192, 5
  %v195 = vsel %vm83, %v190, %v194
  %v197 = vshrl.u32 %v25, 16
  %v199 = vrot.slane %v197, 4
  %v200 = vshll.u32 %v25, 16
  %v202 = vrot.slane %v200, 5
  %v203 = vor.u32 %v199, %v202
  %v204 = vrot.slane %v203, 4
  %v206 = vshll.u32 %v73, 16
  %v208 = vrot.slane %v206, 5
  %v209 = vsel %vm83, %v204, %v208
  %v211 = vshrl.u32 %v26, 16
  %v213 = vrot.slane %v211, 4
  %v214 = vshll.u32 %v26, 16
  %v216 = vrot.slane %v214, 5
  %v217 = vor.u32 %v213, %v216
  %v218 = vrot.slane %v217, 4
  %v220 = vshll.u32 %v74, 16
  %v222 = vrot.slane %v220, 5
  %v223 = vsel %vm83, %v218, %v222
  %v225 = vshrl.u32 %v27, 16
  %v227 = vrot.slane %v225, 4
  %v228 = vshll.u32 %v27, 16
  %v230 = vrot.slane %v228, 5
  %v231 = vor.u32 %v227, %v230
  %v232 = vrot.slane %v231, 4
  %v234 = vshll.u32 %v75, 16
  %v236 = vrot.slane %v234, 5
  %v237 = vsel %vm83, %v232, %v236
  %v239 = vshrl.u32 %v28, 16
  %v241 = vrot.slane %v239, 4
  %v242 = vshll.u32 %v28, 16
  %v244 = vrot.slane %v242, 5
  %v245 = vor.u32 %v241, %v244
  %v246 = vrot.slane %v245, 4
  %v248 = vshll.u32 %v76, 16
  %v250 = vrot.slane %v248, 5
  %v251 = vsel %vm83, %v246, %v250
  %v253 = vshrl.u32 %v29, 16
  %v255 = vrot.slane %v253, 4
  %v256 = vshll.u32 %v29, 16
  %v258 = vrot.slane %v256, 5
  %v259 = vor.u32 %v255, %v258
  %v260 = vrot.slane %v259, 4
  %v262 = vshll.u32 %v77, 16
  %v264 = vrot.slane %v262, 5
  %v265 = vsel %vm83, %v260, %v264
  %v267 = vshrl.u32 %v30, 16
  %v269 = vrot.slane %v267, 4
  %v270 = vshll.u32 %v30, 16
  %v272 = vrot.slane %v270, 5
  %v273 = vor.u32 %v269, %v272
  %v274 = vrot.slane %v273, 4
  %v276 = vshll.u32 %v78, 16
  %v278 = vrot.slane %v276, 5
  %v279 = vsel %vm83, %v274, %v278
  %v281 = vshrl.u32 %v31, 16
  %v283 = vrot.slane %v281, 4
  %v284 = vshll.u32 %v31, 16
  %v286 = vrot.slane %v284, 5
  %v287 = vor.u32 %v283, %v286
  %v288 = vrot.slane %v287, 4
  %v290 = vshll.u32 %v79, 16
  %v292 = vrot.slane %v290, 5
  %v293 = vsel %vm83, %v288, %v292
  %v295 = vshrl.u32 %v32, 16
  %v297 = vrot.slane %v295, 4
  %v298 = vshll.u32 %v32, 16
  %v300 = vrot.slane %v298, 5
  %v301 = vor.u32 %v297, %v300
  %v302 = vrot.slane %v301, 4
  %v304 = vshll.u32 %v80, 16
  %v306 = vrot.slane %v304, 5
  %v307 = vsel %vm83, %v302, %v306
  %v324 = vmax.bf16 %v49, %v97
  %v325 = vmax.bf16 %v50, %v111
  %v326 = vmax.bf16 %v51, %v125
  %v327 = vmax.bf16 %v52, %v139
  %v328 = vmax.bf16 %v53, %v153
  %v329 = vmax.bf16 %v54, %v167
  %v330 = vmax.bf16 %v55, %v181
  %v331 = vmax.bf16 %v56, %v195
  %v332 = vmax.bf16 %v57, %v209
  %v333 = vmax.bf16 %v58, %v223
  %v334 = vmax.bf16 %v59, %v237
  %v335 = vmax.bf16 %v60, %v251
  %v336 = vmax.bf16 %v61, %v265
  %v337 = vmax.bf16 %v62, %v279
  %v338 = vmax.bf16 %v63, %v293
  %v339 = vmax.bf16 %v64, %v307
  %v340 = vld [vmem:[%s2] sm:$0xf]
  %v341 = vld [vmem:[%s2 + $0x8] sm:$0xf]
  %v342 = vld [vmem:[%s2 + $0x10] sm:$0xf]
  %v343 = vld [vmem:[%s2 + $0x18] sm:$0xf]
  %v344 = vld [vmem:[%s2 + $0x20] sm:$0xf]
  %v345 = vld [vmem:[%s2 + $0x28] sm:$0xf]
  %v346 = vld [vmem:[%s2 + $0x30] sm:$0xf]
  %v347 = vld [vmem:[%s2 + $0x38] sm:$0xf]
  %v348 = vld [vmem:[%s2 + $0x48] sm:$0xf]
  %v349 = vld [vmem:[%s2 + $0x50] sm:$0xf]
  %v350 = vld [vmem:[%s2 + $0x58] sm:$0xf]
  %v351 = vld [vmem:[%s2 + $0x60] sm:$0xf]
  %v352 = vld [vmem:[%s2 + $0x68] sm:$0xf]
  %v353 = vld [vmem:[%s2 + $0x70] sm:$0xf]
  %v354 = vld [vmem:[%s2 + $0x78] sm:$0xf]
  %v355 = vld [vmem:[%s2 + $0x80] sm:$0xf]
  %v356 = vmax.bf16 %v324, %v340
  %v357 = vmax.bf16 %v325, %v341
  %v358 = vmax.bf16 %v326, %v342
  %v359 = vmax.bf16 %v327, %v343
  %v360 = vmax.bf16 %v328, %v344
  %v361 = vmax.bf16 %v329, %v345
  %v362 = vmax.bf16 %v330, %v346
  %v363 = vmax.bf16 %v331, %v347
  %v364 = vmax.bf16 %v332, %v348
  %v365 = vmax.bf16 %v333, %v349
  %v366 = vmax.bf16 %v334, %v350
  %v367 = vmax.bf16 %v335, %v351
  %v368 = vmax.bf16 %v336, %v352
  %v369 = vmax.bf16 %v337, %v353
  %v370 = vmax.bf16 %v338, %v354
  %v371 = vmax.bf16 %v339, %v355
  %v372 = vld [vmem:[%s3] sm:$0xf]
  %v373 = vld [vmem:[%s3 + $0x8] sm:$0xf]
  %v374 = vld [vmem:[%s3 + $0x10] sm:$0xf]
  %v375 = vld [vmem:[%s3 + $0x18] sm:$0xf]
  %v376 = vld [vmem:[%s3 + $0x20] sm:$0xf]
  %v377 = vld [vmem:[%s3 + $0x28] sm:$0xf]
  %v378 = vld [vmem:[%s3 + $0x30] sm:$0xf]
  %v379 = vld [vmem:[%s3 + $0x38] sm:$0xf]
  %v380 = vld [vmem:[%s3 + $0x48] sm:$0xf]
  %v381 = vld [vmem:[%s3 + $0x50] sm:$0xf]
  %v382 = vld [vmem:[%s3 + $0x58] sm:$0xf]
  %v383 = vld [vmem:[%s3 + $0x60] sm:$0xf]
  %v384 = vld [vmem:[%s3 + $0x68] sm:$0xf]
  %v385 = vld [vmem:[%s3 + $0x70] sm:$0xf]
  %v386 = vld [vmem:[%s3 + $0x78] sm:$0xf]
  %v387 = vld [vmem:[%s3 + $0x80] sm:$0xf]
  %v388 = vmax.bf16 %v356, %v372
  %v389 = vmax.bf16 %v357, %v373
  %v390 = vmax.bf16 %v358, %v374
  %v391 = vmax.bf16 %v359, %v375
  %v392 = vmax.bf16 %v360, %v376
  %v393 = vmax.bf16 %v361, %v377
  %v394 = vmax.bf16 %v362, %v378
  %v395 = vmax.bf16 %v363, %v379
  %v396 = vmax.bf16 %v364, %v380
  %v397 = vmax.bf16 %v365, %v381
  %v398 = vmax.bf16 %v366, %v382
  %v399 = vmax.bf16 %v367, %v383
  %v400 = vmax.bf16 %v368, %v384
  %v401 = vmax.bf16 %v369, %v385
  %v402 = vmax.bf16 %v370, %v386
  %v403 = vmax.bf16 %v371, %v387
  %v404 = vld [vmem:[%s2 + $0x4] sm:$0x1]
  %v405 = vld [vmem:[%s2 + $0xc] sm:$0x1]
  %v406 = vld [vmem:[%s2 + $0x14] sm:$0x1]
  %v407 = vld [vmem:[%s2 + $0x1c] sm:$0x1]
  %v408 = vld [vmem:[%s2 + $0x24] sm:$0x1]
  %v409 = vld [vmem:[%s2 + $0x2c] sm:$0x1]
  %v410 = vld [vmem:[%s2 + $0x34] sm:$0x1]
  %v411 = vld [vmem:[%s2 + $0x3c] sm:$0x1]
  %v412 = vld [vmem:[%s2 + $0x4c] sm:$0x1]
  %v413 = vld [vmem:[%s2 + $0x54] sm:$0x1]
  %v414 = vld [vmem:[%s2 + $0x5c] sm:$0x1]
  %v415 = vld [vmem:[%s2 + $0x64] sm:$0x1]
  %v416 = vld [vmem:[%s2 + $0x6c] sm:$0x1]
  %v417 = vld [vmem:[%s2 + $0x74] sm:$0x1]
  %v418 = vld [vmem:[%s2 + $0x7c] sm:$0x1]
  %v419 = vld [vmem:[%s2 + $0x84] sm:$0x1]
  %v421 = vshrl.u32 %v340, 16
  %v423 = vrot.slane %v421, 4
  %v424 = vshll.u32 %v340, 16
  %v426 = vrot.slane %v424, 5
  %v427 = vor.u32 %v423, %v426
  %v428 = vrot.slane %v427, 4
  %v430 = vshll.u32 %v404, 16
  %v432 = vrot.slane %v430, 5
  %v433 = vsel %vm83, %v428, %v432
  %v435 = vshrl.u32 %v341, 16
  %v437 = vrot.slane %v435, 4
  %v438 = vshll.u32 %v341, 16
  %v440 = vrot.slane %v438, 5
  %v441 = vor.u32 %v437, %v440
  %v442 = vrot.slane %v441, 4
  %v444 = vshll.u32 %v405, 16
  %v446 = vrot.slane %v444, 5
  %v447 = vsel %vm83, %v442, %v446
  %v449 = vshrl.u32 %v342, 16
  %v451 = vrot.slane %v449, 4
  %v452 = vshll.u32 %v342, 16
  %v454 = vrot.slane %v452, 5
  %v455 = vor.u32 %v451, %v454
  %v456 = vrot.slane %v455, 4
  %v458 = vshll.u32 %v406, 16
  %v460 = vrot.slane %v458, 5
  %v461 = vsel %vm83, %v456, %v460
  %v463 = vshrl.u32 %v343, 16
  %v465 = vrot.slane %v463, 4
  %v466 = vshll.u32 %v343, 16
  %v468 = vrot.slane %v466, 5
  %v469 = vor.u32 %v465, %v468
  %v470 = vrot.slane %v469, 4
  %v472 = vshll.u32 %v407, 16
  %v474 = vrot.slane %v472, 5
  %v475 = vsel %vm83, %v470, %v474
  %v477 = vshrl.u32 %v344, 16
  %v479 = vrot.slane %v477, 4
  %v480 = vshll.u32 %v344, 16
  %v482 = vrot.slane %v480, 5
  %v483 = vor.u32 %v479, %v482
  %v484 = vrot.slane %v483, 4
  %v486 = vshll.u32 %v408, 16
  %v488 = vrot.slane %v486, 5
  %v489 = vsel %vm83, %v484, %v488
  %v491 = vshrl.u32 %v345, 16
  %v493 = vrot.slane %v491, 4
  %v494 = vshll.u32 %v345, 16
  %v496 = vrot.slane %v494, 5
  %v497 = vor.u32 %v493, %v496
  %v498 = vrot.slane %v497, 4
  %v500 = vshll.u32 %v409, 16
  %v502 = vrot.slane %v500, 5
  %v503 = vsel %vm83, %v498, %v502
  %v505 = vshrl.u32 %v346, 16
  %v507 = vrot.slane %v505, 4
  %v508 = vshll.u32 %v346, 16
  %v510 = vrot.slane %v508, 5
  %v511 = vor.u32 %v507, %v510
  %v512 = vrot.slane %v511, 4
  %v514 = vshll.u32 %v410, 16
  %v516 = vrot.slane %v514, 5
  %v517 = vsel %vm83, %v512, %v516
  %v519 = vshrl.u32 %v347, 16
  %v521 = vrot.slane %v519, 4
  %v522 = vshll.u32 %v347, 16
  %v524 = vrot.slane %v522, 5
  %v525 = vor.u32 %v521, %v524
  %v526 = vrot.slane %v525, 4
  %v528 = vshll.u32 %v411, 16
  %v530 = vrot.slane %v528, 5
  %v531 = vsel %vm83, %v526, %v530
  %v533 = vshrl.u32 %v348, 16
  %v535 = vrot.slane %v533, 4
  %v536 = vshll.u32 %v348, 16
  %v538 = vrot.slane %v536, 5
  %v539 = vor.u32 %v535, %v538
  %v540 = vrot.slane %v539, 4
  %v542 = vshll.u32 %v412, 16
  %v544 = vrot.slane %v542, 5
  %v545 = vsel %vm83, %v540, %v544
  %v547 = vshrl.u32 %v349, 16
  %v549 = vrot.slane %v547, 4
  %v550 = vshll.u32 %v349, 16
  %v552 = vrot.slane %v550, 5
  %v553 = vor.u32 %v549, %v552
  %v554 = vrot.slane %v553, 4
  %v556 = vshll.u32 %v413, 16
  %v558 = vrot.slane %v556, 5
  %v559 = vsel %vm83, %v554, %v558
  %v561 = vshrl.u32 %v350, 16
  %v563 = vrot.slane %v561, 4
  %v564 = vshll.u32 %v350, 16
  %v566 = vrot.slane %v564, 5
  %v567 = vor.u32 %v563, %v566
  %v568 = vrot.slane %v567, 4
  %v570 = vshll.u32 %v414, 16
  %v572 = vrot.slane %v570, 5
  %v573 = vsel %vm83, %v568, %v572
  %v575 = vshrl.u32 %v351, 16
  %v577 = vrot.slane %v575, 4
  %v578 = vshll.u32 %v351, 16
  %v580 = vrot.slane %v578, 5
  %v581 = vor.u32 %v577, %v580
  %v582 = vrot.slane %v581, 4
  %v584 = vshll.u32 %v415, 16
  %v586 = vrot.slane %v584, 5
  %v587 = vsel %vm83, %v582, %v586
  %v589 = vshrl.u32 %v352, 16
  %v591 = vrot.slane %v589, 4
  %v592 = vshll.u32 %v352, 16
  %v594 = vrot.slane %v592, 5
  %v595 = vor.u32 %v591, %v594
  %v596 = vrot.slane %v595, 4
  %v598 = vshll.u32 %v416, 16
  %v600 = vrot.slane %v598, 5
  %v601 = vsel %vm83, %v596, %v600
  %v603 = vshrl.u32 %v353, 16
  %v605 = vrot.slane %v603, 4
  %v606 = vshll.u32 %v353, 16
  %v608 = vrot.slane %v606, 5
  %v609 = vor.u32 %v605, %v608
  %v610 = vrot.slane %v609, 4
  %v612 = vshll.u32 %v417, 16
  %v614 = vrot.slane %v612, 5
  %v615 = vsel %vm83, %v610, %v614
  %v617 = vshrl.u32 %v354, 16
  %v619 = vrot.slane %v617, 4
  %v620 = vshll.u32 %v354, 16
  %v622 = vrot.slane %v620, 5
  %v623 = vor.u32 %v619, %v622
  %v624 = vrot.slane %v623, 4
  %v626 = vshll.u32 %v418, 16
  %v628 = vrot.slane %v626, 5
  %v629 = vsel %vm83, %v624, %v628
  %v631 = vshrl.u32 %v355, 16
  %v633 = vrot.slane %v631, 4
  %v634 = vshll.u32 %v355, 16
  %v636 = vrot.slane %v634, 5
  %v637 = vor.u32 %v633, %v636
  %v638 = vrot.slane %v637, 4
  %v640 = vshll.u32 %v419, 16
  %v642 = vrot.slane %v640, 5
  %v643 = vsel %vm83, %v638, %v642
  %v660 = vmax.bf16 %v388, %v433
  %v661 = vmax.bf16 %v389, %v447
  %v662 = vmax.bf16 %v390, %v461
  %v663 = vmax.bf16 %v391, %v475
  %v664 = vmax.bf16 %v392, %v489
  %v665 = vmax.bf16 %v393, %v503
  %v666 = vmax.bf16 %v394, %v517
  %v667 = vmax.bf16 %v395, %v531
  %v668 = vmax.bf16 %v396, %v545
  %v669 = vmax.bf16 %v397, %v559
  %v670 = vmax.bf16 %v398, %v573
  %v671 = vmax.bf16 %v399, %v587
  %v672 = vmax.bf16 %v400, %v601
  %v673 = vmax.bf16 %v401, %v615
  %v674 = vmax.bf16 %v402, %v629
  %v675 = vmax.bf16 %v403, %v643
  %s676 = scalar_lea.vmem %s0, 8
  %v677 = vld [vmem:[%s676] sm:$0xf]
  %v678 = vld [vmem:[%s676 + $0x8] sm:$0xf]
  %v679 = vld [vmem:[%s676 + $0x10] sm:$0xf]
  %v680 = vld [vmem:[%s676 + $0x18] sm:$0xf]
  %v681 = vld [vmem:[%s676 + $0x20] sm:$0xf]
  %v682 = vld [vmem:[%s676 + $0x28] sm:$0xf]
  %v683 = vld [vmem:[%s676 + $0x30] sm:$0xf]
  %v684 = vld [vmem:[%s676 + $0x38] sm:$0xf]
  %v685 = vld [vmem:[%s676 + $0x48] sm:$0xf]
  %v686 = vld [vmem:[%s676 + $0x50] sm:$0xf]
  %v687 = vld [vmem:[%s676 + $0x58] sm:$0xf]
  %v688 = vld [vmem:[%s676 + $0x60] sm:$0xf]
  %v689 = vld [vmem:[%s676 + $0x68] sm:$0xf]
  %v690 = vld [vmem:[%s676 + $0x70] sm:$0xf]
  %v691 = vld [vmem:[%s676 + $0x78] sm:$0xf]
  %v692 = vld [vmem:[%s676 + $0x80] sm:$0xf]
  %v693 = vmax.bf16 %v660, %v677
  %v694 = vmax.bf16 %v661, %v678
  %v695 = vmax.bf16 %v662, %v679
  %v696 = vmax.bf16 %v663, %v680
  %v697 = vmax.bf16 %v664, %v681
  %v698 = vmax.bf16 %v665, %v682
  %v699 = vmax.bf16 %v666, %v683
  %v700 = vmax.bf16 %v667, %v684
  %v701 = vmax.bf16 %v668, %v685
  %v702 = vmax.bf16 %v669, %v686
  %v703 = vmax.bf16 %v670, %v687
  %v704 = vmax.bf16 %v671, %v688
  %v705 = vmax.bf16 %v672, %v689
  %v706 = vmax.bf16 %v673, %v690
  %v707 = vmax.bf16 %v674, %v691
  %v708 = vmax.bf16 %v675, %v692
  %s709 = scalar_lea.vmem %s1, 8
  %v710 = vld [vmem:[%s709] sm:$0xf]
  %v711 = vld [vmem:[%s709 + $0x8] sm:$0xf]
  %v712 = vld [vmem:[%s709 + $0x10] sm:$0xf]
  %v713 = vld [vmem:[%s709 + $0x18] sm:$0xf]
  %v714 = vld [vmem:[%s709 + $0x20] sm:$0xf]
  %v715 = vld [vmem:[%s709 + $0x28] sm:$0xf]
  %v716 = vld [vmem:[%s709 + $0x30] sm:$0xf]
  %v717 = vld [vmem:[%s709 + $0x38] sm:$0xf]
  %v718 = vld [vmem:[%s709 + $0x48] sm:$0xf]
  %v719 = vld [vmem:[%s709 + $0x50] sm:$0xf]
  %v720 = vld [vmem:[%s709 + $0x58] sm:$0xf]
  %v721 = vld [vmem:[%s709 + $0x60] sm:$0xf]
  %v722 = vld [vmem:[%s709 + $0x68] sm:$0xf]
  %v723 = vld [vmem:[%s709 + $0x70] sm:$0xf]
  %v724 = vld [vmem:[%s709 + $0x78] sm:$0xf]
  %v725 = vld [vmem:[%s709 + $0x80] sm:$0xf]
  %v726 = vmax.bf16 %v693, %v710
  %v727 = vmax.bf16 %v694, %v711
  %v728 = vmax.bf16 %v695, %v712
  %v729 = vmax.bf16 %v696, %v713
  %v730 = vmax.bf16 %v697, %v714
  %v731 = vmax.bf16 %v698, %v715
  %v732 = vmax.bf16 %v699, %v716
  %v733 = vmax.bf16 %v700, %v717
  %v734 = vmax.bf16 %v701, %v718
  %v735 = vmax.bf16 %v702, %v719
  %v736 = vmax.bf16 %v703, %v720
  %v737 = vmax.bf16 %v704, %v721
  %v738 = vmax.bf16 %v705, %v722
  %v739 = vmax.bf16 %v706, %v723
  %v740 = vmax.bf16 %v707, %v724
  %v741 = vmax.bf16 %v708, %v725
  %v742 = vld [vmem:[%s676 + $0x4] sm:$0x1]
  %v743 = vld [vmem:[%s676 + $0xc] sm:$0x1]
  %v744 = vld [vmem:[%s676 + $0x14] sm:$0x1]
  %v745 = vld [vmem:[%s676 + $0x1c] sm:$0x1]
  %v746 = vld [vmem:[%s676 + $0x24] sm:$0x1]
  %v747 = vld [vmem:[%s676 + $0x2c] sm:$0x1]
  %v748 = vld [vmem:[%s676 + $0x34] sm:$0x1]
  %v749 = vld [vmem:[%s676 + $0x3c] sm:$0x1]
  %v750 = vld [vmem:[%s676 + $0x4c] sm:$0x1]
  %v751 = vld [vmem:[%s676 + $0x54] sm:$0x1]
  %v752 = vld [vmem:[%s676 + $0x5c] sm:$0x1]
  %v753 = vld [vmem:[%s676 + $0x64] sm:$0x1]
  %v754 = vld [vmem:[%s676 + $0x6c] sm:$0x1]
  %v755 = vld [vmem:[%s676 + $0x74] sm:$0x1]
  %v756 = vld [vmem:[%s676 + $0x7c] sm:$0x1]
  %v757 = vld [vmem:[%s676 + $0x84] sm:$0x1]
  %v759 = vshrl.u32 %v677, 16
  %v761 = vrot.slane %v759, 4
  %v762 = vshll.u32 %v677, 16
  %v764 = vrot.slane %v762, 5
  %v765 = vor.u32 %v761, %v764
  %v766 = vrot.slane %v765, 4
  %v768 = vshll.u32 %v742, 16
  %v770 = vrot.slane %v768, 5
  %v771 = vsel %vm83, %v766, %v770
  %v773 = vshrl.u32 %v678, 16
  %v775 = vrot.slane %v773, 4
  %v776 = vshll.u32 %v678, 16
  %v778 = vrot.slane %v776, 5
  %v779 = vor.u32 %v775, %v778
  %v780 = vrot.slane %v779, 4
  %v782 = vshll.u32 %v743, 16
  %v784 = vrot.slane %v782, 5
  %v785 = vsel %vm83, %v780, %v784
  %v787 = vshrl.u32 %v679, 16
  %v789 = vrot.slane %v787, 4
  %v790 = vshll.u32 %v679, 16
  %v792 = vrot.slane %v790, 5
  %v793 = vor.u32 %v789, %v792
  %v794 = vrot.slane %v793, 4
  %v796 = vshll.u32 %v744, 16
  %v798 = vrot.slane %v796, 5
  %v799 = vsel %vm83, %v794, %v798
  %v801 = vshrl.u32 %v680, 16
  %v803 = vrot.slane %v801, 4
  %v804 = vshll.u32 %v680, 16
  %v806 = vrot.slane %v804, 5
  %v807 = vor.u32 %v803, %v806
  %v808 = vrot.slane %v807, 4
  %v810 = vshll.u32 %v745, 16
  %v812 = vrot.slane %v810, 5
  %v813 = vsel %vm83, %v808, %v812
  %v815 = vshrl.u32 %v681, 16
  %v817 = vrot.slane %v815, 4
  %v818 = vshll.u32 %v681, 16
  %v820 = vrot.slane %v818, 5
  %v821 = vor.u32 %v817, %v820
  %v822 = vrot.slane %v821, 4
  %v824 = vshll.u32 %v746, 16
  %v826 = vrot.slane %v824, 5
  %v827 = vsel %vm83, %v822, %v826
  %v829 = vshrl.u32 %v682, 16
  %v831 = vrot.slane %v829, 4
  %v832 = vshll.u32 %v682, 16
  %v834 = vrot.slane %v832, 5
  %v835 = vor.u32 %v831, %v834
  %v836 = vrot.slane %v835, 4
  %v838 = vshll.u32 %v747, 16
  %v840 = vrot.slane %v838, 5
  %v841 = vsel %vm83, %v836, %v840
  %v843 = vshrl.u32 %v683, 16
  %v845 = vrot.slane %v843, 4
  %v846 = vshll.u32 %v683, 16
  %v848 = vrot.slane %v846, 5
  %v849 = vor.u32 %v845, %v848
  %v850 = vrot.slane %v849, 4
  %v852 = vshll.u32 %v748, 16
  %v854 = vrot.slane %v852, 5
  %v855 = vsel %vm83, %v850, %v854
  %v857 = vshrl.u32 %v684, 16
  %v859 = vrot.slane %v857, 4
  %v860 = vshll.u32 %v684, 16
  %v862 = vrot.slane %v860, 5
  %v863 = vor.u32 %v859, %v862
  %v864 = vrot.slane %v863, 4
  %v866 = vshll.u32 %v749, 16
  %v868 = vrot.slane %v866, 5
  %v869 = vsel %vm83, %v864, %v868
  %v871 = vshrl.u32 %v685, 16
  %v873 = vrot.slane %v871, 4
  %v874 = vshll.u32 %v685, 16
  %v876 = vrot.slane %v874, 5
  %v877 = vor.u32 %v873, %v876
  %v878 = vrot.slane %v877, 4
  %v880 = vshll.u32 %v750, 16
  %v882 = vrot.slane %v880, 5
  %v883 = vsel %vm83, %v878, %v882
  %v885 = vshrl.u32 %v686, 16
  %v887 = vrot.slane %v885, 4
  %v888 = vshll.u32 %v686, 16
  %v890 = vrot.slane %v888, 5
  %v891 = vor.u32 %v887, %v890
  %v892 = vrot.slane %v891, 4
  %v894 = vshll.u32 %v751, 16
  %v896 = vrot.slane %v894, 5
  %v897 = vsel %vm83, %v892, %v896
  %v899 = vshrl.u32 %v687, 16
  %v901 = vrot.slane %v899, 4
  %v902 = vshll.u32 %v687, 16
  %v904 = vrot.slane %v902, 5
  %v905 = vor.u32 %v901, %v904
  %v906 = vrot.slane %v905, 4
  %v908 = vshll.u32 %v752, 16
  %v910 = vrot.slane %v908, 5
  %v911 = vsel %vm83, %v906, %v910
  %v913 = vshrl.u32 %v688, 16
  %v915 = vrot.slane %v913, 4
  %v916 = vshll.u32 %v688, 16
  %v918 = vrot.slane %v916, 5
  %v919 = vor.u32 %v915, %v918
  %v920 = vrot.slane %v919, 4
  %v922 = vshll.u32 %v753, 16
  %v924 = vrot.slane %v922, 5
  %v925 = vsel %vm83, %v920, %v924
  %v927 = vshrl.u32 %v689, 16
  %v929 = vrot.slane %v927, 4
  %v930 = vshll.u32 %v689, 16
  %v932 = vrot.slane %v930, 5
  %v933 = vor.u32 %v929, %v932
  %v934 = vrot.slane %v933, 4
  %v936 = vshll.u32 %v754, 16
  %v938 = vrot.slane %v936, 5
  %v939 = vsel %vm83, %v934, %v938
  %v941 = vshrl.u32 %v690, 16
  %v943 = vrot.slane %v941, 4
  %v944 = vshll.u32 %v690, 16
  %v946 = vrot.slane %v944, 5
  %v947 = vor.u32 %v943, %v946
  %v948 = vrot.slane %v947, 4
  %v950 = vshll.u32 %v755, 16
  %v952 = vrot.slane %v950, 5
  %v953 = vsel %vm83, %v948, %v952
  %v955 = vshrl.u32 %v691, 16
  %v957 = vrot.slane %v955, 4
  %v958 = vshll.u32 %v691, 16
  %v960 = vrot.slane %v958, 5
  %v961 = vor.u32 %v957, %v960
  %v962 = vrot.slane %v961, 4
  %v964 = vshll.u32 %v756, 16
  %v966 = vrot.slane %v964, 5
  %v967 = vsel %vm83, %v962, %v966
  %v969 = vshrl.u32 %v692, 16
  %v971 = vrot.slane %v969, 4
  %v972 = vshll.u32 %v692, 16
  %v974 = vrot.slane %v972, 5
  %v975 = vor.u32 %v971, %v974
  %v976 = vrot.slane %v975, 4
  %v978 = vshll.u32 %v757, 16
  %v980 = vrot.slane %v978, 5
  %v981 = vsel %vm83, %v976, %v980
  %v998 = vmax.bf16 %v726, %v771
  %v999 = vmax.bf16 %v727, %v785
  %v1000 = vmax.bf16 %v728, %v799
  %v1001 = vmax.bf16 %v729, %v813
  %v1002 = vmax.bf16 %v730, %v827
  %v1003 = vmax.bf16 %v731, %v841
  %v1004 = vmax.bf16 %v732, %v855
  %v1005 = vmax.bf16 %v733, %v869
  %v1006 = vmax.bf16 %v734, %v883
  %v1007 = vmax.bf16 %v735, %v897
  %v1008 = vmax.bf16 %v736, %v911
  %v1009 = vmax.bf16 %v737, %v925
  %v1010 = vmax.bf16 %v738, %v939
  %v1011 = vmax.bf16 %v739, %v953
  %v1012 = vmax.bf16 %v740, %v967
  %v1013 = vmax.bf16 %v741, %v981
  %vm1014 = vcmask 519168
  %1015 = vst.msk [vmem:[%s4] sm:$0xf] %vm1014, %v998
  %1016 = vst.msk [vmem:[%s4 + $0x4] sm:$0xf] %vm1014, %v999
  %1017 = vst.msk [vmem:[%s4 + $0x8] sm:$0xf] %vm1014, %v1000
  %1018 = vst.msk [vmem:[%s4 + $0xc] sm:$0xf] %vm1014, %v1001
  %1019 = vst.msk [vmem:[%s4 + $0x10] sm:$0xf] %vm1014, %v1002
  %1020 = vst.msk [vmem:[%s4 + $0x14] sm:$0xf] %vm1014, %v1003
  %1021 = vst.msk [vmem:[%s4 + $0x18] sm:$0xf] %vm1014, %v1004
  %1022 = vst.msk [vmem:[%s4 + $0x1c] sm:$0xf] %vm1014, %v1005
  %1023 = vst.msk [vmem:[%s4 + $0x20] sm:$0xf] %vm1014, %v1006
  %1024 = vst.msk [vmem:[%s4 + $0x24] sm:$0xf] %vm1014, %v1007
  %1025 = vst.msk [vmem:[%s4 + $0x28] sm:$0xf] %vm1014, %v1008
  %1026 = vst.msk [vmem:[%s4 + $0x2c] sm:$0xf] %vm1014, %v1009
  %1027 = vst.msk [vmem:[%s4 + $0x30] sm:$0xf] %vm1014, %v1010
  %1028 = vst.msk [vmem:[%s4 + $0x34] sm:$0xf] %vm1014, %v1011
  %1029 = vst.msk [vmem:[%s4 + $0x38] sm:$0xf] %vm1014, %v1012
  %1030 = vst.msk [vmem:[%s4 + $0x3c] sm:$0xf] %vm1014, %v1013
  // Predicated region
  $region18: #{forward.8} parent=0 // pred_check
    _
  $region19: #{forward.8} parent=0 // pred_check_branch
    %1032 = sbr.rel (0) target = $region21
  $region20: #{forward.8} parent=0 // pred_region
    _
  $region21: #{forward.8} parent=0 // pred_fallthru
    _
  // Predicated region
  $region22: #{forward.8} parent=0 // pred_check
    _
  $region23: #{forward.8} parent=0 // pred_check_branch
    %1034 = sbr.rel (0) target = $region25
  $region24: #{forward.8} parent=0 // pred_region
    _
  $region25: #{forward.8} parent=0 // pred_fallthru
    _

// kernel: forward.9
$region0: #{forward.9}
  #allocation0 [shape = 'u32[]', space=smem, size = 0x4, offset = 0x4, fixed_abs, tag = 'smem constant byte address 0x4 - core index']
  #allocation1 [shape = 'u32[144,128]{1,0:T(1,128)}', space=vmem, size = 0x12000, scoped, tag = 'internal scratch']
  %s0 = inlined_call_operand.vmem [shape: bf16[128,640], index: 0, kind: input, shape index: {}]
  %s1 = inlined_call_operand.vmem [shape: bf16[640,128], index: 1, kind: input, shape index: {}]
  %s2 = inlined_call_operand.vmem [shape: f32[1,128], index: 2, kind: input, shape index: {}]
  %s3 = inlined_call_operand.vmem [shape: f32[1,128], index: 3, kind: input, shape index: {}]
  %s4 = inlined_call_operand.vmem [shape: bf16[128,128], index: 4, kind: output, shape index: {}]
  %s5 = sld [smem:[#allocation0]]
  $region26: #{forward.9} parent=0
    _
  %s7 = ssub.s32 1, %s5
  %s8 = scalar_select 0, %s7, %s5
  // Predicated region
  $region2: #{forward.9} parent=0 // pred_check
    _
  $region3: #{forward.9} parent=0 // pred_check_branch
    %10 = sbr.rel (0) target = $region5
  $region4: #{forward.9} parent=0 // pred_region
    _
  $region5: #{forward.9} parent=0 // pred_fallthru
    _
  // Predicated region
  $region6: #{forward.9} parent=0 // pred_check
    _
  $region7: #{forward.9} parent=0 // pred_check_branch
    %12 = sbr.rel (0) target = $region9
  $region8: #{forward.9} parent=0 // pred_region
    _
  $region9: #{forward.9} parent=0 // pred_fallthru
    _
  // Predicated region
  $region10: #{forward.9} parent=0 // pred_check
    _
  $region11: #{forward.9} parent=0 // pred_check_branch
    %14 = sbr.rel (0) target = $region13
  $region12: #{forward.9} parent=0 // pred_region
    _
  $region13: #{forward.9} parent=0 // pred_fallthru
    _
  // Predicated region
  $region14: #{forward.9} parent=0 // pred_check
    _
  $region15: #{forward.9} parent=0 // pred_check_branch
    %16 = sbr.rel (0) target = $region17
  $region16: #{forward.9} parent=0 // pred_region
    _
  $region17: #{forward.9} parent=0 // pred_fallthru
    _
  %v18 = vld [vmem:[%s0] sm:$0xff]
  %v19 = vld [vmem:[%s0 + $0x8] sm:$0xff]
  %v20 = vld [vmem:[%s0 + $0x10] sm:$0xf]
  %v21 = vld [vmem:[%s0 + $0x14] sm:$0xff]
  %v22 = vld [vmem:[%s0 + $0x1c] sm:$0xff]
  %v23 = vld [vmem:[%s0 + $0x24] sm:$0xf]
  %v24 = vld [vmem:[%s0 + $0x28] sm:$0xff]
  %v25 = vld [vmem:[%s0 + $0x30] sm:$0xff]
  %v26 = vld [vmem:[%s0 + $0x38] sm:$0xf]
  %v27 = vld [vmem:[%s0 + $0x3c] sm:$0xff]
  %v28 = vld [vmem:[%s0 + $0x44] sm:$0xff]
  %v29 = vld [vmem:[%s0 + $0x4c] sm:$0xf]
  %v30 = vld [vmem:[%s0 + $0x50] sm:$0xff]
  %v31 = vld [vmem:[%s0 + $0x58] sm:$0xff]
  %v32 = vld [vmem:[%s0 + $0x60] sm:$0xf]
  %v33 = vld [vmem:[%s0 + $0x64] sm:$0xff]
  %v34 = vld [vmem:[%s0 + $0x6c] sm:$0xff]
  %v35 = vld [vmem:[%s0 + $0x74] sm:$0xf]
  %v36 = vld [vmem:[%s0 + $0x78] sm:$0xff]
  %v37 = vld [vmem:[%s0 + $0x80] sm:$0xff]
  %v38 = vld [vmem:[%s0 + $0x88] sm:$0xf]
  %v39 = vld [vmem:[%s0 + $0x8c] sm:$0xff]
  %v40 = vld [vmem:[%s0 + $0x94] sm:$0xff]
  %v41 = vld [vmem:[%s0 + $0x9c] sm:$0xf]
  %v42 = vld [vmem:[%s0 + $0xa0] sm:$0xff]
  %v43 = vld [vmem:[%s0 + $0xa8] sm:$0xff]
  %v44 = vld [vmem:[%s0 + $0xb0] sm:$0xf]
  %v45 = vld [vmem:[%s0 + $0xb4] sm:$0xff]
  %v46 = vld [vmem:[%s0 + $0xbc] sm:$0xff]
  %v47 = vld [vmem:[%s0 + $0xc4] sm:$0xf]
  %v48 = vld [vmem:[%s0 + $0xc8] sm:$0xff]
  %v49 = vld [vmem:[%s0 + $0xd0] sm:$0xff]
  %v50 = vld [vmem:[%s0 + $0xd8] sm:$0xf]
  %v51 = vld [vmem:[%s0 + $0xdc] sm:$0xff]
  %v52 = vld [vmem:[%s0 + $0xe4] sm:$0xff]
  %v53 = vld [vmem:[%s0 + $0xec] sm:$0xf]
  %v54 = vld [vmem:[%s0 + $0xf0] sm:$0xff]
  %v55 = vld [vmem:[%s0 + $0xf8] sm:$0xff]
  %v56 = vld [vmem:[%s0 + $0x100] sm:$0xf]
  %v57 = vld [vmem:[%s0 + $0x104] sm:$0xff]
  %v58 = vld [vmem:[%s0 + $0x10c] sm:$0xff]
  %v59 = vld [vmem:[%s0 + $0x114] sm:$0xf]
  %v60 = vld [vmem:[%s0 + $0x118] sm:$0xff]
  %v61 = vld [vmem:[%s0 + $0x120] sm:$0xff]
  %v62 = vld [vmem:[%s0 + $0x128] sm:$0xf]
  %v63 = vld [vmem:[%s0 + $0x12c] sm:$0xff]
  %v64 = vld [vmem:[%s0 + $0x134] sm:$0xff]
  %v65 = vld [vmem:[%s0 + $0x13c] sm:$0xf]
  %v66 = vld [vmem:[%s1] sm:$0xf]
  %v67 = vld [vmem:[%s1 + $0x4] sm:$0xf]
  %v68 = vld [vmem:[%s1 + $0x8] sm:$0xf]
  %v69 = vld [vmem:[%s1 + $0xc] sm:$0xf]
  %v70 = vld [vmem:[%s1 + $0x10] sm:$0xf]
  %v71 = vld [vmem:[%s1 + $0x14] sm:$0xf]
  %v72 = vld [vmem:[%s1 + $0x18] sm:$0xf]
  %v73 = vld [vmem:[%s1 + $0x1c] sm:$0xf]
  %v74 = vld [vmem:[%s1 + $0x20] sm:$0xf]
  %v75 = vld [vmem:[%s1 + $0x24] sm:$0xf]
  %v76 = vld [vmem:[%s1 + $0x28] sm:$0xf]
  %v77 = vld [vmem:[%s1 + $0x2c] sm:$0xf]
  %v78 = vld [vmem:[%s1 + $0x30] sm:$0xf]
  %v79 = vld [vmem:[%s1 + $0x34] sm:$0xf]
  %v80 = vld [vmem:[%s1 + $0x38] sm:$0xf]
  %v81 = vld [vmem:[%s1 + $0x3c] sm:$0xf]
  %v82 = vld [vmem:[%s1 + $0x40] sm:$0xf]
  %v83 = vld [vmem:[%s1 + $0x44] sm:$0xf]
  %v84 = vld [vmem:[%s1 + $0x48] sm:$0xf]
  %v85 = vld [vmem:[%s1 + $0x4c] sm:$0xf]
  %v86 = vld [vmem:[%s1 + $0x50] sm:$0xf]
  %v87 = vld [vmem:[%s1 + $0x54] sm:$0xf]
  %v88 = vld [vmem:[%s1 + $0x58] sm:$0xf]
  %v89 = vld [vmem:[%s1 + $0x5c] sm:$0xf]
  %v90 = vld [vmem:[%s1 + $0x60] sm:$0xf]
  %v91 = vld [vmem:[%s1 + $0x64] sm:$0xf]
  %v92 = vld [vmem:[%s1 + $0x68] sm:$0xf]
  %v93 = vld [vmem:[%s1 + $0x6c] sm:$0xf]
  %v94 = vld [vmem:[%s1 + $0x70] sm:$0xf]
  %v95 = vld [vmem:[%s1 + $0x74] sm:$0xf]
  %v96 = vld [vmem:[%s1 + $0x78] sm:$0xf]
  %v97 = vld [vmem:[%s1 + $0x7c] sm:$0xf]
  %v98 = vld [vmem:[%s1 + $0x80] sm:$0xf]
  %v99 = vld [vmem:[%s1 + $0x84] sm:$0xf]
  %v100 = vld [vmem:[%s1 + $0x88] sm:$0xf]
  %v101 = vld [vmem:[%s1 + $0x8c] sm:$0xf]
  %v102 = vld [vmem:[%s1 + $0x90] sm:$0xf]
  %v103 = vld [vmem:[%s1 + $0x94] sm:$0xf]
  %v104 = vld [vmem:[%s1 + $0x98] sm:$0xf]
  %v105 = vld [vmem:[%s1 + $0x9c] sm:$0xf]
  %v106 = vld [vmem:[%s1 + $0xa0] sm:$0xf]
  %v107 = vld [vmem:[%s1 + $0xa4] sm:$0xf]
  %v108 = vld [vmem:[%s1 + $0xa8] sm:$0xf]
  %v109 = vld [vmem:[%s1 + $0xac] sm:$0xf]
  %v110 = vld [vmem:[%s1 + $0xb0] sm:$0xf]
  %v111 = vld [vmem:[%s1 + $0xb4] sm:$0xf]
  %v112 = vld [vmem:[%s1 + $0xb8] sm:$0xf]
  %v113 = vld [vmem:[%s1 + $0xbc] sm:$0xf]
  %v114 = vld [vmem:[%s1 + $0xc0] sm:$0xf]
  %v115 = vld [vmem:[%s1 + $0xc4] sm:$0xf]
  %v116 = vld [vmem:[%s1 + $0xc8] sm:$0xf]
  %v117 = vld [vmem:[%s1 + $0xcc] sm:$0xf]
  %v118 = vld [vmem:[%s1 + $0xd0] sm:$0xf]
  %v119 = vld [vmem:[%s1 + $0xd4] sm:$0xf]
  %v120 = vld [vmem:[%s1 + $0xd8] sm:$0xf]
  %v121 = vld [vmem:[%s1 + $0xdc] sm:$0xf]
  %v122 = vld [vmem:[%s1 + $0xe0] sm:$0xf]
  %v123 = vld [vmem:[%s1 + $0xe4] sm:$0xf]
  %v124 = vld [vmem:[%s1 + $0xe8] sm:$0xf]
  %v125 = vld [vmem:[%s1 + $0xec] sm:$0xf]
  %v126 = vld [vmem:[%s1 + $0xf0] sm:$0xf]
  %v127 = vld [vmem:[%s1 + $0xf4] sm:$0xf]
  %v128 = vld [vmem:[%s1 + $0xf8] sm:$0xf]
  %v129 = vld [vmem:[%s1 + $0xfc] sm:$0xf]
  %v130 = vld [vmem:[%s1 + $0x100] sm:$0xf]
  %v131 = vld [vmem:[%s1 + $0x104] sm:$0xf]
  %v132 = vld [vmem:[%s1 + $0x108] sm:$0xf]
  %v133 = vld [vmem:[%s1 + $0x10c] sm:$0xf]
  %v134 = vld [vmem:[%s1 + $0x110] sm:$0xf]
  %v135 = vld [vmem:[%s1 + $0x114] sm:$0xf]
  %v136 = vld [vmem:[%s1 + $0x118] sm:$0xf]
  %v137 = vld [vmem:[%s1 + $0x11c] sm:$0xf]
  %v138 = vld [vmem:[%s1 + $0x120] sm:$0xf]
  %v139 = vld [vmem:[%s1 + $0x124] sm:$0xf]
  %v140 = vld [vmem:[%s1 + $0x128] sm:$0xf]
  %v141 = vld [vmem:[%s1 + $0x12c] sm:$0xf]
  %v142 = vld [vmem:[%s1 + $0x130] sm:$0xf]
  %v143 = vld [vmem:[%s1 + $0x134] sm:$0xf]
  %v144 = vld [vmem:[%s1 + $0x138] sm:$0xf]
  %v145 = vld [vmem:[%s1 + $0x13c] sm:$0xf]
  %v194 = vunpack.c.l.b16 %v18
  %v195 = vunpack.c.h.b16 %v18
  %v196 = vunpack.c.l.b16 %v19
  %v197 = vunpack.c.h.b16 %v19
  %v198 = vunpack.c.l.b16 %v20
  %v199 = vunpack.c.l.b16 %v21
  %v200 = vunpack.c.h.b16 %v21
  %v201 = vunpack.c.l.b16 %v22
  %v202 = vunpack.c.h.b16 %v22
  %v203 = vunpack.c.l.b16 %v23
  %v204 = vunpack.c.l.b16 %v24
  %v205 = vunpack.c.h.b16 %v24
  %v206 = vunpack.c.l.b16 %v25
  %v207 = vunpack.c.h.b16 %v25
  %v208 = vunpack.c.l.b16 %v26
  %v209 = vunpack.c.l.b16 %v27
  %v210 = vunpack.c.h.b16 %v27
  %v211 = vunpack.c.l.b16 %v28
  %v212 = vunpack.c.h.b16 %v28
  %v213 = vunpack.c.l.b16 %v29
  %v214 = vunpack.c.l.b16 %v30
  %v215 = vunpack.c.h.b16 %v30
  %v216 = vunpack.c.l.b16 %v31
  %v217 = vunpack.c.h.b16 %v31
  %v218 = vunpack.c.l.b16 %v32
  %v219 = vunpack.c.l.b16 %v33
  %v220 = vunpack.c.h.b16 %v33
  %v221 = vunpack.c.l.b16 %v34
  %v222 = vunpack.c.h.b16 %v34
  %v223 = vunpack.c.l.b16 %v35
  %v224 = vunpack.c.l.b16 %v36
  %v225 = vunpack.c.h.b16 %v36
  %v226 = vunpack.c.l.b16 %v37
  %v227 = vunpack.c.h.b16 %v37
  %v228 = vunpack.c.l.b16 %v38
  %v229 = vunpack.c.l.b16 %v39
  %v230 = vunpack.c.h.b16 %v39
  %v231 = vunpack.c.l.b16 %v40
  %v232 = vunpack.c.h.b16 %v40
  %v233 = vunpack.c.l.b16 %v41
  %v234 = vunpack.c.l.b16 %v42
  %v235 = vunpack.c.h.b16 %v42
  %v236 = vunpack.c.l.b16 %v43
  %v237 = vunpack.c.h.b16 %v43
  %v238 = vunpack.c.l.b16 %v44
  %v239 = vunpack.c.l.b16 %v45
  %v240 = vunpack.c.h.b16 %v45
  %v241 = vunpack.c.l.b16 %v46
  %v242 = vunpack.c.h.b16 %v46
  %v243 = vunpack.c.l.b16 %v47
  %v244 = vunpack.c.l.b16 %v48
  %v245 = vunpack.c.h.b16 %v48
  %v246 = vunpack.c.l.b16 %v49
  %v247 = vunpack.c.h.b16 %v49
  %v248 = vunpack.c.l.b16 %v50
  %v249 = vunpack.c.l.b16 %v51
  %v250 = vunpack.c.h.b16 %v51
  %v251 = vunpack.c.l.b16 %v52
  %v252 = vunpack.c.h.b16 %v52
  %v253 = vunpack.c.l.b16 %v53
  %v254 = vunpack.c.l.b16 %v54
  %v255 = vunpack.c.h.b16 %v54
  %v256 = vunpack.c.l.b16 %v55
  %v257 = vunpack.c.h.b16 %v55
  %v258 = vunpack.c.l.b16 %v56
  %v259 = vunpack.c.l.b16 %v57
  %v260 = vunpack.c.h.b16 %v57
  %v261 = vunpack.c.l.b16 %v58
  %v262 = vunpack.c.h.b16 %v58
  %v263 = vunpack.c.l.b16 %v59
  %v264 = vunpack.c.l.b16 %v60
  %v265 = vunpack.c.h.b16 %v60
  %v266 = vunpack.c.l.b16 %v61
  %v267 = vunpack.c.h.b16 %v61
  %v268 = vunpack.c.l.b16 %v62
  %v269 = vunpack.c.l.b16 %v63
  %v270 = vunpack.c.h.b16 %v63
  %v271 = vunpack.c.l.b16 %v64
  %v272 = vunpack.c.h.b16 %v64
  %v273 = vunpack.c.l.b16 %v65
  %v274 = vpack.c.b16 %v199, %v194
  %v275 = vpack.c.b16 %v200, %v195
  %v276 = vpack.c.b16 %v201, %v196
  %v277 = vpack.c.b16 %v202, %v197
  %v278 = vpack.c.b16 %v203, %v198
  %v279 = vpack.c.b16 %v209, %v204
  %v280 = vpack.c.b16 %v210, %v205
  %v281 = vpack.c.b16 %v211, %v206
  %v282 = vpack.c.b16 %v212, %v207
  %v283 = vpack.c.b16 %v213, %v208
  %v284 = vpack.c.b16 %v219, %v214
  %v285 = vpack.c.b16 %v220, %v215
  %v286 = vpack.c.b16 %v221, %v216
  %v287 = vpack.c.b16 %v222, %v217
  %v288 = vpack.c.b16 %v223, %v218
  %v289 = vpack.c.b16 %v229, %v224
  %v290 = vpack.c.b16 %v230, %v225
  %v291 = vpack.c.b16 %v231, %v226
  %v292 = vpack.c.b16 %v232, %v227
  %v293 = vpack.c.b16 %v233, %v228
  %v294 = vpack.c.b16 %v239, %v234
  %v295 = vpack.c.b16 %v240, %v235
  %v296 = vpack.c.b16 %v241, %v236
  %v297 = vpack.c.b16 %v242, %v237
  %v298 = vpack.c.b16 %v243, %v238
  %v299 = vpack.c.b16 %v249, %v244
  %v300 = vpack.c.b16 %v250, %v245
  %v301 = vpack.c.b16 %v251, %v246
  %v302 = vpack.c.b16 %v252, %v247
  %v303 = vpack.c.b16 %v253, %v248
  %v304 = vpack.c.b16 %v259, %v254
  %v305 = vpack.c.b16 %v260, %v255
  %v306 = vpack.c.b16 %v261, %v256
  %v307 = vpack.c.b16 %v262, %v257
  %v308 = vpack.c.b16 %v263, %v258
  %v309 = vpack.c.b16 %v269, %v264
  %v310 = vpack.c.b16 %v270, %v265
  %v311 = vpack.c.b16 %v271, %v266
  %v312 = vpack.c.b16 %v272, %v267
  %v313 = vpack.c.b16 %v273, %v268
  %v434 = vunpack.c.l.b16 %v66
  %v435 = vunpack.c.l.b16 %v67
  %v436 = vunpack.c.l.b16 %v68
  %v437 = vunpack.c.l.b16 %v69
  %v438 = vunpack.c.l.b16 %v70
  %v439 = vunpack.c.l.b16 %v71
  %v440 = vunpack.c.l.b16 %v72
  %v441 = vunpack.c.l.b16 %v73
  %v442 = vunpack.c.l.b16 %v74
  %v443 = vunpack.c.l.b16 %v75
  %v444 = vunpack.c.l.b16 %v76
  %v445 = vunpack.c.l.b16 %v77
  %v446 = vunpack.c.l.b16 %v78
  %v447 = vunpack.c.l.b16 %v79
  %v448 = vunpack.c.l.b16 %v80
  %v449 = vunpack.c.l.b16 %v81
  %v450 = vunpack.c.l.b16 %v82
  %v451 = vunpack.c.l.b16 %v83
  %v452 = vunpack.c.l.b16 %v84
  %v453 = vunpack.c.l.b16 %v85
  %v454 = vunpack.c.l.b16 %v86
  %v455 = vunpack.c.l.b16 %v87
  %v456 = vunpack.c.l.b16 %v88
  %v457 = vunpack.c.l.b16 %v89
  %v458 = vunpack.c.l.b16 %v90
  %v459 = vunpack.c.l.b16 %v91
  %v460 = vunpack.c.l.b16 %v92
  %v461 = vunpack.c.l.b16 %v93
  %v462 = vunpack.c.l.b16 %v94
  %v463 = vunpack.c.l.b16 %v95
  %v464 = vunpack.c.l.b16 %v96
  %v465 = vunpack.c.l.b16 %v97
  %v466 = vunpack.c.l.b16 %v98
  %v467 = vunpack.c.l.b16 %v99
  %v468 = vunpack.c.l.b16 %v100
  %v469 = vunpack.c.l.b16 %v101
  %v470 = vunpack.c.l.b16 %v102
  %v471 = vunpack.c.l.b16 %v103
  %v472 = vunpack.c.l.b16 %v104
  %v473 = vunpack.c.l.b16 %v105
  %v474 = vunpack.c.l.b16 %v106
  %v475 = vunpack.c.l.b16 %v107
  %v476 = vunpack.c.l.b16 %v108
  %v477 = vunpack.c.l.b16 %v109
  %v478 = vunpack.c.l.b16 %v110
  %v479 = vunpack.c.l.b16 %v111
  %v480 = vunpack.c.l.b16 %v112
  %v481 = vunpack.c.l.b16 %v113
  %v482 = vunpack.c.l.b16 %v114
  %v483 = vunpack.c.l.b16 %v115
  %v484 = vunpack.c.l.b16 %v116
  %v485 = vunpack.c.l.b16 %v117
  %v486 = vunpack.c.l.b16 %v118
  %v487 = vunpack.c.l.b16 %v119
  %v488 = vunpack.c.l.b16 %v120
  %v489 = vunpack.c.l.b16 %v121
  %v490 = vunpack.c.l.b16 %v122
  %v491 = vunpack.c.l.b16 %v123
  %v492 = vunpack.c.l.b16 %v124
  %v493 = vunpack.c.l.b16 %v125
  %v494 = vunpack.c.l.b16 %v126
  %v495 = vunpack.c.l.b16 %v127
  %v496 = vunpack.c.l.b16 %v128
  %v497 = vunpack.c.l.b16 %v129
  %v498 = vunpack.c.l.b16 %v130
  %v499 = vunpack.c.l.b16 %v131
  %v500 = vunpack.c.l.b16 %v132
  %v501 = vunpack.c.l.b16 %v133
  %v502 = vunpack.c.l.b16 %v134
  %v503 = vunpack.c.l.b16 %v135
  %v504 = vunpack.c.l.b16 %v136
  %v505 = vunpack.c.l.b16 %v137
  %v506 = vunpack.c.l.b16 %v138
  %v507 = vunpack.c.l.b16 %v139
  %v508 = vunpack.c.l.b16 %v140
  %v509 = vunpack.c.l.b16 %v141
  %v510 = vunpack.c.l.b16 %v142
  %v511 = vunpack.c.l.b16 %v143
  %v512 = vunpack.c.l.b16 %v144
  %v513 = vunpack.c.l.b16 %v145
  %v514 = vpack.c.b16 %v435, %v434
  %v515 = vpack.c.b16 %v437, %v436
  %v516 = vpack.c.b16 %v439, %v438
  %v517 = vpack.c.b16 %v441, %v440
  %v518 = vpack.c.b16 %v443, %v442
  %v519 = vpack.c.b16 %v445, %v444
  %v520 = vpack.c.b16 %v447, %v446
  %v521 = vpack.c.b16 %v449, %v448
  %v522 = vpack.c.b16 %v451, %v450
  %v523 = vpack.c.b16 %v453, %v452
  %v524 = vpack.c.b16 %v455, %v454
  %v525 = vpack.c.b16 %v457, %v456
  %v526 = vpack.c.b16 %v459, %v458
  %v527 = vpack.c.b16 %v461, %v460
  %v528 = vpack.c.b16 %v463, %v462
  %v529 = vpack.c.b16 %v465, %v464
  %v530 = vpack.c.b16 %v467, %v466
  %v531 = vpack.c.b16 %v469, %v468
  %v532 = vpack.c.b16 %v471, %v470
  %v533 = vpack.c.b16 %v473, %v472
  %v534 = vpack.c.b16 %v475, %v474
  %v535 = vpack.c.b16 %v477, %v476
  %v536 = vpack.c.b16 %v479, %v478
  %v537 = vpack.c.b16 %v481, %v480
  %v538 = vpack.c.b16 %v483, %v482
  %v539 = vpack.c.b16 %v485, %v484
  %v540 = vpack.c.b16 %v487, %v486
  %v541 = vpack.c.b16 %v489, %v488
  %v542 = vpack.c.b16 %v491, %v490
  %v543 = vpack.c.b16 %v493, %v492
  %v544 = vpack.c.b16 %v495, %v494
  %v545 = vpack.c.b16 %v497, %v496
  %v546 = vpack.c.b16 %v499, %v498
  %v547 = vpack.c.b16 %v501, %v500
  %v548 = vpack.c.b16 %v503, %v502
  %v549 = vpack.c.b16 %v505, %v504
  %v550 = vpack.c.b16 %v507, %v506
  %v551 = vpack.c.b16 %v509, %v508
  %v552 = vpack.c.b16 %v511, %v510
  %v553 = vpack.c.b16 %v513, %v512
  %594 = vmatprep.subr.bf16.mxu0 0
  %595 = vmatpush1.bf16.msra.mxu0 %v521
  %596 = vmatprep.subr.bf16.mxu0 0
  %597 = vmatpush1.bf16.msra.mxu0 %v520
  %598 = vmatprep.subr.bf16.mxu0 0
  %599 = vmatpush1.bf16.msra.mxu0 %v519
  %600 = vmatprep.subr.bf16.mxu0 0
  %601 = vmatpush1.bf16.msra.mxu0 %v518
  %602 = vmatprep.subr.bf16.mxu0 0
  %603 = vmatpush1.bf16.msra.mxu0 %v517
  %604 = vmatprep.subr.bf16.mxu0 0
  %605 = vmatpush1.bf16.msra.mxu0 %v516
  %606 = vmatprep.subr.bf16.mxu0 0
  %607 = vmatpush1.bf16.msra.mxu0 %v515
  %608 = vmatprep.subr.bf16.mxu0 0
  %609 = vmatpush1.bf16.msra.mxu0 %v514
  %610 = vmatprep.subr.bf16.mxu0 0
  %611 = vmatpush2.bf16.msra.mxu0 %v529
  %612 = vmatprep.subr.bf16.mxu0 0
  %613 = vmatpush2.bf16.msra.mxu0 %v528
  %614 = vmatprep.subr.bf16.mxu0 0
  %615 = vmatpush2.bf16.msra.mxu0 %v527
  %616 = vmatprep.subr.bf16.mxu0 0
  %617 = vmatpush2.bf16.msra.mxu0 %v526
  %618 = vmatprep.subr.bf16.mxu0 0
  %619 = vmatpush2.bf16.msra.mxu0 %v525
  %620 = vmatprep.subr.bf16.mxu0 0
  %621 = vmatpush2.bf16.msra.mxu0 %v524
  %622 = vmatprep.subr.bf16.mxu0 0
  %623 = vmatpush2.bf16.msra.mxu0 %v523
  %624 = vmatprep.subr.bf16.mxu0 0
  %625 = vmatpush2.bf16.msra.mxu0 %v522
  %626 = vmatprep.mubr.bf16.mxu0 %v275
  %627 = vmatmul.mubr.bf16.gmra.mxu0 %v274
  %v628 = vpop.f32.mrf.mxu0
  %v629 = vadd.f32 0.0, %v628
  %v630 = vpop.f32.mrf.mxu0
  %v631 = vpop.f32.mrf.mxu0
  %v632 = vadd.f32 0.0, %v631
  %v633 = vpop.f32.mrf.mxu0
  %634 = vmatprep.mubr.bf16.mxu0 %v280
  %635 = vmatmul.mubr.bf16.gmra.mxu0 %v279
  %v636 = vpop.f32.mrf.mxu0
  %v637 = vadd.f32 0.0, %v636
  %v638 = vpop.f32.mrf.mxu0
  %v639 = vpop.f32.mrf.mxu0
  %v640 = vadd.f32 0.0, %v639
  %v641 = vpop.f32.mrf.mxu0
  %642 = vmatprep.mubr.bf16.mxu0 %v285
  %643 = vmatmul.mubr.bf16.gmra.mxu0 %v284
  %v644 = vpop.f32.mrf.mxu0
  %v645 = vadd.f32 0.0, %v644
  %v646 = vpop.f32.mrf.mxu0
  %v647 = vpop.f32.mrf.mxu0
  %v648 = vadd.f32 0.0, %v647
  %v649 = vpop.f32.mrf.mxu0
  %650 = vmatprep.mubr.bf16.mxu0 %v290
  %651 = vmatmul.mubr.bf16.gmra.mxu0 %v289
  %v652 = vpop.f32.mrf.mxu0
  %v653 = vadd.f32 0.0, %v652
  %v654 = vpop.f32.mrf.mxu0
  %v655 = vpop.f32.mrf.mxu0
  %v656 = vadd.f32 0.0, %v655
  %v657 = vpop.f32.mrf.mxu0
  %658 = vmatprep.mubr.bf16.mxu0 %v295
  %659 = vmatmul.mubr.bf16.gmra.mxu0 %v294
  %v660 = vpop.f32.mrf.mxu0
  %v661 = vadd.f32 0.0, %v660
  %v662 = vpop.f32.mrf.mxu0
  %v663 = vpop.f32.mrf.mxu0
  %v664 = vadd.f32 0.0, %v663
  %v665 = vpop.f32.mrf.mxu0
  %666 = vmatprep.mubr.bf16.mxu0 %v300
  %667 = vmatmul.mubr.bf16.gmra.mxu0 %v299
  %v668 = vpop.f32.mrf.mxu0
  %v669 = vadd.f32 0.0, %v668
  %v670 = vpop.f32.mrf.mxu0
  %v671 = vpop.f32.mrf.mxu0
  %v672 = vadd.f32 0.0, %v671
  %v673 = vpop.f32.mrf.mxu0
  %674 = vmatprep.mubr.bf16.mxu0 %v305
  %675 = vmatmul.mubr.bf16.gmra.mxu0 %v304
  %v676 = vpop.f32.mrf.mxu0
  %v677 = vadd.f32 0.0, %v676
  %v678 = vpop.f32.mrf.mxu0
  %v679 = vpop.f32.mrf.mxu0
  %v680 = vadd.f32 0.0, %v679
  %v681 = vpop.f32.mrf.mxu0
  %682 = vmatprep.mubr.bf16.mxu0 %v310
  %683 = vmatmul.mubr.bf16.gmra.mxu0 %v309
  %v684 = vpop.f32.mrf.mxu0
  %v685 = vadd.f32 0.0, %v684
  %v686 = vpop.f32.mrf.mxu0
  %v687 = vpop.f32.mrf.mxu0
  %v688 = vadd.f32 0.0, %v687
  %v689 = vpop.f32.mrf.mxu0
  %690 = vdwg.mxu0
  %691 = vmatprep.subr.bf16.mxu0 0
  %692 = vmatpush1.bf16.msra.mxu0 %v537
  %693 = vmatprep.subr.bf16.mxu0 0
  %694 = vmatpush1.bf16.msra.mxu0 %v536
  %695 = vmatprep.subr.bf16.mxu0 0
  %696 = vmatpush1.bf16.msra.mxu0 %v535
  %697 = vmatprep.subr.bf16.mxu0 0
  %698 = vmatpush1.bf16.msra.mxu0 %v534
  %699 = vmatprep.subr.bf16.mxu0 0
  %700 = vmatpush1.bf16.msra.mxu0 %v533
  %701 = vmatprep.subr.bf16.mxu0 0
  %702 = vmatpush1.bf16.msra.mxu0 %v532
  %703 = vmatprep.subr.bf16.mxu0 0
  %704 = vmatpush1.bf16.msra.mxu0 %v531
  %705 = vmatprep.subr.bf16.mxu0 0
  %706 = vmatpush1.bf16.msra.mxu0 %v530
  %707 = vmatprep.subr.bf16.mxu0 0
  %708 = vmatpush2.bf16.msra.mxu0 %v545
  %709 = vmatprep.subr.bf16.mxu0 0
  %710 = vmatpush2.bf16.msra.mxu0 %v544
  %711 = vmatprep.subr.bf16.mxu0 0
  %712 = vmatpush2.bf16.msra.mxu0 %v543
  %713 = vmatprep.subr.bf16.mxu0 0
  %714 = vmatpush2.bf16.msra.mxu0 %v542
  %715 = vmatprep.subr.bf16.mxu0 0
  %716 = vmatpush2.bf16.msra.mxu0 %v541
  %717 = vmatprep.subr.bf16.mxu0 0
  %718 = vmatpush2.bf16.msra.mxu0 %v540
  %719 = vmatprep.subr.bf16.mxu0 0
  %720 = vmatpush2.bf16.msra.mxu0 %v539
  %721 = vmatprep.subr.bf16.mxu0 0
  %722 = vmatpush2.bf16.msra.mxu0 %v538
  %723 = vmatprep.mubr.bf16.mxu0 %v277
  %724 = vmatmul.mubr.bf16.gmra.mxu0 %v276
  %v725 = vpop.f32.mrf.mxu0
  %v726 = vadd.f32 %v629, %v725
  %v727 = vpop.f32.mrf.mxu0
  %v728 = vpop.f32.mrf.mxu0
  %v729 = vadd.f32 %v632, %v728
  %v730 = vpop.f32.mrf.mxu0
  %731 = vmatprep.mubr.bf16.mxu0 %v282
  %732 = vmatmul.mubr.bf16.gmra.mxu0 %v281
  %v733 = vpop.f32.mrf.mxu0
  %v734 = vadd.f32 %v637, %v733
  %v735 = vpop.f32.mrf.mxu0
  %v736 = vpop.f32.mrf.mxu0
  %v737 = vadd.f32 %v640, %v736
  %v738 = vpop.f32.mrf.mxu0
  %739 = vmatprep.mubr.bf16.mxu0 %v287
  %740 = vmatmul.mubr.bf16.gmra.mxu0 %v286
  %v741 = vpop.f32.mrf.mxu0
  %v742 = vadd.f32 %v645, %v741
  %v743 = vpop.f32.mrf.mxu0
  %v744 = vpop.f32.mrf.mxu0
  %v745 = vadd.f32 %v648, %v744
  %v746 = vpop.f32.mrf.mxu0
  %747 = vmatprep.mubr.bf16.mxu0 %v292
  %748 = vmatmul.mubr.bf16.gmra.mxu0 %v291
  %v749 = vpop.f32.mrf.mxu0
  %v750 = vadd.f32 %v653, %v749
  %v751 = vpop.f32.mrf.mxu0
  %v752 = vpop.f32.mrf.mxu0
  %v753 = vadd.f32 %v656, %v752
  %v754 = vpop.f32.mrf.mxu0
  %755 = vmatprep.mubr.bf16.mxu0 %v297
  %756 = vmatmul.mubr.bf16.gmra.mxu0 %v296
  %v757 = vpop.f32.mrf.mxu0
  %v758 = vadd.f32 %v661, %v757
  %v759 = vpop.f32.mrf.mxu0
  %v760 = vpop.f32.mrf.mxu0
  %v761 = vadd.f32 %v664, %v760
  %v762 = vpop.f32.mrf.mxu0
  %763 = vmatprep.mubr.bf16.mxu0 %v302
  %764 = vmatmul.mubr.bf16.gmra.mxu0 %v301
  %v765 = vpop.f32.mrf.mxu0
  %v766 = vadd.f32 %v669, %v765
  %v767 = vpop.f32.mrf.mxu0
  %v768 = vpop.f32.mrf.mxu0
  %v769 = vadd.f32 %v672, %v768
  %v770 = vpop.f32.mrf.mxu0
  %771 = vmatprep.mubr.bf16.mxu0 %v307
  %772 = vmatmul.mubr.bf16.gmra.mxu0 %v306
  %v773 = vpop.f32.mrf.mxu0
  %v774 = vadd.f32 %v677, %v773
  %v775 = vpop.f32.mrf.mxu0
  %v776 = vpop.f32.mrf.mxu0
  %v777 = vadd.f32 %v680, %v776
  %v778 = vpop.f32.mrf.mxu0
  %779 = vmatprep.mubr.bf16.mxu0 %v312
  %780 = vmatmul.mubr.bf16.gmra.mxu0 %v311
  %v781 = vpop.f32.mrf.mxu0
  %v782 = vadd.f32 %v685, %v781
  %v783 = vpop.f32.mrf.mxu0
  %v784 = vpop.f32.mrf.mxu0
  %v785 = vadd.f32 %v688, %v784
  %v786 = vpop.f32.mrf.mxu0
  %787 = vdwg.mxu0
  %788 = vmatprep.subr.bf16.mxu0 0
  %789 = vmatpush1.bf16.msra.mxu0 %v553
  %790 = vmatprep.subr.bf16.mxu0 0
  %791 = vmatpush1.bf16.msra.mxu0 %v552
  %792 = vmatprep.subr.bf16.mxu0 0
  %793 = vmatpush1.bf16.msra.mxu0 %v551
  %794 = vmatprep.subr.bf16.mxu0 0
  %795 = vmatpush1.bf16.msra.mxu0 %v550
  %796 = vmatprep.subr.bf16.mxu0 0
  %797 = vmatpush1.bf16.msra.mxu0 %v549
  %798 = vmatprep.subr.bf16.mxu0 0
  %799 = vmatpush1.bf16.msra.mxu0 %v548
  %800 = vmatprep.subr.bf16.mxu0 0
  %801 = vmatpush1.bf16.msra.mxu0 %v547
  %802 = vmatprep.subr.bf16.mxu0 0
  %803 = vmatpush1.bf16.msra.mxu0 %v546
  %804 = vmatprep.subr.bf16.mxu0 0
  %805 = vmatpush2.bf16.msra.mxu0 0
  %806 = vmatprep.subr.bf16.mxu0 0
  %807 = vmatpush2.bf16.msra.mxu0 0
  %808 = vmatprep.subr.bf16.mxu0 0
  %809 = vmatpush2.bf16.msra.mxu0 0
  %810 = vmatprep.subr.bf16.mxu0 0
  %811 = vmatpush2.bf16.msra.mxu0 0
  %812 = vmatprep.subr.bf16.mxu0 0
  %813 = vmatpush2.bf16.msra.mxu0 0
  %814 = vmatprep.subr.bf16.mxu0 0
  %815 = vmatpush2.bf16.msra.mxu0 0
  %816 = vmatprep.subr.bf16.mxu0 0
  %817 = vmatpush2.bf16.msra.mxu0 0
  %818 = vmatprep.subr.bf16.mxu0 0
  %819 = vmatpush2.bf16.msra.mxu0 0
  %820 = vmatprep.mubr.bf16.mxu0 0
  %821 = vmatmul.mubr.bf16.gmra.mxu0 %v278
  %v822 = vpop.f32.mrf.mxu0
  %v823 = vadd.f32 %v726, %v822
  %v824 = vpop.f32.mrf.mxu0
  %v825 = vpop.f32.mrf.mxu0
  %v826 = vadd.f32 %v729, %v825
  %v827 = vpop.f32.mrf.mxu0
  %828 = vmatprep.mubr.bf16.mxu0 0
  %829 = vmatmul.mubr.bf16.gmra.mxu0 %v283
  %v830 = vpop.f32.mrf.mxu0
  %v831 = vadd.f32 %v734, %v830
  %v832 = vpop.f32.mrf.mxu0
  %v833 = vpop.f32.mrf.mxu0
  %v834 = vadd.f32 %v737, %v833
  %v835 = vpop.f32.mrf.mxu0
  %836 = vmatprep.mubr.bf16.mxu0 0
  %837 = vmatmul.mubr.bf16.gmra.mxu0 %v288
  %v838 = vpop.f32.mrf.mxu0
  %v839 = vadd.f32 %v742, %v838
  %v840 = vpop.f32.mrf.mxu0
  %v841 = vpop.f32.mrf.mxu0
  %v842 = vadd.f32 %v745, %v841
  %v843 = vpop.f32.mrf.mxu0
  %844 = vmatprep.mubr.bf16.mxu0 0
  %845 = vmatmul.mubr.bf16.gmra.mxu0 %v293
  %v846 = vpop.f32.mrf.mxu0
  %v847 = vadd.f32 %v750, %v846
  %v848 = vpop.f32.mrf.mxu0
  %v849 = vpop.f32.mrf.mxu0
  %v850 = vadd.f32 %v753, %v849
  %v851 = vpop.f32.mrf.mxu0
  %852 = vmatprep.mubr.bf16.mxu0 0
  %853 = vmatmul.mubr.bf16.gmra.mxu0 %v298
  %v854 = vpop.f32.mrf.mxu0
  %v855 = vadd.f32 %v758, %v854
  %v856 = vpop.f32.mrf.mxu0
  %v857 = vpop.f32.mrf.mxu0
  %v858 = vadd.f32 %v761, %v857
  %v859 = vpop.f32.mrf.mxu0
  %860 = vmatprep.mubr.bf16.mxu0 0
  %861 = vmatmul.mubr.bf16.gmra.mxu0 %v303
  %v862 = vpop.f32.mrf.mxu0
  %v863 = vadd.f32 %v766, %v862
  %v864 = vpop.f32.mrf.mxu0
  %v865 = vpop.f32.mrf.mxu0
  %v866 = vadd.f32 %v769, %v865
  %v867 = vpop.f32.mrf.mxu0
  %868 = vmatprep.mubr.bf16.mxu0 0
  %869 = vmatmul.mubr.bf16.gmra.mxu0 %v308
  %v870 = vpop.f32.mrf.mxu0
  %v871 = vadd.f32 %v774, %v870
  %v872 = vpop.f32.mrf.mxu0
  %v873 = vpop.f32.mrf.mxu0
  %v874 = vadd.f32 %v777, %v873
  %v875 = vpop.f32.mrf.mxu0
  %876 = vmatprep.mubr.bf16.mxu0 0
  %877 = vmatmul.mubr.bf16.gmra.mxu0 %v313
  %v878 = vpop.f32.mrf.mxu0
  %v879 = vadd.f32 %v782, %v878
  %v880 = vpop.f32.mrf.mxu0
  %v881 = vpop.f32.mrf.mxu0
  %v882 = vadd.f32 %v785, %v881
  %v883 = vpop.f32.mrf.mxu0
  %884 = vdwg.mxu0
  %v885 = vld [vmem:[%s2] sm:$0x1]
  %v887 = vlaneseq
  %v888 = vshrl.u32 %v887, 7
  %v889 = vsub.s32 0, %v888
  %v890 = vrot.slane %v885, %v889
  %v892 = vmul.f32 %v823, %v890
  %v893 = vmul.f32 %v826, %v890
  %v894 = vmul.f32 %v831, %v890
  %v895 = vmul.f32 %v834, %v890
  %v896 = vmul.f32 %v839, %v890
  %v897 = vmul.f32 %v842, %v890
  %v898 = vmul.f32 %v847, %v890
  %v899 = vmul.f32 %v850, %v890
  %v900 = vmul.f32 %v855, %v890
  %v901 = vmul.f32 %v858, %v890
  %v902 = vmul.f32 %v863, %v890
  %v903 = vmul.f32 %v866, %v890
  %v904 = vmul.f32 %v871, %v890
  %v905 = vmul.f32 %v874, %v890
  %v906 = vmul.f32 %v879, %v890
  %v907 = vmul.f32 %v882, %v890
  %v908 = vld [vmem:[%s3] sm:$0x1]
  %v910 = vlaneseq
  %v911 = vshrl.u32 %v910, 7
  %v912 = vsub.s32 0, %v911
  %v913 = vrot.slane %v908, %v912
  %v915 = vadd.f32 %v892, %v913
  %v916 = vadd.f32 %v893, %v913
  %v917 = vadd.f32 %v894, %v913
  %v918 = vadd.f32 %v895, %v913
  %v919 = vadd.f32 %v896, %v913
  %v920 = vadd.f32 %v897, %v913
  %v921 = vadd.f32 %v898, %v913
  %v922 = vadd.f32 %v899, %v913
  %v923 = vadd.f32 %v900, %v913
  %v924 = vadd.f32 %v901, %v913
  %v925 = vadd.f32 %v902, %v913
  %v926 = vadd.f32 %v903, %v913
  %v927 = vadd.f32 %v904, %v913
  %v928 = vadd.f32 %v905, %v913
  %v929 = vadd.f32 %v906, %v913
  %v930 = vadd.f32 %v907, %v913
  %v931 = vmax.f32 %v915, 0.0
  %v932 = vmax.f32 %v916, 0.0
  %v933 = vmax.f32 %v917, 0.0
  %v934 = vmax.f32 %v918, 0.0
  %v935 = vmax.f32 %v919, 0.0
  %v936 = vmax.f32 %v920, 0.0
  %v937 = vmax.f32 %v921, 0.0
  %v938 = vmax.f32 %v922, 0.0
  %v939 = vmax.f32 %v923, 0.0
  %v940 = vmax.f32 %v924, 0.0
  %v941 = vmax.f32 %v925, 0.0
  %v942 = vmax.f32 %v926, 0.0
  %v943 = vmax.f32 %v927, 0.0
  %v944 = vmax.f32 %v928, 0.0
  %v945 = vmax.f32 %v929, 0.0
  %v946 = vmax.f32 %v930, 0.0
  %v947 = vpack.c.bf16 %v932, %v931
  %v948 = vpack.c.bf16 %v934, %v933
  %v949 = vpack.c.bf16 %v936, %v935
  %v950 = vpack.c.bf16 %v938, %v937
  %v951 = vpack.c.bf16 %v940, %v939
  %v952 = vpack.c.bf16 %v942, %v941
  %v953 = vpack.c.bf16 %v944, %v943
  %v954 = vpack.c.bf16 %v946, %v945
  %v963 = vunpack.c.l.b16 %v947
  %v964 = vunpack.c.h.b16 %v947
  %v965 = vunpack.c.l.b16 %v948
  %v966 = vunpack.c.h.b16 %v948
  %v967 = vunpack.c.l.b16 %v949
  %v968 = vunpack.c.h.b16 %v949
  %v969 = vunpack.c.l.b16 %v950
  %v970 = vunpack.c.h.b16 %v950
  %v971 = vunpack.c.l.b16 %v951
  %v972 = vunpack.c.h.b16 %v951
  %v973 = vunpack.c.l.b16 %v952
  %v974 = vunpack.c.h.b16 %v952
  %v975 = vunpack.c.l.b16 %v953
  %v976 = vunpack.c.h.b16 %v953
  %v977 = vunpack.c.l.b16 %v954
  %v978 = vunpack.c.h.b16 %v954
  %v979 = vpack.c.b16 %v963, %v963
  %v980 = vpack.c.b16 %v964, %v964
  %v981 = vpack.c.b16 %v965, %v965
  %v982 = vpack.c.b16 %v966, %v966
  %v983 = vpack.c.b16 %v967, %v967
  %v984 = vpack.c.b16 %v968, %v968
  %v985 = vpack.c.b16 %v969, %v969
  %v986 = vpack.c.b16 %v970, %v970
  %v987 = vpack.c.b16 %v971, %v971
  %v988 = vpack.c.b16 %v972, %v972
  %v989 = vpack.c.b16 %v973, %v973
  %v990 = vpack.c.b16 %v974, %v974
  %v991 = vpack.c.b16 %v975, %v975
  %v992 = vpack.c.b16 %v976, %v976
  %v993 = vpack.c.b16 %v977, %v977
  %v994 = vpack.c.b16 %v978, %v978
  %1011 = vst [vmem:[%s4] sm:$0xf] %v979
  %1012 = vst [vmem:[%s4 + $0x4] sm:$0xf] %v980
  %1013 = vst [vmem:[%s4 + $0x8] sm:$0xf] %v981
  %1014 = vst [vmem:[%s4 + $0xc] sm:$0xf] %v982
  %1015 = vst [vmem:[%s4 + $0x10] sm:$0xf] %v983
  %1016 = vst [vmem:[%s4 + $0x14] sm:$0xf] %v984
  %1017 = vst [vmem:[%s4 + $0x18] sm:$0xf] %v985
  %1018 = vst [vmem:[%s4 + $0x1c] sm:$0xf] %v986
  %1019 = vst [vmem:[%s4 + $0x20] sm:$0xf] %v987
  %1020 = vst [vmem:[%s4 + $0x24] sm:$0xf] %v988
  %1021 = vst [vmem:[%s4 + $0x28] sm:$0xf] %v989
  %1022 = vst [vmem:[%s4 + $0x2c] sm:$0xf] %v990
  %1023 = vst [vmem:[%s4 + $0x30] sm:$0xf] %v991
  %1024 = vst [vmem:[%s4 + $0x34] sm:$0xf] %v992
  %1025 = vst [vmem:[%s4 + $0x38] sm:$0xf] %v993
  %1026 = vst [vmem:[%s4 + $0x3c] sm:$0xf] %v994
  // Predicated region
  $region18: #{forward.9} parent=0 // pred_check
    _
  $region19: #{forward.9} parent=0 // pred_check_branch
    %1028 = sbr.rel (0) target = $region21
  $region20: #{forward.9} parent=0 // pred_region
    _
  $region21: #{forward.9} parent=0 // pred_fallthru
    _
  // Predicated region
  $region22: #{forward.9} parent=0 // pred_check
    _
  $region23: #{forward.9} parent=0 // pred_check_branch
    %1030 = sbr.rel (0) target = $region25
  $region24: #{forward.9} parent=0 // pred_region
    _
  $region25: #{forward.9} parent=0 // pred_fallthru
    _

// kernel: forward.11
$region0: #{forward.11}
  #allocation0 [shape = 'u32[]', space=smem, size = 0x4, offset = 0x4, fixed_abs, tag = 'smem constant byte address 0x4 - core index']
  #allocation1 [shape = 'u32[144,128]{1,0:T(1,128)}', space=vmem, size = 0x12000, scoped, tag = 'internal scratch']
  %s0 = inlined_call_operand.vmem [shape: bf16[32,640], index: 0, kind: input, shape index: {}]
  %s1 = inlined_call_operand.vmem [shape: bf16[640,128], index: 1, kind: input, shape index: {}]
  %s2 = inlined_call_operand.vmem [shape: f32[1,128], index: 2, kind: input, shape index: {}]
  %s3 = inlined_call_operand.vmem [shape: f32[1,128], index: 3, kind: input, shape index: {}]
  %s4 = inlined_call_operand.vmem [shape: bf16[32,128], index: 4, kind: output, shape index: {}]
  %s5 = sld [smem:[#allocation0]]
  $region26: #{forward.11} parent=0
    _
  %s7 = ssub.s32 1, %s5
  %s8 = scalar_select 0, %s7, %s5
  // Predicated region
  $region2: #{forward.11} parent=0 // pred_check
    _
  $region3: #{forward.11} parent=0 // pred_check_branch
    %10 = sbr.rel (0) target = $region5
  $region4: #{forward.11} parent=0 // pred_region
    _
  $region5: #{forward.11} parent=0 // pred_fallthru
    _
  // Predicated region
  $region6: #{forward.11} parent=0 // pred_check
    _
  $region7: #{forward.11} parent=0 // pred_check_branch
    %12 = sbr.rel (0) target = $region9
  $region8: #{forward.11} parent=0 // pred_region
    _
  $region9: #{forward.11} parent=0 // pred_fallthru
    _
  // Predicated region
  $region10: #{forward.11} parent=0 // pred_check
    _
  $region11: #{forward.11} parent=0 // pred_check_branch
    %14 = sbr.rel (0) target = $region13
  $region12: #{forward.11} parent=0 // pred_region
    _
  $region13: #{forward.11} parent=0 // pred_fallthru
    _
  // Predicated region
  $region14: #{forward.11} parent=0 // pred_check
    _
  $region15: #{forward.11} parent=0 // pred_check_branch
    %16 = sbr.rel (0) target = $region17
  $region16: #{forward.11} parent=0 // pred_region
    _
  $region17: #{forward.11} parent=0 // pred_fallthru
    _
  %v18 = vld [vmem:[%s0] sm:$0xff]
  %v19 = vld [vmem:[%s0 + $0x8] sm:$0xff]
  %v20 = vld [vmem:[%s0 + $0x10] sm:$0xf]
  %v21 = vld [vmem:[%s0 + $0x14] sm:$0xff]
  %v22 = vld [vmem:[%s0 + $0x1c] sm:$0xff]
  %v23 = vld [vmem:[%s0 + $0x24] sm:$0xf]
  %v24 = vld [vmem:[%s0 + $0x28] sm:$0xff]
  %v25 = vld [vmem:[%s0 + $0x30] sm:$0xff]
  %v26 = vld [vmem:[%s0 + $0x38] sm:$0xf]
  %v27 = vld [vmem:[%s0 + $0x3c] sm:$0xff]
  %v28 = vld [vmem:[%s0 + $0x44] sm:$0xff]
  %v29 = vld [vmem:[%s0 + $0x4c] sm:$0xf]
  %v30 = vld [vmem:[%s1] sm:$0xf]
  %v31 = vld [vmem:[%s1 + $0x4] sm:$0xf]
  %v32 = vld [vmem:[%s1 + $0x8] sm:$0xf]
  %v33 = vld [vmem:[%s1 + $0xc] sm:$0xf]
  %v34 = vld [vmem:[%s1 + $0x10] sm:$0xf]
  %v35 = vld [vmem:[%s1 + $0x14] sm:$0xf]
  %v36 = vld [vmem:[%s1 + $0x18] sm:$0xf]
  %v37 = vld [vmem:[%s1 + $0x1c] sm:$0xf]
  %v38 = vld [vmem:[%s1 + $0x20] sm:$0xf]
  %v39 = vld [vmem:[%s1 + $0x24] sm:$0xf]
  %v40 = vld [vmem:[%s1 + $0x28] sm:$0xf]
  %v41 = vld [vmem:[%s1 + $0x2c] sm:$0xf]
  %v42 = vld [vmem:[%s1 + $0x30] sm:$0xf]
  %v43 = vld [vmem:[%s1 + $0x34] sm:$0xf]
  %v44 = vld [vmem:[%s1 + $0x38] sm:$0xf]
  %v45 = vld [vmem:[%s1 + $0x3c] sm:$0xf]
  %v46 = vld [vmem:[%s1 + $0x40] sm:$0xf]
  %v47 = vld [vmem:[%s1 + $0x44] sm:$0xf]
  %v48 = vld [vmem:[%s1 + $0x48] sm:$0xf]
  %v49 = vld [vmem:[%s1 + $0x4c] sm:$0xf]
  %v50 = vld [vmem:[%s1 + $0x50] sm:$0xf]
  %v51 = vld [vmem:[%s1 + $0x54] sm:$0xf]
  %v52 = vld [vmem:[%s1 + $0x58] sm:$0xf]
  %v53 = vld [vmem:[%s1 + $0x5c] sm:$0xf]
  %v54 = vld [vmem:[%s1 + $0x60] sm:$0xf]
  %v55 = vld [vmem:[%s1 + $0x64] sm:$0xf]
  %v56 = vld [vmem:[%s1 + $0x68] sm:$0xf]
  %v57 = vld [vmem:[%s1 + $0x6c] sm:$0xf]
  %v58 = vld [vmem:[%s1 + $0x70] sm:$0xf]
  %v59 = vld [vmem:[%s1 + $0x74] sm:$0xf]
  %v60 = vld [vmem:[%s1 + $0x78] sm:$0xf]
  %v61 = vld [vmem:[%s1 + $0x7c] sm:$0xf]
  %v62 = vld [vmem:[%s1 + $0x80] sm:$0xf]
  %v63 = vld [vmem:[%s1 + $0x84] sm:$0xf]
  %v64 = vld [vmem:[%s1 + $0x88] sm:$0xf]
  %v65 = vld [vmem:[%s1 + $0x8c] sm:$0xf]
  %v66 = vld [vmem:[%s1 + $0x90] sm:$0xf]
  %v67 = vld [vmem:[%s1 + $0x94] sm:$0xf]
  %v68 = vld [vmem:[%s1 + $0x98] sm:$0xf]
  %v69 = vld [vmem:[%s1 + $0x9c] sm:$0xf]
  %v70 = vld [vmem:[%s1 + $0xa0] sm:$0xf]
  %v71 = vld [vmem:[%s1 + $0xa4] sm:$0xf]
  %v72 = vld [vmem:[%s1 + $0xa8] sm:$0xf]
  %v73 = vld [vmem:[%s1 + $0xac] sm:$0xf]
  %v74 = vld [vmem:[%s1 + $0xb0] sm:$0xf]
  %v75 = vld [vmem:[%s1 + $0xb4] sm:$0xf]
  %v76 = vld [vmem:[%s1 + $0xb8] sm:$0xf]
  %v77 = vld [vmem:[%s1 + $0xbc] sm:$0xf]
  %v78 = vld [vmem:[%s1 + $0xc0] sm:$0xf]
  %v79 = vld [vmem:[%s1 + $0xc4] sm:$0xf]
  %v80 = vld [vmem:[%s1 + $0xc8] sm:$0xf]
  %v81 = vld [vmem:[%s1 + $0xcc] sm:$0xf]
  %v82 = vld [vmem:[%s1 + $0xd0] sm:$0xf]
  %v83 = vld [vmem:[%s1 + $0xd4] sm:$0xf]
  %v84 = vld [vmem:[%s1 + $0xd8] sm:$0xf]
  %v85 = vld [vmem:[%s1 + $0xdc] sm:$0xf]
  %v86 = vld [vmem:[%s1 + $0xe0] sm:$0xf]
  %v87 = vld [vmem:[%s1 + $0xe4] sm:$0xf]
  %v88 = vld [vmem:[%s1 + $0xe8] sm:$0xf]
  %v89 = vld [vmem:[%s1 + $0xec] sm:$0xf]
  %v90 = vld [vmem:[%s1 + $0xf0] sm:$0xf]
  %v91 = vld [vmem:[%s1 + $0xf4] sm:$0xf]
  %v92 = vld [vmem:[%s1 + $0xf8] sm:$0xf]
  %v93 = vld [vmem:[%s1 + $0xfc] sm:$0xf]
  %v94 = vld [vmem:[%s1 + $0x100] sm:$0xf]
  %v95 = vld [vmem:[%s1 + $0x104] sm:$0xf]
  %v96 = vld [vmem:[%s1 + $0x108] sm:$0xf]
  %v97 = vld [vmem:[%s1 + $0x10c] sm:$0xf]
  %v98 = vld [vmem:[%s1 + $0x110] sm:$0xf]
  %v99 = vld [vmem:[%s1 + $0x114] sm:$0xf]
  %v100 = vld [vmem:[%s1 + $0x118] sm:$0xf]
  %v101 = vld [vmem:[%s1 + $0x11c] sm:$0xf]
  %v102 = vld [vmem:[%s1 + $0x120] sm:$0xf]
  %v103 = vld [vmem:[%s1 + $0x124] sm:$0xf]
  %v104 = vld [vmem:[%s1 + $0x128] sm:$0xf]
  %v105 = vld [vmem:[%s1 + $0x12c] sm:$0xf]
  %v106 = vld [vmem:[%s1 + $0x130] sm:$0xf]
  %v107 = vld [vmem:[%s1 + $0x134] sm:$0xf]
  %v108 = vld [vmem:[%s1 + $0x138] sm:$0xf]
  %v109 = vld [vmem:[%s1 + $0x13c] sm:$0xf]
  %v122 = vunpack.c.l.b16 %v18
  %v123 = vunpack.c.h.b16 %v18
  %v124 = vunpack.c.l.b16 %v19
  %v125 = vunpack.c.h.b16 %v19
  %v126 = vunpack.c.l.b16 %v20
  %v127 = vunpack.c.l.b16 %v21
  %v128 = vunpack.c.h.b16 %v21
  %v129 = vunpack.c.l.b16 %v22
  %v130 = vunpack.c.h.b16 %v22
  %v131 = vunpack.c.l.b16 %v23
  %v132 = vunpack.c.l.b16 %v24
  %v133 = vunpack.c.h.b16 %v24
  %v134 = vunpack.c.l.b16 %v25
  %v135 = vunpack.c.h.b16 %v25
  %v136 = vunpack.c.l.b16 %v26
  %v137 = vunpack.c.l.b16 %v27
  %v138 = vunpack.c.h.b16 %v27
  %v139 = vunpack.c.l.b16 %v28
  %v140 = vunpack.c.h.b16 %v28
  %v141 = vunpack.c.l.b16 %v29
  %v142 = vpack.c.b16 %v127, %v122
  %v143 = vpack.c.b16 %v128, %v123
  %v144 = vpack.c.b16 %v129, %v124
  %v145 = vpack.c.b16 %v130, %v125
  %v146 = vpack.c.b16 %v131, %v126
  %v147 = vpack.c.b16 %v137, %v132
  %v148 = vpack.c.b16 %v138, %v133
  %v149 = vpack.c.b16 %v139, %v134
  %v150 = vpack.c.b16 %v140, %v135
  %v151 = vpack.c.b16 %v141, %v136
  %v242 = vunpack.c.l.b16 %v30
  %v243 = vunpack.c.l.b16 %v31
  %v244 = vunpack.c.l.b16 %v32
  %v245 = vunpack.c.l.b16 %v33
  %v246 = vunpack.c.l.b16 %v34
  %v247 = vunpack.c.l.b16 %v35
  %v248 = vunpack.c.l.b16 %v36
  %v249 = vunpack.c.l.b16 %v37
  %v250 = vunpack.c.l.b16 %v38
  %v251 = vunpack.c.l.b16 %v39
  %v252 = vunpack.c.l.b16 %v40
  %v253 = vunpack.c.l.b16 %v41
  %v254 = vunpack.c.l.b16 %v42
  %v255 = vunpack.c.l.b16 %v43
  %v256 = vunpack.c.l.b16 %v44
  %v257 = vunpack.c.l.b16 %v45
  %v258 = vunpack.c.l.b16 %v46
  %v259 = vunpack.c.l.b16 %v47
  %v260 = vunpack.c.l.b16 %v48
  %v261 = vunpack.c.l.b16 %v49
  %v262 = vunpack.c.l.b16 %v50
  %v263 = vunpack.c.l.b16 %v51
  %v264 = vunpack.c.l.b16 %v52
  %v265 = vunpack.c.l.b16 %v53
  %v266 = vunpack.c.l.b16 %v54
  %v267 = vunpack.c.l.b16 %v55
  %v268 = vunpack.c.l.b16 %v56
  %v269 = vunpack.c.l.b16 %v57
  %v270 = vunpack.c.l.b16 %v58
  %v271 = vunpack.c.l.b16 %v59
  %v272 = vunpack.c.l.b16 %v60
  %v273 = vunpack.c.l.b16 %v61
  %v274 = vunpack.c.l.b16 %v62
  %v275 = vunpack.c.l.b16 %v63
  %v276 = vunpack.c.l.b16 %v64
  %v277 = vunpack.c.l.b16 %v65
  %v278 = vunpack.c.l.b16 %v66
  %v279 = vunpack.c.l.b16 %v67
  %v280 = vunpack.c.l.b16 %v68
  %v281 = vunpack.c.l.b16 %v69
  %v282 = vunpack.c.l.b16 %v70
  %v283 = vunpack.c.l.b16 %v71
  %v284 = vunpack.c.l.b16 %v72
  %v285 = vunpack.c.l.b16 %v73
  %v286 = vunpack.c.l.b16 %v74
  %v287 = vunpack.c.l.b16 %v75
  %v288 = vunpack.c.l.b16 %v76
  %v289 = vunpack.c.l.b16 %v77
  %v290 = vunpack.c.l.b16 %v78
  %v291 = vunpack.c.l.b16 %v79
  %v292 = vunpack.c.l.b16 %v80
  %v293 = vunpack.c.l.b16 %v81
  %v294 = vunpack.c.l.b16 %v82
  %v295 = vunpack.c.l.b16 %v83
  %v296 = vunpack.c.l.b16 %v84
  %v297 = vunpack.c.l.b16 %v85
  %v298 = vunpack.c.l.b16 %v86
  %v299 = vunpack.c.l.b16 %v87
  %v300 = vunpack.c.l.b16 %v88
  %v301 = vunpack.c.l.b16 %v89
  %v302 = vunpack.c.l.b16 %v90
  %v303 = vunpack.c.l.b16 %v91
  %v304 = vunpack.c.l.b16 %v92
  %v305 = vunpack.c.l.b16 %v93
  %v306 = vunpack.c.l.b16 %v94
  %v307 = vunpack.c.l.b16 %v95
  %v308 = vunpack.c.l.b16 %v96
  %v309 = vunpack.c.l.b16 %v97
  %v310 = vunpack.c.l.b16 %v98
  %v311 = vunpack.c.l.b16 %v99
  %v312 = vunpack.c.l.b16 %v100
  %v313 = vunpack.c.l.b16 %v101
  %v314 = vunpack.c.l.b16 %v102
  %v315 = vunpack.c.l.b16 %v103
  %v316 = vunpack.c.l.b16 %v104
  %v317 = vunpack.c.l.b16 %v105
  %v318 = vunpack.c.l.b16 %v106
  %v319 = vunpack.c.l.b16 %v107
  %v320 = vunpack.c.l.b16 %v108
  %v321 = vunpack.c.l.b16 %v109
  %v322 = vpack.c.b16 %v243, %v242
  %v323 = vpack.c.b16 %v245, %v244
  %v324 = vpack.c.b16 %v247, %v246
  %v325 = vpack.c.b16 %v249, %v248
  %v326 = vpack.c.b16 %v251, %v250
  %v327 = vpack.c.b16 %v253, %v252
  %v328 = vpack.c.b16 %v255, %v254
  %v329 = vpack.c.b16 %v257, %v256
  %v330 = vpack.c.b16 %v259, %v258
  %v331 = vpack.c.b16 %v261, %v260
  %v332 = vpack.c.b16 %v263, %v262
  %v333 = vpack.c.b16 %v265, %v264
  %v334 = vpack.c.b16 %v267, %v266
  %v335 = vpack.c.b16 %v269, %v268
  %v336 = vpack.c.b16 %v271, %v270
  %v337 = vpack.c.b16 %v273, %v272
  %v338 = vpack.c.b16 %v275, %v274
  %v339 = vpack.c.b16 %v277, %v276
  %v340 = vpack.c.b16 %v279, %v278
  %v341 = vpack.c.b16 %v281, %v280
  %v342 = vpack.c.b16 %v283, %v282
  %v343 = vpack.c.b16 %v285, %v284
  %v344 = vpack.c.b16 %v287, %v286
  %v345 = vpack.c.b16 %v289, %v288
  %v346 = vpack.c.b16 %v291, %v290
  %v347 = vpack.c.b16 %v293, %v292
  %v348 = vpack.c.b16 %v295, %v294
  %v349 = vpack.c.b16 %v297, %v296
  %v350 = vpack.c.b16 %v299, %v298
  %v351 = vpack.c.b16 %v301, %v300
  %v352 = vpack.c.b16 %v303, %v302
  %v353 = vpack.c.b16 %v305, %v304
  %v354 = vpack.c.b16 %v307, %v306
  %v355 = vpack.c.b16 %v309, %v308
  %v356 = vpack.c.b16 %v311, %v310
  %v357 = vpack.c.b16 %v313, %v312
  %v358 = vpack.c.b16 %v315, %v314
  %v359 = vpack.c.b16 %v317, %v316
  %v360 = vpack.c.b16 %v319, %v318
  %v361 = vpack.c.b16 %v321, %v320
  %402 = vmatprep.subr.bf16.mxu0 0
  %403 = vmatpush1.bf16.msra.mxu0 %v329
  %404 = vmatprep.subr.bf16.mxu0 0
  %405 = vmatpush1.bf16.msra.mxu0 %v328
  %406 = vmatprep.subr.bf16.mxu0 0
  %407 = vmatpush1.bf16.msra.mxu0 %v327
  %408 = vmatprep.subr.bf16.mxu0 0
  %409 = vmatpush1.bf16.msra.mxu0 %v326
  %410 = vmatprep.subr.bf16.mxu0 0
  %411 = vmatpush1.bf16.msra.mxu0 %v325
  %412 = vmatprep.subr.bf16.mxu0 0
  %413 = vmatpush1.bf16.msra.mxu0 %v324
  %414 = vmatprep.subr.bf16.mxu0 0
  %415 = vmatpush1.bf16.msra.mxu0 %v323
  %416 = vmatprep.subr.bf16.mxu0 0
  %417 = vmatpush1.bf16.msra.mxu0 %v322
  %418 = vmatprep.subr.bf16.mxu0 0
  %419 = vmatpush2.bf16.msra.mxu0 %v337
  %420 = vmatprep.subr.bf16.mxu0 0
  %421 = vmatpush2.bf16.msra.mxu0 %v336
  %422 = vmatprep.subr.bf16.mxu0 0
  %423 = vmatpush2.bf16.msra.mxu0 %v335
  %424 = vmatprep.subr.bf16.mxu0 0
  %425 = vmatpush2.bf16.msra.mxu0 %v334
  %426 = vmatprep.subr.bf16.mxu0 0
  %427 = vmatpush2.bf16.msra.mxu0 %v333
  %428 = vmatprep.subr.bf16.mxu0 0
  %429 = vmatpush2.bf16.msra.mxu0 %v332
  %430 = vmatprep.subr.bf16.mxu0 0
  %431 = vmatpush2.bf16.msra.mxu0 %v331
  %432 = vmatprep.subr.bf16.mxu0 0
  %433 = vmatpush2.bf16.msra.mxu0 %v330
  %434 = vmatprep.mubr.bf16.mxu0 %v143
  %435 = vmatmul.mubr.bf16.gmra.mxu0 %v142
  %v436 = vpop.f32.mrf.mxu0
  %v437 = vadd.f32 0.0, %v436
  %v438 = vpop.f32.mrf.mxu0
  %v439 = vpop.f32.mrf.mxu0
  %v440 = vadd.f32 0.0, %v439
  %v441 = vpop.f32.mrf.mxu0
  %442 = vmatprep.mubr.bf16.mxu0 %v148
  %443 = vmatmul.mubr.bf16.gmra.mxu0 %v147
  %v444 = vpop.f32.mrf.mxu0
  %v445 = vadd.f32 0.0, %v444
  %v446 = vpop.f32.mrf.mxu0
  %v447 = vpop.f32.mrf.mxu0
  %v448 = vadd.f32 0.0, %v447
  %v449 = vpop.f32.mrf.mxu0
  %450 = vdwg.mxu0
  %451 = vmatprep.subr.bf16.mxu0 0
  %452 = vmatpush1.bf16.msra.mxu0 %v345
  %453 = vmatprep.subr.bf16.mxu0 0
  %454 = vmatpush1.bf16.msra.mxu0 %v344
  %455 = vmatprep.subr.bf16.mxu0 0
  %456 = vmatpush1.bf16.msra.mxu0 %v343
  %457 = vmatprep.subr.bf16.mxu0 0
  %458 = vmatpush1.bf16.msra.mxu0 %v342
  %459 = vmatprep.subr.bf16.mxu0 0
  %460 = vmatpush1.bf16.msra.mxu0 %v341
  %461 = vmatprep.subr.bf16.mxu0 0
  %462 = vmatpush1.bf16.msra.mxu0 %v340
  %463 = vmatprep.subr.bf16.mxu0 0
  %464 = vmatpush1.bf16.msra.mxu0 %v339
  %465 = vmatprep.subr.bf16.mxu0 0
  %466 = vmatpush1.bf16.msra.mxu0 %v338
  %467 = vmatprep.subr.bf16.mxu0 0
  %468 = vmatpush2.bf16.msra.mxu0 %v353
  %469 = vmatprep.subr.bf16.mxu0 0
  %470 = vmatpush2.bf16.msra.mxu0 %v352
  %471 = vmatprep.subr.bf16.mxu0 0
  %472 = vmatpush2.bf16.msra.mxu0 %v351
  %473 = vmatprep.subr.bf16.mxu0 0
  %474 = vmatpush2.bf16.msra.mxu0 %v350
  %475 = vmatprep.subr.bf16.mxu0 0
  %476 = vmatpush2.bf16.msra.mxu0 %v349
  %477 = vmatprep.subr.bf16.mxu0 0
  %478 = vmatpush2.bf16.msra.mxu0 %v348
  %479 = vmatprep.subr.bf16.mxu0 0
  %480 = vmatpush2.bf16.msra.mxu0 %v347
  %481 = vmatprep.subr.bf16.mxu0 0
  %482 = vmatpush2.bf16.msra.mxu0 %v346
  %483 = vmatprep.mubr.bf16.mxu0 %v145
  %484 = vmatmul.mubr.bf16.gmra.mxu0 %v144
  %v485 = vpop.f32.mrf.mxu0
  %v486 = vadd.f32 %v437, %v485
  %v487 = vpop.f32.mrf.mxu0
  %v488 = vpop.f32.mrf.mxu0
  %v489 = vadd.f32 %v440, %v488
  %v490 = vpop.f32.mrf.mxu0
  %491 = vmatprep.mubr.bf16.mxu0 %v150
  %492 = vmatmul.mubr.bf16.gmra.mxu0 %v149
  %v493 = vpop.f32.mrf.mxu0
  %v494 = vadd.f32 %v445, %v493
  %v495 = vpop.f32.mrf.mxu0
  %v496 = vpop.f32.mrf.mxu0
  %v497 = vadd.f32 %v448, %v496
  %v498 = vpop.f32.mrf.mxu0
  %499 = vdwg.mxu0
  %500 = vmatprep.subr.bf16.mxu0 0
  %501 = vmatpush1.bf16.msra.mxu0 %v361
  %502 = vmatprep.subr.bf16.mxu0 0
  %503 = vmatpush1.bf16.msra.mxu0 %v360
  %504 = vmatprep.subr.bf16.mxu0 0
  %505 = vmatpush1.bf16.msra.mxu0 %v359
  %506 = vmatprep.subr.bf16.mxu0 0
  %507 = vmatpush1.bf16.msra.mxu0 %v358
  %508 = vmatprep.subr.bf16.mxu0 0
  %509 = vmatpush1.bf16.msra.mxu0 %v357
  %510 = vmatprep.subr.bf16.mxu0 0
  %511 = vmatpush1.bf16.msra.mxu0 %v356
  %512 = vmatprep.subr.bf16.mxu0 0
  %513 = vmatpush1.bf16.msra.mxu0 %v355
  %514 = vmatprep.subr.bf16.mxu0 0
  %515 = vmatpush1.bf16.msra.mxu0 %v354
  %516 = vmatprep.subr.bf16.mxu0 0
  %517 = vmatpush2.bf16.msra.mxu0 0
  %518 = vmatprep.subr.bf16.mxu0 0
  %519 = vmatpush2.bf16.msra.mxu0 0
  %520 = vmatprep.subr.bf16.mxu0 0
  %521 = vmatpush2.bf16.msra.mxu0 0
  %522 = vmatprep.subr.bf16.mxu0 0
  %523 = vmatpush2.bf16.msra.mxu0 0
  %524 = vmatprep.subr.bf16.mxu0 0
  %525 = vmatpush2.bf16.msra.mxu0 0
  %526 = vmatprep.subr.bf16.mxu0 0
  %527 = vmatpush2.bf16.msra.mxu0 0
  %528 = vmatprep.subr.bf16.mxu0 0
  %529 = vmatpush2.bf16.msra.mxu0 0
  %530 = vmatprep.subr.bf16.mxu0 0
  %531 = vmatpush2.bf16.msra.mxu0 0
  %532 = vmatprep.mubr.bf16.mxu0 0
  %533 = vmatmul.mubr.bf16.gmra.mxu0 %v146
  %v534 = vpop.f32.mrf.mxu0
  %v535 = vadd.f32 %v486, %v534
  %v536 = vpop.f32.mrf.mxu0
  %v537 = vpop.f32.mrf.mxu0
  %v538 = vadd.f32 %v489, %v537
  %v539 = vpop.f32.mrf.mxu0
  %540 = vmatprep.mubr.bf16.mxu0 0
  %541 = vmatmul.mubr.bf16.gmra.mxu0 %v151
  %v542 = vpop.f32.mrf.mxu0
  %v543 = vadd.f32 %v494, %v542
  %v544 = vpop.f32.mrf.mxu0
  %v545 = vpop.f32.mrf.mxu0
  %v546 = vadd.f32 %v497, %v545
  %v547 = vpop.f32.mrf.mxu0
  %548 = vdwg.mxu0
  %v549 = vld [vmem:[%s2] sm:$0x1]
  %v551 = vlaneseq
  %v552 = vshrl.u32 %v551, 7
  %v553 = vsub.s32 0, %v552
  %v554 = vrot.slane %v549, %v553
  %v556 = vmul.f32 %v535, %v554
  %v557 = vmul.f32 %v538, %v554
  %v558 = vmul.f32 %v543, %v554
  %v559 = vmul.f32 %v546, %v554
  %v560 = vld [vmem:[%s3] sm:$0x1]
  %v562 = vlaneseq
  %v563 = vshrl.u32 %v562, 7
  %v564 = vsub.s32 0, %v563
  %v565 = vrot.slane %v560, %v564
  %v567 = vadd.f32 %v556, %v565
  %v568 = vadd.f32 %v557, %v565
  %v569 = vadd.f32 %v558, %v565
  %v570 = vadd.f32 %v559, %v565
  %v571 = vmax.f32 %v567, 0.0
  %v572 = vmax.f32 %v568, 0.0
  %v573 = vmax.f32 %v569, 0.0
  %v574 = vmax.f32 %v570, 0.0
  %v575 = vpack.c.bf16 %v572, %v571
  %v576 = vpack.c.bf16 %v574, %v573
  %v579 = vunpack.c.l.b16 %v575
  %v580 = vunpack.c.h.b16 %v575
  %v581 = vunpack.c.l.b16 %v576
  %v582 = vunpack.c.h.b16 %v576
  %v583 = vpack.c.b16 %v579, %v579
  %v584 = vpack.c.b16 %v580, %v580
  %v585 = vpack.c.b16 %v581, %v581
  %v586 = vpack.c.b16 %v582, %v582
  %591 = vst [vmem:[%s4] sm:$0xf] %v583
  %592 = vst [vmem:[%s4 + $0x4] sm:$0xf] %v584
  %593 = vst [vmem:[%s4 + $0x8] sm:$0xf] %v585
  %594 = vst [vmem:[%s4 + $0xc] sm:$0xf] %v586
  // Predicated region
  $region18: #{forward.11} parent=0 // pred_check
    _
  $region19: #{forward.11} parent=0 // pred_check_branch
    %596 = sbr.rel (0) target = $region21
  $region20: #{forward.11} parent=0 // pred_region
    _
  $region21: #{forward.11} parent=0 // pred_fallthru
    _
  // Predicated region
  $region22: #{forward.11} parent=0 // pred_check
    _
  $region23: #{forward.11} parent=0 // pred_check_branch
    %598 = sbr.rel (0) target = $region25
  $region24: #{forward.11} parent=0 // pred_region
    _
  $region25: #{forward.11} parent=0 // pred_fallthru
    _

// kernel: forward.12
$region0: #{forward.12}
  #allocation0 [shape = 'u32[]', space=smem, size = 0x4, offset = 0x4, fixed_abs, tag = 'smem constant byte address 0x4 - core index']
  #allocation1 [shape = 'u32[144,128]{1,0:T(1,128)}', space=vmem, size = 0x12000, scoped, tag = 'internal scratch']
  %s0 = inlined_call_operand.vmem [shape: bf16[32,1152], index: 0, kind: input, shape index: {}]
  %s1 = inlined_call_operand.vmem [shape: bf16[1152,128], index: 1, kind: input, shape index: {}]
  %s2 = inlined_call_operand.vmem [shape: f32[1,128], index: 2, kind: input, shape index: {}]
  %s3 = inlined_call_operand.vmem [shape: f32[1,128], index: 3, kind: input, shape index: {}]
  %s4 = inlined_call_operand.vmem [shape: bf16[32,128], index: 4, kind: output, shape index: {}]
  %s5 = sld [smem:[#allocation0]]
  $region26: #{forward.12} parent=0
    _
  %s7 = ssub.s32 1, %s5
  %s8 = scalar_select 0, %s7, %s5
  // Predicated region
  $region2: #{forward.12} parent=0 // pred_check
    _
  $region3: #{forward.12} parent=0 // pred_check_branch
    %10 = sbr.rel (0) target = $region5
  $region4: #{forward.12} parent=0 // pred_region
    _
  $region5: #{forward.12} parent=0 // pred_fallthru
    _
  // Predicated region
  $region6: #{forward.12} parent=0 // pred_check
    _
  $region7: #{forward.12} parent=0 // pred_check_branch
    %12 = sbr.rel (0) target = $region9
  $region8: #{forward.12} parent=0 // pred_region
    _
  $region9: #{forward.12} parent=0 // pred_fallthru
    _
  // Predicated region
  $region10: #{forward.12} parent=0 // pred_check
    _
  $region11: #{forward.12} parent=0 // pred_check_branch
    %14 = sbr.rel (0) target = $region13
  $region12: #{forward.12} parent=0 // pred_region
    _
  $region13: #{forward.12} parent=0 // pred_fallthru
    _
  // Predicated region
  $region14: #{forward.12} parent=0 // pred_check
    _
  $region15: #{forward.12} parent=0 // pred_check_branch
    %16 = sbr.rel (0) target = $region17
  $region16: #{forward.12} parent=0 // pred_region
    _
  $region17: #{forward.12} parent=0 // pred_fallthru
    _
  %v18 = vld [vmem:[%s0] sm:$0xff]
  %v19 = vld [vmem:[%s0 + $0x8] sm:$0xff]
  %v20 = vld [vmem:[%s0 + $0x10] sm:$0xff]
  %v21 = vld [vmem:[%s0 + $0x18] sm:$0xff]
  %v22 = vld [vmem:[%s0 + $0x20] sm:$0xf]
  %v23 = vld [vmem:[%s0 + $0x24] sm:$0xff]
  %v24 = vld [vmem:[%s0 + $0x2c] sm:$0xff]
  %v25 = vld [vmem:[%s0 + $0x34] sm:$0xff]
  %v26 = vld [vmem:[%s0 + $0x3c] sm:$0xff]
  %v27 = vld [vmem:[%s0 + $0x44] sm:$0xf]
  %v28 = vld [vmem:[%s0 + $0x48] sm:$0xff]
  %v29 = vld [vmem:[%s0 + $0x50] sm:$0xff]
  %v30 = vld [vmem:[%s0 + $0x58] sm:$0xff]
  %v31 = vld [vmem:[%s0 + $0x60] sm:$0xff]
  %v32 = vld [vmem:[%s0 + $0x68] sm:$0xf]
  %v33 = vld [vmem:[%s0 + $0x6c] sm:$0xff]
  %v34 = vld [vmem:[%s0 + $0x74] sm:$0xff]
  %v35 = vld [vmem:[%s0 + $0x7c] sm:$0xff]
  %v36 = vld [vmem:[%s0 + $0x84] sm:$0xff]
  %v37 = vld [vmem:[%s0 + $0x8c] sm:$0xf]
  %v38 = vld [vmem:[%s1] sm:$0xf]
  %v39 = vld [vmem:[%s1 + $0x4] sm:$0xf]
  %v40 = vld [vmem:[%s1 + $0x8] sm:$0xf]
  %v41 = vld [vmem:[%s1 + $0xc] sm:$0xf]
  %v42 = vld [vmem:[%s1 + $0x10] sm:$0xf]
  %v43 = vld [vmem:[%s1 + $0x14] sm:$0xf]
  %v44 = vld [vmem:[%s1 + $0x18] sm:$0xf]
  %v45 = vld [vmem:[%s1 + $0x1c] sm:$0xf]
  %v46 = vld [vmem:[%s1 + $0x20] sm:$0xf]
  %v47 = vld [vmem:[%s1 + $0x24] sm:$0xf]
  %v48 = vld [vmem:[%s1 + $0x28] sm:$0xf]
  %v49 = vld [vmem:[%s1 + $0x2c] sm:$0xf]
  %v50 = vld [vmem:[%s1 + $0x30] sm:$0xf]
  %v51 = vld [vmem:[%s1 + $0x34] sm:$0xf]
  %v52 = vld [vmem:[%s1 + $0x38] sm:$0xf]
  %v53 = vld [vmem:[%s1 + $0x3c] sm:$0xf]
  %v54 = vld [vmem:[%s1 + $0x40] sm:$0xf]
  %v55 = vld [vmem:[%s1 + $0x44] sm:$0xf]
  %v56 = vld [vmem:[%s1 + $0x48] sm:$0xf]
  %v57 = vld [vmem:[%s1 + $0x4c] sm:$0xf]
  %v58 = vld [vmem:[%s1 + $0x50] sm:$0xf]
  %v59 = vld [vmem:[%s1 + $0x54] sm:$0xf]
  %v60 = vld [vmem:[%s1 + $0x58] sm:$0xf]
  %v61 = vld [vmem:[%s1 + $0x5c] sm:$0xf]
  %v62 = vld [vmem:[%s1 + $0x60] sm:$0xf]
  %v63 = vld [vmem:[%s1 + $0x64] sm:$0xf]
  %v64 = vld [vmem:[%s1 + $0x68] sm:$0xf]
  %v65 = vld [vmem:[%s1 + $0x6c] sm:$0xf]
  %v66 = vld [vmem:[%s1 + $0x70] sm:$0xf]
  %v67 = vld [vmem:[%s1 + $0x74] sm:$0xf]
  %v68 = vld [vmem:[%s1 + $0x78] sm:$0xf]
  %v69 = vld [vmem:[%s1 + $0x7c] sm:$0xf]
  %v70 = vld [vmem:[%s1 + $0x80] sm:$0xf]
  %v71 = vld [vmem:[%s1 + $0x84] sm:$0xf]
  %v72 = vld [vmem:[%s1 + $0x88] sm:$0xf]
  %v73 = vld [vmem:[%s1 + $0x8c] sm:$0xf]
  %v74 = vld [vmem:[%s1 + $0x90] sm:$0xf]
  %v75 = vld [vmem:[%s1 + $0x94] sm:$0xf]
  %v76 = vld [vmem:[%s1 + $0x98] sm:$0xf]
  %v77 = vld [vmem:[%s1 + $0x9c] sm:$0xf]
  %v78 = vld [vmem:[%s1 + $0xa0] sm:$0xf]
  %v79 = vld [vmem:[%s1 + $0xa4] sm:$0xf]
  %v80 = vld [vmem:[%s1 + $0xa8] sm:$0xf]
  %v81 = vld [vmem:[%s1 + $0xac] sm:$0xf]
  %v82 = vld [vmem:[%s1 + $0xb0] sm:$0xf]
  %v83 = vld [vmem:[%s1 + $0xb4] sm:$0xf]
  %v84 = vld [vmem:[%s1 + $0xb8] sm:$0xf]
  %v85 = vld [vmem:[%s1 + $0xbc] sm:$0xf]
  %v86 = vld [vmem:[%s1 + $0xc0] sm:$0xf]
  %v87 = vld [vmem:[%s1 + $0xc4] sm:$0xf]
  %v88 = vld [vmem:[%s1 + $0xc8] sm:$0xf]
  %v89 = vld [vmem:[%s1 + $0xcc] sm:$0xf]
  %v90 = vld [vmem:[%s1 + $0xd0] sm:$0xf]
  %v91 = vld [vmem:[%s1 + $0xd4] sm:$0xf]
  %v92 = vld [vmem:[%s1 + $0xd8] sm:$0xf]
  %v93 = vld [vmem:[%s1 + $0xdc] sm:$0xf]
  %v94 = vld [vmem:[%s1 + $0xe0] sm:$0xf]
  %v95 = vld [vmem:[%s1 + $0xe4] sm:$0xf]
  %v96 = vld [vmem:[%s1 + $0xe8] sm:$0xf]
  %v97 = vld [vmem:[%s1 + $0xec] sm:$0xf]
  %v98 = vld [vmem:[%s1 + $0xf0] sm:$0xf]
  %v99 = vld [vmem:[%s1 + $0xf4] sm:$0xf]
  %v100 = vld [vmem:[%s1 + $0xf8] sm:$0xf]
  %v101 = vld [vmem:[%s1 + $0xfc] sm:$0xf]
  %v102 = vld [vmem:[%s1 + $0x100] sm:$0xf]
  %v103 = vld [vmem:[%s1 + $0x104] sm:$0xf]
  %v104 = vld [vmem:[%s1 + $0x108] sm:$0xf]
  %v105 = vld [vmem:[%s1 + $0x10c] sm:$0xf]
  %v106 = vld [vmem:[%s1 + $0x110] sm:$0xf]
  %v107 = vld [vmem:[%s1 + $0x114] sm:$0xf]
  %v108 = vld [vmem:[%s1 + $0x118] sm:$0xf]
  %v109 = vld [vmem:[%s1 + $0x11c] sm:$0xf]
  %v110 = vld [vmem:[%s1 + $0x120] sm:$0xf]
  %v111 = vld [vmem:[%s1 + $0x124] sm:$0xf]
  %v112 = vld [vmem:[%s1 + $0x128] sm:$0xf]
  %v113 = vld [vmem:[%s1 + $0x12c] sm:$0xf]
  %v114 = vld [vmem:[%s1 + $0x130] sm:$0xf]
  %v115 = vld [vmem:[%s1 + $0x134] sm:$0xf]
  %v116 = vld [vmem:[%s1 + $0x138] sm:$0xf]
  %v117 = vld [vmem:[%s1 + $0x13c] sm:$0xf]
  %v118 = vld [vmem:[%s1 + $0x140] sm:$0xf]
  %v119 = vld [vmem:[%s1 + $0x144] sm:$0xf]
  %v120 = vld [vmem:[%s1 + $0x148] sm:$0xf]
  %v121 = vld [vmem:[%s1 + $0x14c] sm:$0xf]
  %v122 = vld [vmem:[%s1 + $0x150] sm:$0xf]
  %v123 = vld [vmem:[%s1 + $0x154] sm:$0xf]
  %v124 = vld [vmem:[%s1 + $0x158] sm:$0xf]
  %v125 = vld [vmem:[%s1 + $0x15c] sm:$0xf]
  %v126 = vld [vmem:[%s1 + $0x160] sm:$0xf]
  %v127 = vld [vmem:[%s1 + $0x164] sm:$0xf]
  %v128 = vld [vmem:[%s1 + $0x168] sm:$0xf]
  %v129 = vld [vmem:[%s1 + $0x16c] sm:$0xf]
  %v130 = vld [vmem:[%s1 + $0x170] sm:$0xf]
  %v131 = vld [vmem:[%s1 + $0x174] sm:$0xf]
  %v132 = vld [vmem:[%s1 + $0x178] sm:$0xf]
  %v133 = vld [vmem:[%s1 + $0x17c] sm:$0xf]
  %v134 = vld [vmem:[%s1 + $0x180] sm:$0xf]
  %v135 = vld [vmem:[%s1 + $0x184] sm:$0xf]
  %v136 = vld [vmem:[%s1 + $0x188] sm:$0xf]
  %v137 = vld [vmem:[%s1 + $0x18c] sm:$0xf]
  %v138 = vld [vmem:[%s1 + $0x190] sm:$0xf]
  %v139 = vld [vmem:[%s1 + $0x194] sm:$0xf]
  %v140 = vld [vmem:[%s1 + $0x198] sm:$0xf]
  %v141 = vld [vmem:[%s1 + $0x19c] sm:$0xf]
  %v142 = vld [vmem:[%s1 + $0x1a0] sm:$0xf]
  %v143 = vld [vmem:[%s1 + $0x1a4] sm:$0xf]
  %v144 = vld [vmem:[%s1 + $0x1a8] sm:$0xf]
  %v145 = vld [vmem:[%s1 + $0x1ac] sm:$0xf]
  %v146 = vld [vmem:[%s1 + $0x1b0] sm:$0xf]
  %v147 = vld [vmem:[%s1 + $0x1b4] sm:$0xf]
  %v148 = vld [vmem:[%s1 + $0x1b8] sm:$0xf]
  %v149 = vld [vmem:[%s1 + $0x1bc] sm:$0xf]
  %v150 = vld [vmem:[%s1 + $0x1c0] sm:$0xf]
  %v151 = vld [vmem:[%s1 + $0x1c4] sm:$0xf]
  %v152 = vld [vmem:[%s1 + $0x1c8] sm:$0xf]
  %v153 = vld [vmem:[%s1 + $0x1cc] sm:$0xf]
  %v154 = vld [vmem:[%s1 + $0x1d0] sm:$0xf]
  %v155 = vld [vmem:[%s1 + $0x1d4] sm:$0xf]
  %v156 = vld [vmem:[%s1 + $0x1d8] sm:$0xf]
  %v157 = vld [vmem:[%s1 + $0x1dc] sm:$0xf]
  %v158 = vld [vmem:[%s1 + $0x1e0] sm:$0xf]
  %v159 = vld [vmem:[%s1 + $0x1e4] sm:$0xf]
  %v160 = vld [vmem:[%s1 + $0x1e8] sm:$0xf]
  %v161 = vld [vmem:[%s1 + $0x1ec] sm:$0xf]
  %v162 = vld [vmem:[%s1 + $0x1f0] sm:$0xf]
  %v163 = vld [vmem:[%s1 + $0x1f4] sm:$0xf]
  %v164 = vld [vmem:[%s1 + $0x1f8] sm:$0xf]
  %v165 = vld [vmem:[%s1 + $0x1fc] sm:$0xf]
  %v166 = vld [vmem:[%s1 + $0x200] sm:$0xf]
  %v167 = vld [vmem:[%s1 + $0x204] sm:$0xf]
  %v168 = vld [vmem:[%s1 + $0x208] sm:$0xf]
  %v169 = vld [vmem:[%s1 + $0x20c] sm:$0xf]
  %v170 = vld [vmem:[%s1 + $0x210] sm:$0xf]
  %v171 = vld [vmem:[%s1 + $0x214] sm:$0xf]
  %v172 = vld [vmem:[%s1 + $0x218] sm:$0xf]
  %v173 = vld [vmem:[%s1 + $0x21c] sm:$0xf]
  %v174 = vld [vmem:[%s1 + $0x220] sm:$0xf]
  %v175 = vld [vmem:[%s1 + $0x224] sm:$0xf]
  %v176 = vld [vmem:[%s1 + $0x228] sm:$0xf]
  %v177 = vld [vmem:[%s1 + $0x22c] sm:$0xf]
  %v178 = vld [vmem:[%s1 + $0x230] sm:$0xf]
  %v179 = vld [vmem:[%s1 + $0x234] sm:$0xf]
  %v180 = vld [vmem:[%s1 + $0x238] sm:$0xf]
  %v181 = vld [vmem:[%s1 + $0x23c] sm:$0xf]
  %v202 = vunpack.c.l.b16 %v18
  %v203 = vunpack.c.h.b16 %v18
  %v204 = vunpack.c.l.b16 %v19
  %v205 = vunpack.c.h.b16 %v19
  %v206 = vunpack.c.l.b16 %v20
  %v207 = vunpack.c.h.b16 %v20
  %v208 = vunpack.c.l.b16 %v21
  %v209 = vunpack.c.h.b16 %v21
  %v210 = vunpack.c.l.b16 %v22
  %v211 = vunpack.c.l.b16 %v23
  %v212 = vunpack.c.h.b16 %v23
  %v213 = vunpack.c.l.b16 %v24
  %v214 = vunpack.c.h.b16 %v24
  %v215 = vunpack.c.l.b16 %v25
  %v216 = vunpack.c.h.b16 %v25
  %v217 = vunpack.c.l.b16 %v26
  %v218 = vunpack.c.h.b16 %v26
  %v219 = vunpack.c.l.b16 %v27
  %v220 = vunpack.c.l.b16 %v28
  %v221 = vunpack.c.h.b16 %v28
  %v222 = vunpack.c.l.b16 %v29
  %v223 = vunpack.c.h.b16 %v29
  %v224 = vunpack.c.l.b16 %v30
  %v225 = vunpack.c.h.b16 %v30
  %v226 = vunpack.c.l.b16 %v31
  %v227 = vunpack.c.h.b16 %v31
  %v228 = vunpack.c.l.b16 %v32
  %v229 = vunpack.c.l.b16 %v33
  %v230 = vunpack.c.h.b16 %v33
  %v231 = vunpack.c.l.b16 %v34
  %v232 = vunpack.c.h.b16 %v34
  %v233 = vunpack.c.l.b16 %v35
  %v234 = vunpack.c.h.b16 %v35
  %v235 = vunpack.c.l.b16 %v36
  %v236 = vunpack.c.h.b16 %v36
  %v237 = vunpack.c.l.b16 %v37
  %v238 = vpack.c.b16 %v211, %v202
  %v239 = vpack.c.b16 %v212, %v203
  %v240 = vpack.c.b16 %v213, %v204
  %v241 = vpack.c.b16 %v214, %v205
  %v242 = vpack.c.b16 %v215, %v206
  %v243 = vpack.c.b16 %v216, %v207
  %v244 = vpack.c.b16 %v217, %v208
  %v245 = vpack.c.b16 %v218, %v209
  %v246 = vpack.c.b16 %v219, %v210
  %v247 = vpack.c.b16 %v229, %v220
  %v248 = vpack.c.b16 %v230, %v221
  %v249 = vpack.c.b16 %v231, %v222
  %v250 = vpack.c.b16 %v232, %v223
  %v251 = vpack.c.b16 %v233, %v224
  %v252 = vpack.c.b16 %v234, %v225
  %v253 = vpack.c.b16 %v235, %v226
  %v254 = vpack.c.b16 %v236, %v227
  %v255 = vpack.c.b16 %v237, %v228
  %v418 = vunpack.c.l.b16 %v38
  %v419 = vunpack.c.l.b16 %v39
  %v420 = vunpack.c.l.b16 %v40
  %v421 = vunpack.c.l.b16 %v41
  %v422 = vunpack.c.l.b16 %v42
  %v423 = vunpack.c.l.b16 %v43
  %v424 = vunpack.c.l.b16 %v44
  %v425 = vunpack.c.l.b16 %v45
  %v426 = vunpack.c.l.b16 %v46
  %v427 = vunpack.c.l.b16 %v47
  %v428 = vunpack.c.l.b16 %v48
  %v429 = vunpack.c.l.b16 %v49
  %v430 = vunpack.c.l.b16 %v50
  %v431 = vunpack.c.l.b16 %v51
  %v432 = vunpack.c.l.b16 %v52
  %v433 = vunpack.c.l.b16 %v53
  %v434 = vunpack.c.l.b16 %v54
  %v435 = vunpack.c.l.b16 %v55
  %v436 = vunpack.c.l.b16 %v56
  %v437 = vunpack.c.l.b16 %v57
  %v438 = vunpack.c.l.b16 %v58
  %v439 = vunpack.c.l.b16 %v59
  %v440 = vunpack.c.l.b16 %v60
  %v441 = vunpack.c.l.b16 %v61
  %v442 = vunpack.c.l.b16 %v62
  %v443 = vunpack.c.l.b16 %v63
  %v444 = vunpack.c.l.b16 %v64
  %v445 = vunpack.c.l.b16 %v65
  %v446 = vunpack.c.l.b16 %v66
  %v447 = vunpack.c.l.b16 %v67
  %v448 = vunpack.c.l.b16 %v68
  %v449 = vunpack.c.l.b16 %v69
  %v450 = vunpack.c.l.b16 %v70
  %v451 = vunpack.c.l.b16 %v71
  %v452 = vunpack.c.l.b16 %v72
  %v453 = vunpack.c.l.b16 %v73
  %v454 = vunpack.c.l.b16 %v74
  %v455 = vunpack.c.l.b16 %v75
  %v456 = vunpack.c.l.b16 %v76
  %v457 = vunpack.c.l.b16 %v77
  %v458 = vunpack.c.l.b16 %v78
  %v459 = vunpack.c.l.b16 %v79
  %v460 = vunpack.c.l.b16 %v80
  %v461 = vunpack.c.l.b16 %v81
  %v462 = vunpack.c.l.b16 %v82
  %v463 = vunpack.c.l.b16 %v83
  %v464 = vunpack.c.l.b16 %v84
  %v465 = vunpack.c.l.b16 %v85
  %v466 = vunpack.c.l.b16 %v86
  %v467 = vunpack.c.l.b16 %v87
  %v468 = vunpack.c.l.b16 %v88
  %v469 = vunpack.c.l.b16 %v89
  %v470 = vunpack.c.l.b16 %v90
  %v471 = vunpack.c.l.b16 %v91
  %v472 = vunpack.c.l.b16 %v92
  %v473 = vunpack.c.l.b16 %v93
  %v474 = vunpack.c.l.b16 %v94
  %v475 = vunpack.c.l.b16 %v95
  %v476 = vunpack.c.l.b16 %v96
  %v477 = vunpack.c.l.b16 %v97
  %v478 = vunpack.c.l.b16 %v98
  %v479 = vunpack.c.l.b16 %v99
  %v480 = vunpack.c.l.b16 %v100
  %v481 = vunpack.c.l.b16 %v101
  %v482 = vunpack.c.l.b16 %v102
  %v483 = vunpack.c.l.b16 %v103
  %v484 = vunpack.c.l.b16 %v104
  %v485 = vunpack.c.l.b16 %v105
  %v486 = vunpack.c.l.b16 %v106
  %v487 = vunpack.c.l.b16 %v107
  %v488 = vunpack.c.l.b16 %v108
  %v489 = vunpack.c.l.b16 %v109
  %v490 = vunpack.c.l.b16 %v110
  %v491 = vunpack.c.l.b16 %v111
  %v492 = vunpack.c.l.b16 %v112
  %v493 = vunpack.c.l.b16 %v113
  %v494 = vunpack.c.l.b16 %v114
  %v495 = vunpack.c.l.b16 %v115
  %v496 = vunpack.c.l.b16 %v116
  %v497 = vunpack.c.l.b16 %v117
  %v498 = vunpack.c.l.b16 %v118
  %v499 = vunpack.c.l.b16 %v119
  %v500 = vunpack.c.l.b16 %v120
  %v501 = vunpack.c.l.b16 %v121
  %v502 = vunpack.c.l.b16 %v122
  %v503 = vunpack.c.l.b16 %v123
  %v504 = vunpack.c.l.b16 %v124
  %v505 = vunpack.c.l.b16 %v125
  %v506 = vunpack.c.l.b16 %v126
  %v507 = vunpack.c.l.b16 %v127
  %v508 = vunpack.c.l.b16 %v128
  %v509 = vunpack.c.l.b16 %v129
  %v510 = vunpack.c.l.b16 %v130
  %v511 = vunpack.c.l.b16 %v131
  %v512 = vunpack.c.l.b16 %v132
  %v513 = vunpack.c.l.b16 %v133
  %v514 = vunpack.c.l.b16 %v134
  %v515 = vunpack.c.l.b16 %v135
  %v516 = vunpack.c.l.b16 %v136
  %v517 = vunpack.c.l.b16 %v137
  %v518 = vunpack.c.l.b16 %v138
  %v519 = vunpack.c.l.b16 %v139
  %v520 = vunpack.c.l.b16 %v140
  %v521 = vunpack.c.l.b16 %v141
  %v522 = vunpack.c.l.b16 %v142
  %v523 = vunpack.c.l.b16 %v143
  %v524 = vunpack.c.l.b16 %v144
  %v525 = vunpack.c.l.b16 %v145
  %v526 = vunpack.c.l.b16 %v146
  %v527 = vunpack.c.l.b16 %v147
  %v528 = vunpack.c.l.b16 %v148
  %v529 = vunpack.c.l.b16 %v149
  %v530 = vunpack.c.l.b16 %v150
  %v531 = vunpack.c.l.b16 %v151
  %v532 = vunpack.c.l.b16 %v152
  %v533 = vunpack.c.l.b16 %v153
  %v534 = vunpack.c.l.b16 %v154
  %v535 = vunpack.c.l.b16 %v155
  %v536 = vunpack.c.l.b16 %v156
  %v537 = vunpack.c.l.b16 %v157
  %v538 = vunpack.c.l.b16 %v158
  %v539 = vunpack.c.l.b16 %v159
  %v540 = vunpack.c.l.b16 %v160
  %v541 = vunpack.c.l.b16 %v161
  %v542 = vunpack.c.l.b16 %v162
  %v543 = vunpack.c.l.b16 %v163
  %v544 = vunpack.c.l.b16 %v164
  %v545 = vunpack.c.l.b16 %v165
  %v546 = vunpack.c.l.b16 %v166
  %v547 = vunpack.c.l.b16 %v167
  %v548 = vunpack.c.l.b16 %v168
  %v549 = vunpack.c.l.b16 %v169
  %v550 = vunpack.c.l.b16 %v170
  %v551 = vunpack.c.l.b16 %v171
  %v552 = vunpack.c.l.b16 %v172
  %v553 = vunpack.c.l.b16 %v173
  %v554 = vunpack.c.l.b16 %v174
  %v555 = vunpack.c.l.b16 %v175
  %v556 = vunpack.c.l.b16 %v176
  %v557 = vunpack.c.l.b16 %v177
  %v558 = vunpack.c.l.b16 %v178
  %v559 = vunpack.c.l.b16 %v179
  %v560 = vunpack.c.l.b16 %v180
  %v561 = vunpack.c.l.b16 %v181
  %v562 = vpack.c.b16 %v419, %v418
  %v563 = vpack.c.b16 %v421, %v420
  %v564 = vpack.c.b16 %v423, %v422
  %v565 = vpack.c.b16 %v425, %v424
  %v566 = vpack.c.b16 %v427, %v426
  %v567 = vpack.c.b16 %v429, %v428
  %v568 = vpack.c.b16 %v431, %v430
  %v569 = vpack.c.b16 %v433, %v432
  %v570 = vpack.c.b16 %v435, %v434
  %v571 = vpack.c.b16 %v437, %v436
  %v572 = vpack.c.b16 %v439, %v438
  %v573 = vpack.c.b16 %v441, %v440
  %v574 = vpack.c.b16 %v443, %v442
  %v575 = vpack.c.b16 %v445, %v444
  %v576 = vpack.c.b16 %v447, %v446
  %v577 = vpack.c.b16 %v449, %v448
  %v578 = vpack.c.b16 %v451, %v450
  %v579 = vpack.c.b16 %v453, %v452
  %v580 = vpack.c.b16 %v455, %v454
  %v581 = vpack.c.b16 %v457, %v456
  %v582 = vpack.c.b16 %v459, %v458
  %v583 = vpack.c.b16 %v461, %v460
  %v584 = vpack.c.b16 %v463, %v462
  %v585 = vpack.c.b16 %v465, %v464
  %v586 = vpack.c.b16 %v467, %v466
  %v587 = vpack.c.b16 %v469, %v468
  %v588 = vpack.c.b16 %v471, %v470
  %v589 = vpack.c.b16 %v473, %v472
  %v590 = vpack.c.b16 %v475, %v474
  %v591 = vpack.c.b16 %v477, %v476
  %v592 = vpack.c.b16 %v479, %v478
  %v593 = vpack.c.b16 %v481, %v480
  %v594 = vpack.c.b16 %v483, %v482
  %v595 = vpack.c.b16 %v485, %v484
  %v596 = vpack.c.b16 %v487, %v486
  %v597 = vpack.c.b16 %v489, %v488
  %v598 = vpack.c.b16 %v491, %v490
  %v599 = vpack.c.b16 %v493, %v492
  %v600 = vpack.c.b16 %v495, %v494
  %v601 = vpack.c.b16 %v497, %v496
  %v602 = vpack.c.b16 %v499, %v498
  %v603 = vpack.c.b16 %v501, %v500
  %v604 = vpack.c.b16 %v503, %v502
  %v605 = vpack.c.b16 %v505, %v504
  %v606 = vpack.c.b16 %v507, %v506
  %v607 = vpack.c.b16 %v509, %v508
  %v608 = vpack.c.b16 %v511, %v510
  %v609 = vpack.c.b16 %v513, %v512
  %v610 = vpack.c.b16 %v515, %v514
  %v611 = vpack.c.b16 %v517, %v516
  %v612 = vpack.c.b16 %v519, %v518
  %v613 = vpack.c.b16 %v521, %v520
  %v614 = vpack.c.b16 %v523, %v522
  %v615 = vpack.c.b16 %v525, %v524
  %v616 = vpack.c.b16 %v527, %v526
  %v617 = vpack.c.b16 %v529, %v528
  %v618 = vpack.c.b16 %v531, %v530
  %v619 = vpack.c.b16 %v533, %v532
  %v620 = vpack.c.b16 %v535, %v534
  %v621 = vpack.c.b16 %v537, %v536
  %v622 = vpack.c.b16 %v539, %v538
  %v623 = vpack.c.b16 %v541, %v540
  %v624 = vpack.c.b16 %v543, %v542
  %v625 = vpack.c.b16 %v545, %v544
  %v626 = vpack.c.b16 %v547, %v546
  %v627 = vpack.c.b16 %v549, %v548
  %v628 = vpack.c.b16 %v551, %v550
  %v629 = vpack.c.b16 %v553, %v552
  %v630 = vpack.c.b16 %v555, %v554
  %v631 = vpack.c.b16 %v557, %v556
  %v632 = vpack.c.b16 %v559, %v558
  %v633 = vpack.c.b16 %v561, %v560
  %706 = vmatprep.subr.bf16.mxu0 0
  %707 = vmatpush1.bf16.msra.mxu0 %v569
  %708 = vmatprep.subr.bf16.mxu0 0
  %709 = vmatpush1.bf16.msra.mxu0 %v568
  %710 = vmatprep.subr.bf16.mxu0 0
  %711 = vmatpush1.bf16.msra.mxu0 %v567
  %712 = vmatprep.subr.bf16.mxu0 0
  %713 = vmatpush1.bf16.msra.mxu0 %v566
  %714 = vmatprep.subr.bf16.mxu0 0
  %715 = vmatpush1.bf16.msra.mxu0 %v565
  %716 = vmatprep.subr.bf16.mxu0 0
  %717 = vmatpush1.bf16.msra.mxu0 %v564
  %718 = vmatprep.subr.bf16.mxu0 0
  %719 = vmatpush1.bf16.msra.mxu0 %v563
  %720 = vmatprep.subr.bf16.mxu0 0
  %721 = vmatpush1.bf16.msra.mxu0 %v562
  %722 = vmatprep.subr.bf16.mxu0 0
  %723 = vmatpush2.bf16.msra.mxu0 %v577
  %724 = vmatprep.subr.bf16.mxu0 0
  %725 = vmatpush2.bf16.msra.mxu0 %v576
  %726 = vmatprep.subr.bf16.mxu0 0
  %727 = vmatpush2.bf16.msra.mxu0 %v575
  %728 = vmatprep.subr.bf16.mxu0 0
  %729 = vmatpush2.bf16.msra.mxu0 %v574
  %730 = vmatprep.subr.bf16.mxu0 0
  %731 = vmatpush2.bf16.msra.mxu0 %v573
  %732 = vmatprep.subr.bf16.mxu0 0
  %733 = vmatpush2.bf16.msra.mxu0 %v572
  %734 = vmatprep.subr.bf16.mxu0 0
  %735 = vmatpush2.bf16.msra.mxu0 %v571
  %736 = vmatprep.subr.bf16.mxu0 0
  %737 = vmatpush2.bf16.msra.mxu0 %v570
  %738 = vmatprep.mubr.bf16.mxu0 %v239
  %739 = vmatmul.mubr.bf16.gmra.mxu0 %v238
  %v740 = vpop.f32.mrf.mxu0
  %v741 = vadd.f32 0.0, %v740
  %v742 = vpop.f32.mrf.mxu0
  %v743 = vpop.f32.mrf.mxu0
  %v744 = vadd.f32 0.0, %v743
  %v745 = vpop.f32.mrf.mxu0
  %746 = vmatprep.mubr.bf16.mxu0 %v248
  %747 = vmatmul.mubr.bf16.gmra.mxu0 %v247
  %v748 = vpop.f32.mrf.mxu0
  %v749 = vadd.f32 0.0, %v748
  %v750 = vpop.f32.mrf.mxu0
  %v751 = vpop.f32.mrf.mxu0
  %v752 = vadd.f32 0.0, %v751
  %v753 = vpop.f32.mrf.mxu0
  %754 = vdwg.mxu0
  %755 = vmatprep.subr.bf16.mxu0 0
  %756 = vmatpush1.bf16.msra.mxu0 %v585
  %757 = vmatprep.subr.bf16.mxu0 0
  %758 = vmatpush1.bf16.msra.mxu0 %v584
  %759 = vmatprep.subr.bf16.mxu0 0
  %760 = vmatpush1.bf16.msra.mxu0 %v583
  %761 = vmatprep.subr.bf16.mxu0 0
  %762 = vmatpush1.bf16.msra.mxu0 %v582
  %763 = vmatprep.subr.bf16.mxu0 0
  %764 = vmatpush1.bf16.msra.mxu0 %v581
  %765 = vmatprep.subr.bf16.mxu0 0
  %766 = vmatpush1.bf16.msra.mxu0 %v580
  %767 = vmatprep.subr.bf16.mxu0 0
  %768 = vmatpush1.bf16.msra.mxu0 %v579
  %769 = vmatprep.subr.bf16.mxu0 0
  %770 = vmatpush1.bf16.msra.mxu0 %v578
  %771 = vmatprep.subr.bf16.mxu0 0
  %772 = vmatpush2.bf16.msra.mxu0 %v593
  %773 = vmatprep.subr.bf16.mxu0 0
  %774 = vmatpush2.bf16.msra.mxu0 %v592
  %775 = vmatprep.subr.bf16.mxu0 0
  %776 = vmatpush2.bf16.msra.mxu0 %v591
  %777 = vmatprep.subr.bf16.mxu0 0
  %778 = vmatpush2.bf16.msra.mxu0 %v590
  %779 = vmatprep.subr.bf16.mxu0 0
  %780 = vmatpush2.bf16.msra.mxu0 %v589
  %781 = vmatprep.subr.bf16.mxu0 0
  %782 = vmatpush2.bf16.msra.mxu0 %v588
  %783 = vmatprep.subr.bf16.mxu0 0
  %784 = vmatpush2.bf16.msra.mxu0 %v587
  %785 = vmatprep.subr.bf16.mxu0 0
  %786 = vmatpush2.bf16.msra.mxu0 %v586
  %787 = vmatprep.mubr.bf16.mxu0 %v241
  %788 = vmatmul.mubr.bf16.gmra.mxu0 %v240
  %v789 = vpop.f32.mrf.mxu0
  %v790 = vadd.f32 %v741, %v789
  %v791 = vpop.f32.mrf.mxu0
  %v792 = vpop.f32.mrf.mxu0
  %v793 = vadd.f32 %v744, %v792
  %v794 = vpop.f32.mrf.mxu0
  %795 = vmatprep.mubr.bf16.mxu0 %v250
  %796 = vmatmul.mubr.bf16.gmra.mxu0 %v249
  %v797 = vpop.f32.mrf.mxu0
  %v798 = vadd.f32 %v749, %v797
  %v799 = vpop.f32.mrf.mxu0
  %v800 = vpop.f32.mrf.mxu0
  %v801 = vadd.f32 %v752, %v800
  %v802 = vpop.f32.mrf.mxu0
  %803 = vdwg.mxu0
  %804 = vmatprep.subr.bf16.mxu0 0
  %805 = vmatpush1.bf16.msra.mxu0 %v601
  %806 = vmatprep.subr.bf16.mxu0 0
  %807 = vmatpush1.bf16.msra.mxu0 %v600
  %808 = vmatprep.subr.bf16.mxu0 0
  %809 = vmatpush1.bf16.msra.mxu0 %v599
  %810 = vmatprep.subr.bf16.mxu0 0
  %811 = vmatpush1.bf16.msra.mxu0 %v598
  %812 = vmatprep.subr.bf16.mxu0 0
  %813 = vmatpush1.bf16.msra.mxu0 %v597
  %814 = vmatprep.subr.bf16.mxu0 0
  %815 = vmatpush1.bf16.msra.mxu0 %v596
  %816 = vmatprep.subr.bf16.mxu0 0
  %817 = vmatpush1.bf16.msra.mxu0 %v595
  %818 = vmatprep.subr.bf16.mxu0 0
  %819 = vmatpush1.bf16.msra.mxu0 %v594
  %820 = vmatprep.subr.bf16.mxu0 0
  %821 = vmatpush2.bf16.msra.mxu0 %v609
  %822 = vmatprep.subr.bf16.mxu0 0
  %823 = vmatpush2.bf16.msra.mxu0 %v608
  %824 = vmatprep.subr.bf16.mxu0 0
  %825 = vmatpush2.bf16.msra.mxu0 %v607
  %826 = vmatprep.subr.bf16.mxu0 0
  %827 = vmatpush2.bf16.msra.mxu0 %v606
  %828 = vmatprep.subr.bf16.mxu0 0
  %829 = vmatpush2.bf16.msra.mxu0 %v605
  %830 = vmatprep.subr.bf16.mxu0 0
  %831 = vmatpush2.bf16.msra.mxu0 %v604
  %832 = vmatprep.subr.bf16.mxu0 0
  %833 = vmatpush2.bf16.msra.mxu0 %v603
  %834 = vmatprep.subr.bf16.mxu0 0
  %835 = vmatpush2.bf16.msra.mxu0 %v602
  %836 = vmatprep.mubr.bf16.mxu0 %v243
  %837 = vmatmul.mubr.bf16.gmra.mxu0 %v242
  %v838 = vpop.f32.mrf.mxu0
  %v839 = vadd.f32 %v790, %v838
  %v840 = vpop.f32.mrf.mxu0
  %v841 = vpop.f32.mrf.mxu0
  %v842 = vadd.f32 %v793, %v841
  %v843 = vpop.f32.mrf.mxu0
  %844 = vmatprep.mubr.bf16.mxu0 %v252
  %845 = vmatmul.mubr.bf16.gmra.mxu0 %v251
  %v846 = vpop.f32.mrf.mxu0
  %v847 = vadd.f32 %v798, %v846
  %v848 = vpop.f32.mrf.mxu0
  %v849 = vpop.f32.mrf.mxu0
  %v850 = vadd.f32 %v801, %v849
  %v851 = vpop.f32.mrf.mxu0
  %852 = vdwg.mxu0
  %853 = vmatprep.subr.bf16.mxu0 0
  %854 = vmatpush1.bf16.msra.mxu0 %v617
  %855 = vmatprep.subr.bf16.mxu0 0
  %856 = vmatpush1.bf16.msra.mxu0 %v616
  %857 = vmatprep.subr.bf16.mxu0 0
  %858 = vmatpush1.bf16.msra.mxu0 %v615
  %859 = vmatprep.subr.bf16.mxu0 0
  %860 = vmatpush1.bf16.msra.mxu0 %v614
  %861 = vmatprep.subr.bf16.mxu0 0
  %862 = vmatpush1.bf16.msra.mxu0 %v613
  %863 = vmatprep.subr.bf16.mxu0 0
  %864 = vmatpush1.bf16.msra.mxu0 %v612
  %865 = vmatprep.subr.bf16.mxu0 0
  %866 = vmatpush1.bf16.msra.mxu0 %v611
  %867 = vmatprep.subr.bf16.mxu0 0
  %868 = vmatpush1.bf16.msra.mxu0 %v610
  %869 = vmatprep.subr.bf16.mxu0 0
  %870 = vmatpush2.bf16.msra.mxu0 %v625
  %871 = vmatprep.subr.bf16.mxu0 0
  %872 = vmatpush2.bf16.msra.mxu0 %v624
  %873 = vmatprep.subr.bf16.mxu0 0
  %874 = vmatpush2.bf16.msra.mxu0 %v623
  %875 = vmatprep.subr.bf16.mxu0 0
  %876 = vmatpush2.bf16.msra.mxu0 %v622
  %877 = vmatprep.subr.bf16.mxu0 0
  %878 = vmatpush2.bf16.msra.mxu0 %v621
  %879 = vmatprep.subr.bf16.mxu0 0
  %880 = vmatpush2.bf16.msra.mxu0 %v620
  %881 = vmatprep.subr.bf16.mxu0 0
  %882 = vmatpush2.bf16.msra.mxu0 %v619
  %883 = vmatprep.subr.bf16.mxu0 0
  %884 = vmatpush2.bf16.msra.mxu0 %v618
  %885 = vmatprep.mubr.bf16.mxu0 %v245
  %886 = vmatmul.mubr.bf16.gmra.mxu0 %v244
  %v887 = vpop.f32.mrf.mxu0
  %v888 = vadd.f32 %v839, %v887
  %v889 = vpop.f32.mrf.mxu0
  %v890 = vpop.f32.mrf.mxu0
  %v891 = vadd.f32 %v842, %v890
  %v892 = vpop.f32.mrf.mxu0
  %893 = vmatprep.mubr.bf16.mxu0 %v254
  %894 = vmatmul.mubr.bf16.gmra.mxu0 %v253
  %v895 = vpop.f32.mrf.mxu0
  %v896 = vadd.f32 %v847, %v895
  %v897 = vpop.f32.mrf.mxu0
  %v898 = vpop.f32.mrf.mxu0
  %v899 = vadd.f32 %v850, %v898
  %v900 = vpop.f32.mrf.mxu0
  %901 = vdwg.mxu0
  %902 = vmatprep.subr.bf16.mxu0 0
  %903 = vmatpush1.bf16.msra.mxu0 %v633
  %904 = vmatprep.subr.bf16.mxu0 0
  %905 = vmatpush1.bf16.msra.mxu0 %v632
  %906 = vmatprep.subr.bf16.mxu0 0
  %907 = vmatpush1.bf16.msra.mxu0 %v631
  %908 = vmatprep.subr.bf16.mxu0 0
  %909 = vmatpush1.bf16.msra.mxu0 %v630
  %910 = vmatprep.subr.bf16.mxu0 0
  %911 = vmatpush1.bf16.msra.mxu0 %v629
  %912 = vmatprep.subr.bf16.mxu0 0
  %913 = vmatpush1.bf16.msra.mxu0 %v628
  %914 = vmatprep.subr.bf16.mxu0 0
  %915 = vmatpush1.bf16.msra.mxu0 %v627
  %916 = vmatprep.subr.bf16.mxu0 0
  %917 = vmatpush1.bf16.msra.mxu0 %v626
  %918 = vmatprep.subr.bf16.mxu0 0
  %919 = vmatpush2.bf16.msra.mxu0 0
  %920 = vmatprep.subr.bf16.mxu0 0
  %921 = vmatpush2.bf16.msra.mxu0 0
  %922 = vmatprep.subr.bf16.mxu0 0
  %923 = vmatpush2.bf16.msra.mxu0 0
  %924 = vmatprep.subr.bf16.mxu0 0
  %925 = vmatpush2.bf16.msra.mxu0 0
  %926 = vmatprep.subr.bf16.mxu0 0
  %927 = vmatpush2.bf16.msra.mxu0 0
  %928 = vmatprep.subr.bf16.mxu0 0
  %929 = vmatpush2.bf16.msra.mxu0 0
  %930 = vmatprep.subr.bf16.mxu0 0
  %931 = vmatpush2.bf16.msra.mxu0 0
  %932 = vmatprep.subr.bf16.mxu0 0
  %933 = vmatpush2.bf16.msra.mxu0 0
  %934 = vmatprep.mubr.bf16.mxu0 0
  %935 = vmatmul.mubr.bf16.gmra.mxu0 %v246
  %v936 = vpop.f32.mrf.mxu0
  %v937 = vadd.f32 %v888, %v936
  %v938 = vpop.f32.mrf.mxu0
  %v939 = vpop.f32.mrf.mxu0
  %v940 = vadd.f32 %v891, %v939
  %v941 = vpop.f32.mrf.mxu0
  %942 = vmatprep.mubr.bf16.mxu0 0
  %943 = vmatmul.mubr.bf16.gmra.mxu0 %v255
  %v944 = vpop.f32.mrf.mxu0
  %v945 = vadd.f32 %v896, %v944
  %v946 = vpop.f32.mrf.mxu0
  %v947 = vpop.f32.mrf.mxu0
  %v948 = vadd.f32 %v899, %v947
  %v949 = vpop.f32.mrf.mxu0
  %950 = vdwg.mxu0
  %v951 = vld [vmem:[%s2] sm:$0x1]
  %v953 = vlaneseq
  %v954 = vshrl.u32 %v953, 7
  %v955 = vsub.s32 0, %v954
  %v956 = vrot.slane %v951, %v955
  %v958 = vmul.f32 %v937, %v956
  %v959 = vmul.f32 %v940, %v956
  %v960 = vmul.f32 %v945, %v956
  %v961 = vmul.f32 %v948, %v956
  %v962 = vld [vmem:[%s3] sm:$0x1]
  %v964 = vlaneseq
  %v965 = vshrl.u32 %v964, 7
  %v966 = vsub.s32 0, %v965
  %v967 = vrot.slane %v962, %v966
  %v969 = vadd.f32 %v958, %v967
  %v970 = vadd.f32 %v959, %v967
  %v971 = vadd.f32 %v960, %v967
  %v972 = vadd.f32 %v961, %v967
  %v973 = vmax.f32 %v969, 0.0
  %v974 = vmax.f32 %v970, 0.0
  %v975 = vmax.f32 %v971, 0.0
  %v976 = vmax.f32 %v972, 0.0
  %v977 = vpack.c.bf16 %v974, %v973
  %v978 = vpack.c.bf16 %v976, %v975
  %v981 = vunpack.c.l.b16 %v977
  %v982 = vunpack.c.h.b16 %v977
  %v983 = vunpack.c.l.b16 %v978
  %v984 = vunpack.c.h.b16 %v978
  %v985 = vpack.c.b16 %v981, %v981
  %v986 = vpack.c.b16 %v982, %v982
  %v987 = vpack.c.b16 %v983, %v983
  %v988 = vpack.c.b16 %v984, %v984
  %993 = vst [vmem:[%s4] sm:$0xf] %v985
  %994 = vst [vmem:[%s4 + $0x4] sm:$0xf] %v986
  %995 = vst [vmem:[%s4 + $0x8] sm:$0xf] %v987
  %996 = vst [vmem:[%s4 + $0xc] sm:$0xf] %v988
  // Predicated region
  $region18: #{forward.12} parent=0 // pred_check
    _
  $region19: #{forward.12} parent=0 // pred_check_branch
    %998 = sbr.rel (0) target = $region21
  $region20: #{forward.12} parent=0 // pred_region
    _
  $region21: #{forward.12} parent=0 // pred_fallthru
    _
  // Predicated region
  $region22: #{forward.12} parent=0 // pred_check
    _
  $region23: #{forward.12} parent=0 // pred_check_branch
    %1000 = sbr.rel (0) target = $region25
  $region24: #{forward.12} parent=0 // pred_region
    _
  $region25: #{forward.12} parent=0 // pred_fallthru
    _

// kernel: forward.13
$region0: #{forward.13}
  #allocation0 [shape = 'u32[]', space=smem, size = 0x4, offset = 0x4, fixed_abs, tag = 'smem constant byte address 0x4 - core index']
  #allocation1 [shape = 'u32[144,128]{1,0:T(1,128)}', space=vmem, size = 0x12000, scoped, tag = 'internal scratch']
  %s0 = inlined_call_operand.vmem [shape: bf16[8,16,128], index: 0, kind: input, shape index: {}]
  %s1 = inlined_call_operand.vmem [shape: bf16[128,1024], index: 1, kind: input, shape index: {}]
  %s2 = inlined_call_operand.vmem [shape: f32[1,1024], index: 2, kind: input, shape index: {}]
  %s3 = inlined_call_operand.vmem [shape: f32[8,1024], index: 3, kind: output, shape index: {}]
  %s4 = sld [smem:[#allocation0]]
  $region22: #{forward.13} parent=0
    _
  %s6 = ssub.s32 1, %s4
  %s7 = scalar_select 0, %s6, %s4
  // Predicated region
  $region2: #{forward.13} parent=0 // pred_check
    _
  $region3: #{forward.13} parent=0 // pred_check_branch
    %9 = sbr.rel (0) target = $region5
  $region4: #{forward.13} parent=0 // pred_region
    _
  $region5: #{forward.13} parent=0 // pred_fallthru
    _
  // Predicated region
  $region6: #{forward.13} parent=0 // pred_check
    _
  $region7: #{forward.13} parent=0 // pred_check_branch
    %11 = sbr.rel (0) target = $region9
  $region8: #{forward.13} parent=0 // pred_region
    _
  $region9: #{forward.13} parent=0 // pred_fallthru
    _
  // Predicated region
  $region10: #{forward.13} parent=0 // pred_check
    _
  $region11: #{forward.13} parent=0 // pred_check_branch
    %13 = sbr.rel (0) target = $region13
  $region12: #{forward.13} parent=0 // pred_region
    _
  $region13: #{forward.13} parent=0 // pred_fallthru
    _
  %v15 = vld [vmem:[%s0] sm:$0xf]
  %v16 = vld [vmem:[%s0 + $0x4] sm:$0xf]
  %v17 = vld [vmem:[%s0 + $0x8] sm:$0xf]
  %v18 = vld [vmem:[%s0 + $0xc] sm:$0xf]
  %v19 = vld [vmem:[%s0 + $0x10] sm:$0xf]
  %v20 = vld [vmem:[%s0 + $0x14] sm:$0xf]
  %v21 = vld [vmem:[%s0 + $0x18] sm:$0xf]
  %v22 = vld [vmem:[%s0 + $0x1c] sm:$0xf]
  %v23 = vld [vmem:[%s0 + $0x20] sm:$0xf]
  %v24 = vld [vmem:[%s0 + $0x24] sm:$0xf]
  %v25 = vld [vmem:[%s0 + $0x28] sm:$0xf]
  %v26 = vld [vmem:[%s0 + $0x2c] sm:$0xf]
  %v27 = vld [vmem:[%s0 + $0x30] sm:$0xf]
  %v28 = vld [vmem:[%s0 + $0x34] sm:$0xf]
  %v29 = vld [vmem:[%s0 + $0x38] sm:$0xf]
  %v30 = vld [vmem:[%s0 + $0x3c] sm:$0xf]
  %v31 = vunpack.c.l.bf16 %v15
  %v32 = vunpack.c.l.bf16 %v16
  %v33 = vunpack.c.l.bf16 %v17
  %v34 = vunpack.c.l.bf16 %v18
  %v35 = vunpack.c.l.bf16 %v19
  %v36 = vunpack.c.l.bf16 %v20
  %v37 = vunpack.c.l.bf16 %v21
  %v38 = vunpack.c.l.bf16 %v22
  %v39 = vunpack.c.l.bf16 %v23
  %v40 = vunpack.c.l.bf16 %v24
  %v41 = vunpack.c.l.bf16 %v25
  %v42 = vunpack.c.l.bf16 %v26
  %v43 = vunpack.c.l.bf16 %v27
  %v44 = vunpack.c.l.bf16 %v28
  %v45 = vunpack.c.l.bf16 %v29
  %v46 = vunpack.c.l.bf16 %v30
  %v47 = vadd.f32 %v31, %v32
  %v48 = vrot.slane %v47, 4
  %v49 = vadd.f32 %v47, %v48
  %v50 = vrot.slane %v49, 2
  %v51 = vadd.f32 %v49, %v50
  %v52 = vrot.slane %v51, 1
  %v53 = vadd.f32 %v51, %v52
  %v54 = vadd.f32 %v33, %v34
  %v55 = vrot.slane %v54, 4
  %v56 = vadd.f32 %v54, %v55
  %v57 = vrot.slane %v56, 2
  %v58 = vadd.f32 %v56, %v57
  %v59 = vrot.slane %v58, 1
  %v60 = vadd.f32 %v58, %v59
  %v61 = vadd.f32 %v35, %v36
  %v62 = vrot.slane %v61, 4
  %v63 = vadd.f32 %v61, %v62
  %v64 = vrot.slane %v63, 2
  %v65 = vadd.f32 %v63, %v64
  %v66 = vrot.slane %v65, 1
  %v67 = vadd.f32 %v65, %v66
  %v68 = vadd.f32 %v37, %v38
  %v69 = vrot.slane %v68, 4
  %v70 = vadd.f32 %v68, %v69
  %v71 = vrot.slane %v70, 2
  %v72 = vadd.f32 %v70, %v71
  %v73 = vrot.slane %v72, 1
  %v74 = vadd.f32 %v72, %v73
  %v75 = vadd.f32 %v39, %v40
  %v76 = vrot.slane %v75, 4
  %v77 = vadd.f32 %v75, %v76
  %v78 = vrot.slane %v77, 2
  %v79 = vadd.f32 %v77, %v78
  %v80 = vrot.slane %v79, 1
  %v81 = vadd.f32 %v79, %v80
  %v82 = vadd.f32 %v41, %v42
  %v83 = vrot.slane %v82, 4
  %v84 = vadd.f32 %v82, %v83
  %v85 = vrot.slane %v84, 2
  %v86 = vadd.f32 %v84, %v85
  %v87 = vrot.slane %v86, 1
  %v88 = vadd.f32 %v86, %v87
  %v89 = vadd.f32 %v43, %v44
  %v90 = vrot.slane %v89, 4
  %v91 = vadd.f32 %v89, %v90
  %v92 = vrot.slane %v91, 2
  %v93 = vadd.f32 %v91, %v92
  %v94 = vrot.slane %v93, 1
  %v95 = vadd.f32 %v93, %v94
  %v96 = vadd.f32 %v45, %v46
  %v97 = vrot.slane %v96, 4
  %v98 = vadd.f32 %v96, %v97
  %v99 = vrot.slane %v98, 2
  %v100 = vadd.f32 %v98, %v99
  %v101 = vrot.slane %v100, 1
  %v102 = vadd.f32 %v100, %v101
  %v103 = vmul.f32 %v53, 0.0625
  %v104 = vmul.f32 %v60, 0.0625
  %v105 = vmul.f32 %v67, 0.0625
  %v106 = vmul.f32 %v74, 0.0625
  %v107 = vmul.f32 %v81, 0.0625
  %v108 = vmul.f32 %v88, 0.0625
  %v109 = vmul.f32 %v95, 0.0625
  %v110 = vmul.f32 %v102, 0.0625
  %v111 = vpack.c.bf16 %v103, %v103
  %v112 = vpack.c.bf16 %v104, %v104
  %v113 = vpack.c.bf16 %v105, %v105
  %v114 = vpack.c.bf16 %v106, %v106
  %v115 = vpack.c.bf16 %v107, %v107
  %v116 = vpack.c.bf16 %v108, %v108
  %v117 = vpack.c.bf16 %v109, %v109
  %v118 = vpack.c.bf16 %v110, %v110
  %v119 = vld [vmem:[%s1] sm:$0xff]
  %v120 = vld [vmem:[%s1 + $0x8] sm:$0xff]
  %v121 = vld [vmem:[%s1 + $0x10] sm:$0xff]
  %v122 = vld [vmem:[%s1 + $0x18] sm:$0xff]
  %v123 = vld [vmem:[%s1 + $0x20] sm:$0xff]
  %v124 = vld [vmem:[%s1 + $0x28] sm:$0xff]
  %v125 = vld [vmem:[%s1 + $0x30] sm:$0xff]
  %v126 = vld [vmem:[%s1 + $0x38] sm:$0xff]
  %v127 = vld [vmem:[%s1 + $0x40] sm:$0xff]
  %v128 = vld [vmem:[%s1 + $0x48] sm:$0xff]
  %v129 = vld [vmem:[%s1 + $0x50] sm:$0xff]
  %v130 = vld [vmem:[%s1 + $0x58] sm:$0xff]
  %v131 = vld [vmem:[%s1 + $0x60] sm:$0xff]
  %v132 = vld [vmem:[%s1 + $0x68] sm:$0xff]
  %v133 = vld [vmem:[%s1 + $0x70] sm:$0xff]
  %v134 = vld [vmem:[%s1 + $0x78] sm:$0xff]
  %v135 = vld [vmem:[%s1 + $0x80] sm:$0xff]
  %v136 = vld [vmem:[%s1 + $0x88] sm:$0xff]
  %v137 = vld [vmem:[%s1 + $0x90] sm:$0xff]
  %v138 = vld [vmem:[%s1 + $0x98] sm:$0xff]
  %v139 = vld [vmem:[%s1 + $0xa0] sm:$0xff]
  %v140 = vld [vmem:[%s1 + $0xa8] sm:$0xff]
  %v141 = vld [vmem:[%s1 + $0xb0] sm:$0xff]
  %v142 = vld [vmem:[%s1 + $0xb8] sm:$0xff]
  %v143 = vld [vmem:[%s1 + $0xc0] sm:$0xff]
  %v144 = vld [vmem:[%s1 + $0xc8] sm:$0xff]
  %v145 = vld [vmem:[%s1 + $0xd0] sm:$0xff]
  %v146 = vld [vmem:[%s1 + $0xd8] sm:$0xff]
  %v147 = vld [vmem:[%s1 + $0xe0] sm:$0xff]
  %v148 = vld [vmem:[%s1 + $0xe8] sm:$0xff]
  %v149 = vld [vmem:[%s1 + $0xf0] sm:$0xff]
  %v150 = vld [vmem:[%s1 + $0xf8] sm:$0xff]
  %v151 = vld [vmem:[%s1 + $0x100] sm:$0xff]
  %v152 = vld [vmem:[%s1 + $0x108] sm:$0xff]
  %v153 = vld [vmem:[%s1 + $0x110] sm:$0xff]
  %v154 = vld [vmem:[%s1 + $0x118] sm:$0xff]
  %v155 = vld [vmem:[%s1 + $0x120] sm:$0xff]
  %v156 = vld [vmem:[%s1 + $0x128] sm:$0xff]
  %v157 = vld [vmem:[%s1 + $0x130] sm:$0xff]
  %v158 = vld [vmem:[%s1 + $0x138] sm:$0xff]
  %v159 = vld [vmem:[%s1 + $0x140] sm:$0xff]
  %v160 = vld [vmem:[%s1 + $0x148] sm:$0xff]
  %v161 = vld [vmem:[%s1 + $0x150] sm:$0xff]
  %v162 = vld [vmem:[%s1 + $0x158] sm:$0xff]
  %v163 = vld [vmem:[%s1 + $0x160] sm:$0xff]
  %v164 = vld [vmem:[%s1 + $0x168] sm:$0xff]
  %v165 = vld [vmem:[%s1 + $0x170] sm:$0xff]
  %v166 = vld [vmem:[%s1 + $0x178] sm:$0xff]
  %v167 = vld [vmem:[%s1 + $0x180] sm:$0xff]
  %v168 = vld [vmem:[%s1 + $0x188] sm:$0xff]
  %v169 = vld [vmem:[%s1 + $0x190] sm:$0xff]
  %v170 = vld [vmem:[%s1 + $0x198] sm:$0xff]
  %v171 = vld [vmem:[%s1 + $0x1a0] sm:$0xff]
  %v172 = vld [vmem:[%s1 + $0x1a8] sm:$0xff]
  %v173 = vld [vmem:[%s1 + $0x1b0] sm:$0xff]
  %v174 = vld [vmem:[%s1 + $0x1b8] sm:$0xff]
  %v175 = vld [vmem:[%s1 + $0x1c0] sm:$0xff]
  %v176 = vld [vmem:[%s1 + $0x1c8] sm:$0xff]
  %v177 = vld [vmem:[%s1 + $0x1d0] sm:$0xff]
  %v178 = vld [vmem:[%s1 + $0x1d8] sm:$0xff]
  %v179 = vld [vmem:[%s1 + $0x1e0] sm:$0xff]
  %v180 = vld [vmem:[%s1 + $0x1e8] sm:$0xff]
  %v181 = vld [vmem:[%s1 + $0x1f0] sm:$0xff]
  %v182 = vld [vmem:[%s1 + $0x1f8] sm:$0xff]
  %v183 = vld [vmem:[%s2] sm:$0xff]
  %v185 = vlaneseq
  %v186 = vshrl.u32 %v185, 7
  %v187 = vsub.s32 0, %v186
  %v188 = vrot.slane %v183, %v187
  %v189 = vlaneseq
  %v190 = vshrl.u32 %v189, 7
  %v191 = vsub.s32 1, %v190
  %v192 = vrot.slane %v183, %v191
  %v193 = vlaneseq
  %v194 = vshrl.u32 %v193, 7
  %v195 = vsub.s32 2, %v194
  %v196 = vrot.slane %v183, %v195
  %v197 = vlaneseq
  %v198 = vshrl.u32 %v197, 7
  %v199 = vsub.s32 3, %v198
  %v200 = vrot.slane %v183, %v199
  %v201 = vlaneseq
  %v202 = vshrl.u32 %v201, 7
  %v203 = vsub.s32 4, %v202
  %v204 = vrot.slane %v183, %v203
  %v205 = vlaneseq
  %v206 = vshrl.u32 %v205, 7
  %v207 = vsub.s32 5, %v206
  %v208 = vrot.slane %v183, %v207
  %v209 = vlaneseq
  %v210 = vshrl.u32 %v209, 7
  %v211 = vsub.s32 6, %v210
  %v212 = vrot.slane %v183, %v211
  %v213 = vlaneseq
  %v214 = vshrl.u32 %v213, 7
  %v215 = vsub.s32 7, %v214
  %v216 = vrot.slane %v183, %v215
  %v233 = vunpack.c.l.b16 %v111
  %v234 = vunpack.c.l.b16 %v112
  %v235 = vunpack.c.l.b16 %v113
  %v236 = vunpack.c.l.b16 %v114
  %v237 = vunpack.c.l.b16 %v115
  %v238 = vunpack.c.l.b16 %v116
  %v239 = vunpack.c.l.b16 %v117
  %v240 = vunpack.c.l.b16 %v118
  %vm241 = vcmask 1041409
  %v242 = vsel %vm241, %v234, %v233
  %vm243 = vcmask 1042434
  %v244 = vsel %vm243, %v235, %v242
  %vm245 = vcmask 1043459
  %v246 = vsel %vm245, %v236, %v244
  %vm247 = vcmask 1044484
  %v248 = vsel %vm247, %v237, %v246
  %vm249 = vcmask 1045509
  %v250 = vsel %vm249, %v238, %v248
  %vm251 = vcmask 1046534
  %v252 = vsel %vm251, %v239, %v250
  %vm253 = vcmask 1047559
  %v254 = vsel %vm253, %v240, %v252
  %v255 = vpack.c.b16 %v254, %v254
  %v321 = vunpack.c.l.b16 %v119
  %v322 = vunpack.c.h.b16 %v119
  %v323 = vunpack.c.l.b16 %v120
  %v324 = vunpack.c.h.b16 %v120
  %v325 = vunpack.c.l.b16 %v121
  %v326 = vunpack.c.h.b16 %v121
  %v327 = vunpack.c.l.b16 %v122
  %v328 = vunpack.c.h.b16 %v122
  %v329 = vunpack.c.l.b16 %v123
  %v330 = vunpack.c.h.b16 %v123
  %v331 = vunpack.c.l.b16 %v124
  %v332 = vunpack.c.h.b16 %v124
  %v333 = vunpack.c.l.b16 %v125
  %v334 = vunpack.c.h.b16 %v125
  %v335 = vunpack.c.l.b16 %v126
  %v336 = vunpack.c.h.b16 %v126
  %v337 = vunpack.c.l.b16 %v127
  %v338 = vunpack.c.h.b16 %v127
  %v339 = vunpack.c.l.b16 %v128
  %v340 = vunpack.c.h.b16 %v128
  %v341 = vunpack.c.l.b16 %v129
  %v342 = vunpack.c.h.b16 %v129
  %v343 = vunpack.c.l.b16 %v130
  %v344 = vunpack.c.h.b16 %v130
  %v345 = vunpack.c.l.b16 %v131
  %v346 = vunpack.c.h.b16 %v131
  %v347 = vunpack.c.l.b16 %v132
  %v348 = vunpack.c.h.b16 %v132
  %v349 = vunpack.c.l.b16 %v133
  %v350 = vunpack.c.h.b16 %v133
  %v351 = vunpack.c.l.b16 %v134
  %v352 = vunpack.c.h.b16 %v134
  %v353 = vunpack.c.l.b16 %v135
  %v354 = vunpack.c.h.b16 %v135
  %v355 = vunpack.c.l.b16 %v136
  %v356 = vunpack.c.h.b16 %v136
  %v357 = vunpack.c.l.b16 %v137
  %v358 = vunpack.c.h.b16 %v137
  %v359 = vunpack.c.l.b16 %v138
  %v360 = vunpack.c.h.b16 %v138
  %v361 = vunpack.c.l.b16 %v139
  %v362 = vunpack.c.h.b16 %v139
  %v363 = vunpack.c.l.b16 %v140
  %v364 = vunpack.c.h.b16 %v140
  %v365 = vunpack.c.l.b16 %v141
  %v366 = vunpack.c.h.b16 %v141
  %v367 = vunpack.c.l.b16 %v142
  %v368 = vunpack.c.h.b16 %v142
  %v369 = vunpack.c.l.b16 %v143
  %v370 = vunpack.c.h.b16 %v143
  %v371 = vunpack.c.l.b16 %v144
  %v372 = vunpack.c.h.b16 %v144
  %v373 = vunpack.c.l.b16 %v145
  %v374 = vunpack.c.h.b16 %v145
  %v375 = vunpack.c.l.b16 %v146
  %v376 = vunpack.c.h.b16 %v146
  %v377 = vunpack.c.l.b16 %v147
  %v378 = vunpack.c.h.b16 %v147
  %v379 = vunpack.c.l.b16 %v148
  %v380 = vunpack.c.h.b16 %v148
  %v381 = vunpack.c.l.b16 %v149
  %v382 = vunpack.c.h.b16 %v149
  %v383 = vunpack.c.l.b16 %v150
  %v384 = vunpack.c.h.b16 %v150
  %v385 = vunpack.c.l.b16 %v151
  %v386 = vunpack.c.h.b16 %v151
  %v387 = vunpack.c.l.b16 %v152
  %v388 = vunpack.c.h.b16 %v152
  %v389 = vunpack.c.l.b16 %v153
  %v390 = vunpack.c.h.b16 %v153
  %v391 = vunpack.c.l.b16 %v154
  %v392 = vunpack.c.h.b16 %v154
  %v393 = vunpack.c.l.b16 %v155
  %v394 = vunpack.c.h.b16 %v155
  %v395 = vunpack.c.l.b16 %v156
  %v396 = vunpack.c.h.b16 %v156
  %v397 = vunpack.c.l.b16 %v157
  %v398 = vunpack.c.h.b16 %v157
  %v399 = vunpack.c.l.b16 %v158
  %v400 = vunpack.c.h.b16 %v158
  %v401 = vunpack.c.l.b16 %v159
  %v402 = vunpack.c.h.b16 %v159
  %v403 = vunpack.c.l.b16 %v160
  %v404 = vunpack.c.h.b16 %v160
  %v405 = vunpack.c.l.b16 %v161
  %v406 = vunpack.c.h.b16 %v161
  %v407 = vunpack.c.l.b16 %v162
  %v408 = vunpack.c.h.b16 %v162
  %v409 = vunpack.c.l.b16 %v163
  %v410 = vunpack.c.h.b16 %v163
  %v411 = vunpack.c.l.b16 %v164
  %v412 = vunpack.c.h.b16 %v164
  %v413 = vunpack.c.l.b16 %v165
  %v414 = vunpack.c.h.b16 %v165
  %v415 = vunpack.c.l.b16 %v166
  %v416 = vunpack.c.h.b16 %v166
  %v417 = vunpack.c.l.b16 %v167
  %v418 = vunpack.c.h.b16 %v167
  %v419 = vunpack.c.l.b16 %v168
  %v420 = vunpack.c.h.b16 %v168
  %v421 = vunpack.c.l.b16 %v169
  %v422 = vunpack.c.h.b16 %v169
  %v423 = vunpack.c.l.b16 %v170
  %v424 = vunpack.c.h.b16 %v170
  %v425 = vunpack.c.l.b16 %v171
  %v426 = vunpack.c.h.b16 %v171
  %v427 = vunpack.c.l.b16 %v172
  %v428 = vunpack.c.h.b16 %v172
  %v429 = vunpack.c.l.b16 %v173
  %v430 = vunpack.c.h.b16 %v173
  %v431 = vunpack.c.l.b16 %v174
  %v432 = vunpack.c.h.b16 %v174
  %v433 = vunpack.c.l.b16 %v175
  %v434 = vunpack.c.h.b16 %v175
  %v435 = vunpack.c.l.b16 %v176
  %v436 = vunpack.c.h.b16 %v176
  %v437 = vunpack.c.l.b16 %v177
  %v438 = vunpack.c.h.b16 %v177
  %v439 = vunpack.c.l.b16 %v178
  %v440 = vunpack.c.h.b16 %v178
  %v441 = vunpack.c.l.b16 %v179
  %v442 = vunpack.c.h.b16 %v179
  %v443 = vunpack.c.l.b16 %v180
  %v444 = vunpack.c.h.b16 %v180
  %v445 = vunpack.c.l.b16 %v181
  %v446 = vunpack.c.h.b16 %v181
  %v447 = vunpack.c.l.b16 %v182
  %v448 = vunpack.c.h.b16 %v182
  %v449 = vpack.c.b16 %v329, %v321
  %v450 = vpack.c.b16 %v330, %v322
  %v451 = vpack.c.b16 %v331, %v323
  %v452 = vpack.c.b16 %v332, %v324
  %v453 = vpack.c.b16 %v333, %v325
  %v454 = vpack.c.b16 %v334, %v326
  %v455 = vpack.c.b16 %v335, %v327
  %v456 = vpack.c.b16 %v336, %v328
  %v457 = vpack.c.b16 %v345, %v337
  %v458 = vpack.c.b16 %v346, %v338
  %v459 = vpack.c.b16 %v347, %v339
  %v460 = vpack.c.b16 %v348, %v340
  %v461 = vpack.c.b16 %v349, %v341
  %v462 = vpack.c.b16 %v350, %v342
  %v463 = vpack.c.b16 %v351, %v343
  %v464 = vpack.c.b16 %v352, %v344
  %v465 = vpack.c.b16 %v361, %v353
  %v466 = vpack.c.b16 %v362, %v354
  %v467 = vpack.c.b16 %v363, %v355
  %v468 = vpack.c.b16 %v364, %v356
  %v469 = vpack.c.b16 %v365, %v357
  %v470 = vpack.c.b16 %v366, %v358
  %v471 = vpack.c.b16 %v367, %v359
  %v472 = vpack.c.b16 %v368, %v360
  %v473 = vpack.c.b16 %v377, %v369
  %v474 = vpack.c.b16 %v378, %v370
  %v475 = vpack.c.b16 %v379, %v371
  %v476 = vpack.c.b16 %v380, %v372
  %v477 = vpack.c.b16 %v381, %v373
  %v478 = vpack.c.b16 %v382, %v374
  %v479 = vpack.c.b16 %v383, %v375
  %v480 = vpack.c.b16 %v384, %v376
  %v481 = vpack.c.b16 %v393, %v385
  %v482 = vpack.c.b16 %v394, %v386
  %v483 = vpack.c.b16 %v395, %v387
  %v484 = vpack.c.b16 %v396, %v388
  %v485 = vpack.c.b16 %v397, %v389
  %v486 = vpack.c.b16 %v398, %v390
  %v487 = vpack.c.b16 %v399, %v391
  %v488 = vpack.c.b16 %v400, %v392
  %v489 = vpack.c.b16 %v409, %v401
  %v490 = vpack.c.b16 %v410, %v402
  %v491 = vpack.c.b16 %v411, %v403
  %v492 = vpack.c.b16 %v412, %v404
  %v493 = vpack.c.b16 %v413, %v405
  %v494 = vpack.c.b16 %v414, %v406
  %v495 = vpack.c.b16 %v415, %v407
  %v496 = vpack.c.b16 %v416, %v408
  %v497 = vpack.c.b16 %v425, %v417
  %v498 = vpack.c.b16 %v426, %v418
  %v499 = vpack.c.b16 %v427, %v419
  %v500 = vpack.c.b16 %v428, %v420
  %v501 = vpack.c.b16 %v429, %v421
  %v502 = vpack.c.b16 %v430, %v422
  %v503 = vpack.c.b16 %v431, %v423
  %v504 = vpack.c.b16 %v432, %v424
  %v505 = vpack.c.b16 %v441, %v433
  %v506 = vpack.c.b16 %v442, %v434
  %v507 = vpack.c.b16 %v443, %v435
  %v508 = vpack.c.b16 %v444, %v436
  %v509 = vpack.c.b16 %v445, %v437
  %v510 = vpack.c.b16 %v446, %v438
  %v511 = vpack.c.b16 %v447, %v439
  %v512 = vpack.c.b16 %v448, %v440
  %577 = vmatprep.subr.bf16.mxu0 %v506
  %578 = vmatpush1.bf16.msra.mxu0 %v505
  %579 = vmatprep.subr.bf16.mxu0 %v498
  %580 = vmatpush1.bf16.msra.mxu0 %v497
  %581 = vmatprep.subr.bf16.mxu0 %v490
  %582 = vmatpush1.bf16.msra.mxu0 %v489
  %583 = vmatprep.subr.bf16.mxu0 %v482
  %584 = vmatpush1.bf16.msra.mxu0 %v481
  %585 = vmatprep.subr.bf16.mxu0 %v474
  %586 = vmatpush1.bf16.msra.mxu0 %v473
  %587 = vmatprep.subr.bf16.mxu0 %v466
  %588 = vmatpush1.bf16.msra.mxu0 %v465
  %589 = vmatprep.subr.bf16.mxu0 %v458
  %590 = vmatpush1.bf16.msra.mxu0 %v457
  %591 = vmatprep.subr.bf16.mxu0 %v450
  %592 = vmatpush1.bf16.msra.mxu0 %v449
  %593 = vmatprep.subr.bf16.mxu0 0
  %594 = vmatpush2.bf16.msra.mxu0 0
  %595 = vmatprep.subr.bf16.mxu0 0
  %596 = vmatpush2.bf16.msra.mxu0 0
  %597 = vmatprep.subr.bf16.mxu0 0
  %598 = vmatpush2.bf16.msra.mxu0 0
  %599 = vmatprep.subr.bf16.mxu0 0
  %600 = vmatpush2.bf16.msra.mxu0 0
  %601 = vmatprep.subr.bf16.mxu0 0
  %602 = vmatpush2.bf16.msra.mxu0 0
  %603 = vmatprep.subr.bf16.mxu0 0
  %604 = vmatpush2.bf16.msra.mxu0 0
  %605 = vmatprep.subr.bf16.mxu0 0
  %606 = vmatpush2.bf16.msra.mxu0 0
  %607 = vmatprep.subr.bf16.mxu0 0
  %608 = vmatpush2.bf16.msra.mxu0 0
  %609 = vmatprep.mubr.bf16.mxu0 0
  %610 = vmatmul.mubr.bf16.gmra.mxu0 %v255
  %v611 = vpop.f32.mrf.mxu0
  %v612 = vadd.f32 %v188, %v611
  %v613 = vpop.f32.mrf.mxu0
  %v614 = vadd.f32 %v192, %v613
  %v615 = vpop.f32.mrf.mxu0
  %v616 = vpop.f32.mrf.mxu0
  %617 = vdwg.mxu0
  %618 = vmatprep.subr.bf16.mxu0 %v508
  %619 = vmatpush1.bf16.msra.mxu0 %v507
  %620 = vmatprep.subr.bf16.mxu0 %v500
  %621 = vmatpush1.bf16.msra.mxu0 %v499
  %622 = vmatprep.subr.bf16.mxu0 %v492
  %623 = vmatpush1.bf16.msra.mxu0 %v491
  %624 = vmatprep.subr.bf16.mxu0 %v484
  %625 = vmatpush1.bf16.msra.mxu0 %v483
  %626 = vmatprep.subr.bf16.mxu0 %v476
  %627 = vmatpush1.bf16.msra.mxu0 %v475
  %628 = vmatprep.subr.bf16.mxu0 %v468
  %629 = vmatpush1.bf16.msra.mxu0 %v467
  %630 = vmatprep.subr.bf16.mxu0 %v460
  %631 = vmatpush1.bf16.msra.mxu0 %v459
  %632 = vmatprep.subr.bf16.mxu0 %v452
  %633 = vmatpush1.bf16.msra.mxu0 %v451
  %634 = vmatprep.subr.bf16.mxu0 0
  %635 = vmatpush2.bf16.msra.mxu0 0
  %636 = vmatprep.subr.bf16.mxu0 0
  %637 = vmatpush2.bf16.msra.mxu0 0
  %638 = vmatprep.subr.bf16.mxu0 0
  %639 = vmatpush2.bf16.msra.mxu0 0
  %640 = vmatprep.subr.bf16.mxu0 0
  %641 = vmatpush2.bf16.msra.mxu0 0
  %642 = vmatprep.subr.bf16.mxu0 0
  %643 = vmatpush2.bf16.msra.mxu0 0
  %644 = vmatprep.subr.bf16.mxu0 0
  %645 = vmatpush2.bf16.msra.mxu0 0
  %646 = vmatprep.subr.bf16.mxu0 0
  %647 = vmatpush2.bf16.msra.mxu0 0
  %648 = vmatprep.subr.bf16.mxu0 0
  %649 = vmatpush2.bf16.msra.mxu0 0
  %650 = vmatprep.mubr.bf16.mxu0 0
  %651 = vmatmul.mubr.bf16.gmra.mxu0 %v255
  %v652 = vpop.f32.mrf.mxu0
  %v653 = vadd.f32 %v196, %v652
  %v654 = vpop.f32.mrf.mxu0
  %v655 = vadd.f32 %v200, %v654
  %v656 = vpop.f32.mrf.mxu0
  %v657 = vpop.f32.mrf.mxu0
  %658 = vdwg.mxu0
  %659 = vmatprep.subr.bf16.mxu0 %v510
  %660 = vmatpush1.bf16.msra.mxu0 %v509
  %661 = vmatprep.subr.bf16.mxu0 %v502
  %662 = vmatpush1.bf16.msra.mxu0 %v501
  %663 = vmatprep.subr.bf16.mxu0 %v494
  %664 = vmatpush1.bf16.msra.mxu0 %v493
  %665 = vmatprep.subr.bf16.mxu0 %v486
  %666 = vmatpush1.bf16.msra.mxu0 %v485
  %667 = vmatprep.subr.bf16.mxu0 %v478
  %668 = vmatpush1.bf16.msra.mxu0 %v477
  %669 = vmatprep.subr.bf16.mxu0 %v470
  %670 = vmatpush1.bf16.msra.mxu0 %v469
  %671 = vmatprep.subr.bf16.mxu0 %v462
  %672 = vmatpush1.bf16.msra.mxu0 %v461
  %673 = vmatprep.subr.bf16.mxu0 %v454
  %674 = vmatpush1.bf16.msra.mxu0 %v453
  %675 = vmatprep.subr.bf16.mxu0 0
  %676 = vmatpush2.bf16.msra.mxu0 0
  %677 = vmatprep.subr.bf16.mxu0 0
  %678 = vmatpush2.bf16.msra.mxu0 0
  %679 = vmatprep.subr.bf16.mxu0 0
  %680 = vmatpush2.bf16.msra.mxu0 0
  %681 = vmatprep.subr.bf16.mxu0 0
  %682 = vmatpush2.bf16.msra.mxu0 0
  %683 = vmatprep.subr.bf16.mxu0 0
  %684 = vmatpush2.bf16.msra.mxu0 0
  %685 = vmatprep.subr.bf16.mxu0 0
  %686 = vmatpush2.bf16.msra.mxu0 0
  %687 = vmatprep.subr.bf16.mxu0 0
  %688 = vmatpush2.bf16.msra.mxu0 0
  %689 = vmatprep.subr.bf16.mxu0 0
  %690 = vmatpush2.bf16.msra.mxu0 0
  %691 = vmatprep.mubr.bf16.mxu0 0
  %692 = vmatmul.mubr.bf16.gmra.mxu0 %v255
  %v693 = vpop.f32.mrf.mxu0
  %v694 = vadd.f32 %v204, %v693
  %v695 = vpop.f32.mrf.mxu0
  %v696 = vadd.f32 %v208, %v695
  %v697 = vpop.f32.mrf.mxu0
  %v698 = vpop.f32.mrf.mxu0
  %699 = vdwg.mxu0
  %700 = vmatprep.subr.bf16.mxu0 %v512
  %701 = vmatpush1.bf16.msra.mxu0 %v511
  %702 = vmatprep.subr.bf16.mxu0 %v504
  %703 = vmatpush1.bf16.msra.mxu0 %v503
  %704 = vmatprep.subr.bf16.mxu0 %v496
  %705 = vmatpush1.bf16.msra.mxu0 %v495
  %706 = vmatprep.subr.bf16.mxu0 %v488
  %707 = vmatpush1.bf16.msra.mxu0 %v487
  %708 = vmatprep.subr.bf16.mxu0 %v480
  %709 = vmatpush1.bf16.msra.mxu0 %v479
  %710 = vmatprep.subr.bf16.mxu0 %v472
  %711 = vmatpush1.bf16.msra.mxu0 %v471
  %712 = vmatprep.subr.bf16.mxu0 %v464
  %713 = vmatpush1.bf16.msra.mxu0 %v463
  %714 = vmatprep.subr.bf16.mxu0 %v456
  %715 = vmatpush1.bf16.msra.mxu0 %v455
  %716 = vmatprep.subr.bf16.mxu0 0
  %717 = vmatpush2.bf16.msra.mxu0 0
  %718 = vmatprep.subr.bf16.mxu0 0
  %719 = vmatpush2.bf16.msra.mxu0 0
  %720 = vmatprep.subr.bf16.mxu0 0
  %721 = vmatpush2.bf16.msra.mxu0 0
  %722 = vmatprep.subr.bf16.mxu0 0
  %723 = vmatpush2.bf16.msra.mxu0 0
  %724 = vmatprep.subr.bf16.mxu0 0
  %725 = vmatpush2.bf16.msra.mxu0 0
  %726 = vmatprep.subr.bf16.mxu0 0
  %727 = vmatpush2.bf16.msra.mxu0 0
  %728 = vmatprep.subr.bf16.mxu0 0
  %729 = vmatpush2.bf16.msra.mxu0 0
  %730 = vmatprep.subr.bf16.mxu0 0
  %731 = vmatpush2.bf16.msra.mxu0 0
  %732 = vmatprep.mubr.bf16.mxu0 0
  %733 = vmatmul.mubr.bf16.gmra.mxu0 %v255
  %v734 = vpop.f32.mrf.mxu0
  %v735 = vadd.f32 %v212, %v734
  %v736 = vpop.f32.mrf.mxu0
  %v737 = vadd.f32 %v216, %v736
  %v738 = vpop.f32.mrf.mxu0
  %v739 = vpop.f32.mrf.mxu0
  %740 = vdwg.mxu0
  %741 = vst [vmem:[%s3] sm:$0xff] %v612
  %742 = vst [vmem:[%s3 + $0x8] sm:$0xff] %v614
  %743 = vst [vmem:[%s3 + $0x10] sm:$0xff] %v653
  %744 = vst [vmem:[%s3 + $0x18] sm:$0xff] %v655
  %745 = vst [vmem:[%s3 + $0x20] sm:$0xff] %v694
  %746 = vst [vmem:[%s3 + $0x28] sm:$0xff] %v696
  %747 = vst [vmem:[%s3 + $0x30] sm:$0xff] %v735
  %748 = vst [vmem:[%s3 + $0x38] sm:$0xff] %v737
  // Predicated region
  $region14: #{forward.13} parent=0 // pred_check
    _
  $region15: #{forward.13} parent=0 // pred_check_branch
    %750 = sbr.rel (0) target = $region17
  $region16: #{forward.13} parent=0 // pred_region
    _
  $region17: #{forward.13} parent=0 // pred_fallthru
    _
  // Predicated region
  $region18: #{forward.13} parent=0 // pred_check
    _
  $region19: #{forward.13} parent=0 // pred_check_branch
    %752 = sbr.rel (0) target = $region21
  $region20: #{forward.13} parent=0 // pred_region
    _
  $region21: #{forward.13} parent=0 // pred_fallthru
    _

</llo_original>
